<compile_context>
chip_gen: v5e
topology: v5e:2x2
jax: 0.10.0
libtpu: 0.0.40
codegen_flags: <defaults>
</compile_context>

<pallas_src>
import jax
import jax.numpy as jnp
from jax.experimental import pallas as pl
from jax.experimental.pallas import tpu as pltpu


def _round_up(x, m):
    return ((x + m - 1) // m) * m


def _fold_bn(gamma, beta, mean, var, eps=1e-5):
    scale = gamma * jax.lax.rsqrt(var + eps)
    shift = beta - mean * scale
    return scale, shift


def _vmem_limit_bytes():
    try:
        cap = pltpu.get_tpu_info().vmem_capacity_bytes
    except Exception:
        cap = 64 * 1024 * 1024          # v7x per-core floor; safe everywhere
    return int(cap) * 3 // 4            # leave headroom for the compiler


def _prepare_params(params, D):
    """One-time param prep (outside the kernel):
       - fold eval-mode BatchNorm into per-feature scale/shift, split img/txt halves
       - fold a[1] into the last Linear
       - transpose torch (out, in) weights to (in, out), split on the concat axis, cast bf16
    """
    f32 = jnp.float32
    s1, t1 = _fold_bn(params["bn1_gamma"].astype(f32), params["bn1_beta"].astype(f32),
                      params["bn1_mean"].astype(f32), params["bn1_var"].astype(f32))
    s2, t2 = _fold_bn(params["bn2_gamma"].astype(f32), params["bn2_beta"].astype(f32),
                      params["bn2_mean"].astype(f32), params["bn2_var"].astype(f32))
    a = params["a"].astype(f32)
    a0 = a[0:1]                                   # (1,) scalar for SMEM
    a1 = a[1]

    w1T = params["w1"].astype(f32).T              # (2D, D)
    w2aT = params["w2a"].astype(f32).T            # (2D, 2D)
    w2bT = (params["w2b"].astype(f32) * a1).T     # (2D, D), a[1] folded in

    bf16 = jnp.bfloat16
    return dict(
        a0=a0,
        s1i=s1[:D].reshape(1, D), t1i=t1[:D].reshape(1, D),
        s1t=s1[D:].reshape(1, D), t1t=t1[D:].reshape(1, D),
        s2i=s2[:D].reshape(1, D), t2i=t2[:D].reshape(1, D),
        s2t=s2[D:].reshape(1, D), t2t=t2[D:].reshape(1, D),
        w1i=w1T[:D].astype(bf16),  w1t=w1T[D:].astype(bf16),
        b1=params["b1"].astype(f32).reshape(1, D),
        w2ai=w2aT[:D].astype(bf16), w2at=w2aT[D:].astype(bf16),
        b2a=params["b2a"].astype(f32).reshape(1, 2 * D),
        w2b=w2bT.astype(bf16),
        b2b=(params["b2b"].astype(f32) * a1).reshape(1, D),
    )


def tirg_base_kernel(a_ref, src_ref, trg_ref,
                     s1i_ref, t1i_ref, s1t_ref, t1t_ref,
                     s2i_ref, t2i_ref, s2t_ref, t2t_ref,
                     w1i_ref, w1t_ref, b1_ref,
                     w2ai_ref, w2at_ref, b2a_ref,
                     w2b_ref, b2b_ref,
                     o_ref):
    # src_ref/trg_ref/o_ref: (TB, D) f32 tiles; weights: bf16, (K, N) layout, VMEM-resident.
    imgs = trg_ref[...]                                   # TIRGDiff: imgs = trg
    txts = src_ref[...]                                   #           texts = src

    # eval-mode BN folded to per-feature affine + ReLU, split img/txt halves (no concat)
    h1i = jnp.maximum(imgs * s1i_ref[...] + t1i_ref[...], 0.0).astype(jnp.bfloat16)
    h1t = jnp.maximum(txts * s1t_ref[...] + t1t_ref[...], 0.0).astype(jnp.bfloat16)
    h2i = jnp.maximum(imgs * s2i_ref[...] + t2i_ref[...], 0.0).astype(jnp.bfloat16)
    h2t = jnp.maximum(txts * s2t_ref[...] + t2t_ref[...], 0.0).astype(jnp.bfloat16)

    # gated_feature_composer: f1 = ReLU(BN1(x)) @ W1^T + b1  (bf16 MXU, f32 accumulate)
    f1 = (jnp.dot(h1i, w1i_ref[...], preferred_element_type=jnp.float32)
          + jnp.dot(h1t, w1t_ref[...], preferred_element_type=jnp.float32)
          + b1_ref[...])

    # res_info_composer: u = ReLU(ReLU(BN2(x)) @ W2a^T + b2a); f2*a1 = u @ (a1*W2b)^T + a1*b2b
    u = (jnp.dot(h2i, w2ai_ref[...], preferred_element_type=jnp.float32)
         + jnp.dot(h2t, w2at_ref[...], preferred_element_type=jnp.float32)
         + b2a_ref[...])
    u = jnp.maximum(u, 0.0).astype(jnp.bfloat16)
    f2 = jnp.dot(u, w2b_ref[...], preferred_element_type=jnp.float32) + b2b_ref[...]

    # sigmoid via EUP exp + approx reciprocal (no VALU divide)
    gate = pl.reciprocal(1.0 + jnp.exp(-f1), approx=True)
    o_ref[...] = (gate * imgs * a_ref[0] + f2).astype(o_ref.dtype)


def tirg_diff_forward(src, trg, params, *, tb=256):
    """TIRGDiff(fusion='base').forward(src, trg). src/trg: (B, D) f32."""
    if src.ndim == 3:                                     # torch: texts.squeeze(1)
        src = jnp.squeeze(src, axis=1)
    B, D = trg.shape
    assert src.shape == (B, D)
    assert D % 128 == 0, "embed_dim must be a multiple of 128 (pad the model dim)"

    prep = _prepare_params(params, D)

    # Batch tile: multiple of 8 sublanes, clamp to whole-B for small batches.
    tb = _round_up(max(8, min(tb, _round_up(B, 8))), 8)
    Bp = _round_up(B, tb)
    if Bp != B:
        pad = Bp - B
        src = jnp.pad(src, ((0, pad), (0, 0)))
        trg = jnp.pad(trg, ((0, pad), (0, 0)))
    nb = Bp // tb

    stream_spec = pl.BlockSpec((tb, D), lambda i: (i, 0))

    def run(single_buffer):
        def cspec(shape):
            # grid-invariant operand: constant index_map; single buffer when supported
            if single_buffer:
                return pl.BlockSpec(shape, lambda i: (0, 0),
                                    pipeline_mode=pl.Buffered(1))
            return pl.BlockSpec(shape, lambda i: (0, 0))

        in_specs = [
            pl.BlockSpec(memory_space=pltpu.MemorySpace.SMEM),            # a0 (1,)
            stream_spec, stream_spec,                                     # src, trg
            cspec((1, D)), cspec((1, D)), cspec((1, D)), cspec((1, D)),   # s1i t1i s1t t1t
            cspec((1, D)), cspec((1, D)), cspec((1, D)), cspec((1, D)),   # s2i t2i s2t t2t
            cspec((D, D)), cspec((D, D)), cspec((1, D)),                  # w1i w1t b1
            cspec((D, 2 * D)), cspec((D, 2 * D)), cspec((1, 2 * D)),      # w2ai w2at b2a
            cspec((2 * D, D)), cspec((1, D)),                             # w2b b2b
        ]
        return pl.pallas_call(
            tirg_base_kernel,
            out_shape=jax.ShapeDtypeStruct((Bp, D), jnp.float32),
            grid=(nb,),
            in_specs=in_specs,
            out_specs=pl.BlockSpec((tb, D), lambda i: (i, 0)),
            compiler_params=pltpu.CompilerParams(
                dimension_semantics=("parallel",),
                vmem_limit_bytes=_vmem_limit_bytes(),
            ),
        )(prep["a0"], src, trg,
          prep["s1i"], prep["t1i"], prep["s1t"], prep["t1t"],
          prep["s2i"], prep["t2i"], prep["s2t"], prep["t2t"],
          prep["w1i"], prep["w1t"], prep["b1"],
          prep["w2ai"], prep["w2at"], prep["b2a"],
          prep["w2b"], prep["b2b"])

    try:
        out = run(True)       # single-buffer constant operands
    except Exception:         # pipeline_mode / Buffered(1) unsupported -> default buffering
        out = run(False)

    return out[:B]


def tirg_diff_ref(src, trg, params):
    """Pure-JAX reference using the same prepared (bf16, a1-folded) parameters."""
    if src.ndim == 3:
        src = jnp.squeeze(src, axis=1)
    imgs, txts = trg, src
    D = imgs.shape[1]
    p = _prepare_params(params, D)
    bf16 = jnp.bfloat16
    h1i = jnp.maximum(imgs * p["s1i"] + p["t1i"], 0.0).astype(bf16)
    h1t = jnp.maximum(txts * p["s1t"] + p["t1t"], 0.0).astype(bf16)
    h2i = jnp.maximum(imgs * p["s2i"] + p["t2i"], 0.0).astype(bf16)
    h2t = jnp.maximum(txts * p["s2t"] + p["t2t"], 0.0).astype(bf16)
    f1 = (jnp.dot(h1i, p["w1i"], preferred_element_type=jnp.float32)
          + jnp.dot(h1t, p["w1t"], preferred_element_type=jnp.float32) + p["b1"])
    u = (jnp.dot(h2i, p["w2ai"], preferred_element_type=jnp.float32)
         + jnp.dot(h2t, p["w2at"], preferred_element_type=jnp.float32) + p["b2a"])
    u = jnp.maximum(u, 0.0).astype(bf16)
    f2 = jnp.dot(u, p["w2b"], preferred_element_type=jnp.float32) + p["b2b"]
    gate = jax.nn.sigmoid(f1)
    return gate * imgs * p["a0"] + f2


if __name__ == "__main__":
    B, D = 16, 256                                 # small, lane/sublane-aligned shapes
    key = jax.random.PRNGKey(0)
    ks = jax.random.split(key, 8)

    src = jax.random.normal(ks[0], (B, D), jnp.float32)
    trg = jax.random.normal(ks[1], (B, D), jnp.float32)

    def linear_init(k, fan_out, fan_in):
        kw, kb = jax.random.split(k)
        bound = 1.0 / jnp.sqrt(jnp.float32(fan_in))
        w = jax.random.uniform(kw, (fan_out, fan_in), jnp.float32, -bound, bound)
        b = jax.random.uniform(kb, (fan_out,), jnp.float32, -bound, bound)
        return w, b

    w1, b1 = linear_init(ks[2], D, 2 * D)          # gated_feature_composer Linear
    w2a, b2a = linear_init(ks[3], 2 * D, 2 * D)    # res_info_composer Linear #1
    w2b, b2b = linear_init(ks[4], D, 2 * D)        # res_info_composer Linear #2

    def bn_params(k, n):
        k1, k2, k3, k4 = jax.random.split(k, 4)
        return (jax.random.uniform(k1, (n,), jnp.float32, 0.5, 1.5),   # gamma
                jax.random.normal(k2, (n,), jnp.float32) * 0.1,        # beta
                jax.random.normal(k3, (n,), jnp.float32) * 0.1,        # running mean
                jax.random.uniform(k4, (n,), jnp.float32, 0.5, 1.5))   # running var

    g1, be1, m1, v1 = bn_params(ks[5], 2 * D)
    g2, be2, m2, v2 = bn_params(ks[6], 2 * D)

    params = dict(
        a=jnp.asarray([1.0, 10.0, 1.0, 1.0], jnp.float32),
        w1=w1, b1=b1, w2a=w2a, b2a=b2a, w2b=w2b, b2b=b2b,
        bn1_gamma=g1, bn1_beta=be1, bn1_mean=m1, bn1_var=v1,
        bn2_gamma=g2, bn2_beta=be2, bn2_mean=m2, bn2_var=v2,
    )

    # tb=8 only to exercise a multi-step grid (grid=(2,)) at demo size; production default 256
    out = tirg_diff_forward(src, trg, params, tb=8)
    out = jax.block_until_ready(out)

    ref = tirg_diff_ref(src, trg, params)
    assert out.shape == (B, D)
    max_diff = float(jnp.max(jnp.abs(out - ref)))
    assert jnp.allclose(out, ref, atol=2e-2, rtol=2e-2), (
        "mismatch vs reference: max abs diff = %g" % max_diff)

    print("KERNEL_OK")
</pallas_src>

<mosaic_0001>
module attributes {stable_mosaic.version = 11 : i64} {
  func.func @tirg_base_kernel(%arg0: i32, %arg1: memref<1xf32, #tpu.memory_space<smem>>, %arg2: memref<8x256xf32, #tpu.memory_space<vmem>>, %arg3: memref<8x256xf32, #tpu.memory_space<vmem>>, %arg4: memref<1x256xf32, #tpu.memory_space<vmem>>, %arg5: memref<1x256xf32, #tpu.memory_space<vmem>>, %arg6: memref<1x256xf32, #tpu.memory_space<vmem>>, %arg7: memref<1x256xf32, #tpu.memory_space<vmem>>, %arg8: memref<1x256xf32, #tpu.memory_space<vmem>>, %arg9: memref<1x256xf32, #tpu.memory_space<vmem>>, %arg10: memref<1x256xf32, #tpu.memory_space<vmem>>, %arg11: memref<1x256xf32, #tpu.memory_space<vmem>>, %arg12: memref<256x256xbf16, #tpu.memory_space<vmem>>, %arg13: memref<256x256xbf16, #tpu.memory_space<vmem>>, %arg14: memref<1x256xf32, #tpu.memory_space<vmem>>, %arg15: memref<256x512xbf16, #tpu.memory_space<vmem>>, %arg16: memref<256x512xbf16, #tpu.memory_space<vmem>>, %arg17: memref<1x512xf32, #tpu.memory_space<vmem>>, %arg18: memref<512x256xbf16, #tpu.memory_space<vmem>>, %arg19: memref<1x256xf32, #tpu.memory_space<vmem>>, %arg20: memref<8x256xf32, #tpu.memory_space<vmem>>) attributes {dimension_semantics = [#tpu.dimension_semantics<parallel>], iteration_bounds = array<i64: 2>, scalar_prefetch = 0 : i64, scratch_operands = 0 : i64, tpu.core_type = #tpu.core_type<tc>, window_params = [{transform_indices = @transform_0, window_bounds = array<i64: 1>}, {transform_indices = @transform_1, window_bounds = array<i64: 8, 256>}, {transform_indices = @transform_2, window_bounds = array<i64: 8, 256>}, {pipeline_mode = #tpu.pipeline_mode<synchronous>, transform_indices = @transform_3, window_bounds = array<i64: 1, 256>}, {pipeline_mode = #tpu.pipeline_mode<synchronous>, transform_indices = @transform_4, window_bounds = array<i64: 1, 256>}, {pipeline_mode = #tpu.pipeline_mode<synchronous>, transform_indices = @transform_5, window_bounds = array<i64: 1, 256>}, {pipeline_mode = #tpu.pipeline_mode<synchronous>, transform_indices = @transform_6, window_bounds = array<i64: 1, 256>}, {pipeline_mode = #tpu.pipeline_mode<synchronous>, transform_indices = @transform_7, window_bounds = array<i64: 1, 256>}, {pipeline_mode = #tpu.pipeline_mode<synchronous>, transform_indices = @transform_8, window_bounds = array<i64: 1, 256>}, {pipeline_mode = #tpu.pipeline_mode<synchronous>, transform_indices = @transform_9, window_bounds = array<i64: 1, 256>}, {pipeline_mode = #tpu.pipeline_mode<synchronous>, transform_indices = @transform_10, window_bounds = array<i64: 1, 256>}, {pipeline_mode = #tpu.pipeline_mode<synchronous>, transform_indices = @transform_11, window_bounds = array<i64: 256, 256>}, {pipeline_mode = #tpu.pipeline_mode<synchronous>, transform_indices = @transform_12, window_bounds = array<i64: 256, 256>}, {pipeline_mode = #tpu.pipeline_mode<synchronous>, transform_indices = @transform_13, window_bounds = array<i64: 1, 256>}, {pipeline_mode = #tpu.pipeline_mode<synchronous>, transform_indices = @transform_14, window_bounds = array<i64: 256, 512>}, {pipeline_mode = #tpu.pipeline_mode<synchronous>, transform_indices = @transform_15, window_bounds = array<i64: 256, 512>}, {pipeline_mode = #tpu.pipeline_mode<synchronous>, transform_indices = @transform_16, window_bounds = array<i64: 1, 512>}, {pipeline_mode = #tpu.pipeline_mode<synchronous>, transform_indices = @transform_17, window_bounds = array<i64: 512, 256>}, {pipeline_mode = #tpu.pipeline_mode<synchronous>, transform_indices = @transform_18, window_bounds = array<i64: 1, 256>}, {transform_indices = @transform_19, window_bounds = array<i64: 8, 256>}]} {
    %c0 = arith.constant 0 : index
    %c0_0 = arith.constant 0 : index
    %0 = vector.load %arg3[%c0, %c0_0] : memref<8x256xf32, #tpu.memory_space<vmem>>, vector<8x256xf32>
    %c0_1 = arith.constant 0 : index
    %c0_2 = arith.constant 0 : index
    %1 = vector.load %arg2[%c0_1, %c0_2] : memref<8x256xf32, #tpu.memory_space<vmem>>, vector<8x256xf32>
    %c0_3 = arith.constant 0 : index
    %c0_4 = arith.constant 0 : index
    %2 = vector.load %arg4[%c0_3, %c0_4] : memref<1x256xf32, #tpu.memory_space<vmem>>, vector<1x256xf32>
    %3 = vector.broadcast %2 : vector<1x256xf32> to vector<8x256xf32>
    %4 = arith.mulf %0, %3 : vector<8x256xf32>
    %c0_5 = arith.constant 0 : index
    %c0_6 = arith.constant 0 : index
    %5 = vector.load %arg5[%c0_5, %c0_6] : memref<1x256xf32, #tpu.memory_space<vmem>>, vector<1x256xf32>
    %6 = vector.broadcast %5 : vector<1x256xf32> to vector<8x256xf32>
    %7 = arith.addf %4, %6 : vector<8x256xf32>
    %cst = arith.constant 0.000000e+00 : f32
    %8 = vector.broadcast %cst : f32 to vector<8x256xf32>
    %9 = arith.maximumf %7, %8 : vector<8x256xf32>
    %10 = arith.truncf %9 : vector<8x256xf32> to vector<8x256xbf16>
    %c0_7 = arith.constant 0 : index
    %c0_8 = arith.constant 0 : index
    %11 = vector.load %arg6[%c0_7, %c0_8] : memref<1x256xf32, #tpu.memory_space<vmem>>, vector<1x256xf32>
    %12 = vector.broadcast %11 : vector<1x256xf32> to vector<8x256xf32>
    %13 = arith.mulf %1, %12 : vector<8x256xf32>
    %c0_9 = arith.constant 0 : index
    %c0_10 = arith.constant 0 : index
    %14 = vector.load %arg7[%c0_9, %c0_10] : memref<1x256xf32, #tpu.memory_space<vmem>>, vector<1x256xf32>
    %15 = vector.broadcast %14 : vector<1x256xf32> to vector<8x256xf32>
    %16 = arith.addf %13, %15 : vector<8x256xf32>
    %cst_11 = arith.constant 0.000000e+00 : f32
    %17 = vector.broadcast %cst_11 : f32 to vector<8x256xf32>
    %18 = arith.maximumf %16, %17 : vector<8x256xf32>
    %19 = arith.truncf %18 : vector<8x256xf32> to vector<8x256xbf16>
    %c0_12 = arith.constant 0 : index
    %c0_13 = arith.constant 0 : index
    %20 = vector.load %arg8[%c0_12, %c0_13] : memref<1x256xf32, #tpu.memory_space<vmem>>, vector<1x256xf32>
    %21 = vector.broadcast %20 : vector<1x256xf32> to vector<8x256xf32>
    %22 = arith.mulf %0, %21 : vector<8x256xf32>
    %c0_14 = arith.constant 0 : index
    %c0_15 = arith.constant 0 : index
    %23 = vector.load %arg9[%c0_14, %c0_15] : memref<1x256xf32, #tpu.memory_space<vmem>>, vector<1x256xf32>
    %24 = vector.broadcast %23 : vector<1x256xf32> to vector<8x256xf32>
    %25 = arith.addf %22, %24 : vector<8x256xf32>
    %cst_16 = arith.constant 0.000000e+00 : f32
    %26 = vector.broadcast %cst_16 : f32 to vector<8x256xf32>
    %27 = arith.maximumf %25, %26 : vector<8x256xf32>
    %28 = arith.truncf %27 : vector<8x256xf32> to vector<8x256xbf16>
    %c0_17 = arith.constant 0 : index
    %c0_18 = arith.constant 0 : index
    %29 = vector.load %arg10[%c0_17, %c0_18] : memref<1x256xf32, #tpu.memory_space<vmem>>, vector<1x256xf32>
    %30 = vector.broadcast %29 : vector<1x256xf32> to vector<8x256xf32>
    %31 = arith.mulf %1, %30 : vector<8x256xf32>
    %c0_19 = arith.constant 0 : index
    %c0_20 = arith.constant 0 : index
    %32 = vector.load %arg11[%c0_19, %c0_20] : memref<1x256xf32, #tpu.memory_space<vmem>>, vector<1x256xf32>
    %33 = vector.broadcast %32 : vector<1x256xf32> to vector<8x256xf32>
    %34 = arith.addf %31, %33 : vector<8x256xf32>
    %cst_21 = arith.constant 0.000000e+00 : f32
    %35 = vector.broadcast %cst_21 : f32 to vector<8x256xf32>
    %36 = arith.maximumf %34, %35 : vector<8x256xf32>
    %37 = arith.truncf %36 : vector<8x256xf32> to vector<8x256xbf16>
    %c0_22 = arith.constant 0 : index
    %c0_23 = arith.constant 0 : index
    %38 = vector.load %arg12[%c0_22, %c0_23] : memref<256x256xbf16, #tpu.memory_space<vmem>>, vector<256x256xbf16>
    %cst_24 = arith.constant dense<0.000000e+00> : vector<8x256xf32>
    %39 = tpu.matmul %10, %38, %cst_24 {dimension_numbers = #tpu.dot_dimension_numbers<[1], [0], [0], [1], [0, 0, 1, 1], [], []>} : vector<8x256xbf16>, vector<256x256xbf16>, vector<8x256xf32> -> vector<8x256xf32>
    %c0_25 = arith.constant 0 : index
    %c0_26 = arith.constant 0 : index
    %40 = vector.load %arg13[%c0_25, %c0_26] : memref<256x256xbf16, #tpu.memory_space<vmem>>, vector<256x256xbf16>
    %cst_27 = arith.constant dense<0.000000e+00> : vector<8x256xf32>
    %41 = tpu.matmul %19, %40, %cst_27 {dimension_numbers = #tpu.dot_dimension_numbers<[1], [0], [0], [1], [0, 0, 1, 1], [], []>} : vector<8x256xbf16>, vector<256x256xbf16>, vector<8x256xf32> -> vector<8x256xf32>
    %42 = arith.addf %39, %41 : vector<8x256xf32>
    %c0_28 = arith.constant 0 : index
    %c0_29 = arith.constant 0 : index
    %43 = vector.load %arg14[%c0_28, %c0_29] : memref<1x256xf32, #tpu.memory_space<vmem>>, vector<1x256xf32>
    %44 = vector.broadcast %43 : vector<1x256xf32> to vector<8x256xf32>
    %45 = arith.addf %42, %44 : vector<8x256xf32>
    %c0_30 = arith.constant 0 : index
    %c0_31 = arith.constant 0 : index
    %46 = vector.load %arg15[%c0_30, %c0_31] : memref<256x512xbf16, #tpu.memory_space<vmem>>, vector<256x512xbf16>
    %cst_32 = arith.constant dense<0.000000e+00> : vector<8x512xf32>
    %47 = tpu.matmul %28, %46, %cst_32 {dimension_numbers = #tpu.dot_dimension_numbers<[1], [0], [0], [1], [0, 0, 1, 1], [], []>} : vector<8x256xbf16>, vector<256x512xbf16>, vector<8x512xf32> -> vector<8x512xf32>
    %c0_33 = arith.constant 0 : index
    %c0_34 = arith.constant 0 : index
    %48 = vector.load %arg16[%c0_33, %c0_34] : memref<256x512xbf16, #tpu.memory_space<vmem>>, vector<256x512xbf16>
    %cst_35 = arith.constant dense<0.000000e+00> : vector<8x512xf32>
    %49 = tpu.matmul %37, %48, %cst_35 {dimension_numbers = #tpu.dot_dimension_numbers<[1], [0], [0], [1], [0, 0, 1, 1], [], []>} : vector<8x256xbf16>, vector<256x512xbf16>, vector<8x512xf32> -> vector<8x512xf32>
    %50 = arith.addf %47, %49 : vector<8x512xf32>
    %c0_36 = arith.constant 0 : index
    %c0_37 = arith.constant 0 : index
    %51 = vector.load %arg17[%c0_36, %c0_37] : memref<1x512xf32, #tpu.memory_space<vmem>>, vector<1x512xf32>
    %52 = vector.broadcast %51 : vector<1x512xf32> to vector<8x512xf32>
    %53 = arith.addf %50, %52 : vector<8x512xf32>
    %cst_38 = arith.constant 0.000000e+00 : f32
    %54 = vector.broadcast %cst_38 : f32 to vector<8x512xf32>
    %55 = arith.maximumf %53, %54 : vector<8x512xf32>
    %56 = arith.truncf %55 : vector<8x512xf32> to vector<8x512xbf16>
    %c0_39 = arith.constant 0 : index
    %c0_40 = arith.constant 0 : index
    %57 = vector.load %arg18[%c0_39, %c0_40] : memref<512x256xbf16, #tpu.memory_space<vmem>>, vector<512x256xbf16>
    %cst_41 = arith.constant dense<0.000000e+00> : vector<8x256xf32>
    %58 = tpu.matmul %56, %57, %cst_41 {dimension_numbers = #tpu.dot_dimension_numbers<[1], [0], [0], [1], [0, 0, 1, 1], [], []>} : vector<8x512xbf16>, vector<512x256xbf16>, vector<8x256xf32> -> vector<8x256xf32>
    %c0_42 = arith.constant 0 : index
    %c0_43 = arith.constant 0 : index
    %59 = vector.load %arg19[%c0_42, %c0_43] : memref<1x256xf32, #tpu.memory_space<vmem>>, vector<1x256xf32>
    %60 = vector.broadcast %59 : vector<1x256xf32> to vector<8x256xf32>
    %61 = arith.addf %58, %60 : vector<8x256xf32>
    %cst_44 = arith.constant 0.000000e+00 : f32
    %62 = vector.broadcast %cst_44 : f32 to vector<8x256xf32>
    %63 = arith.subf %62, %45 : vector<8x256xf32>
    %64 = math.exp %63 : vector<8x256xf32>
    %cst_45 = arith.constant 1.000000e+00 : f32
    %65 = vector.broadcast %cst_45 : f32 to vector<8x256xf32>
    %66 = arith.addf %65, %64 : vector<8x256xf32>
    %67 = tpu.reciprocal %66 {approx = true} : vector<8x256xf32> -> vector<8x256xf32>
    %68 = arith.mulf %67, %0 : vector<8x256xf32>
    %c0_46 = arith.constant 0 : index
    %69 = memref.load %arg1[%c0_46] : memref<1xf32, #tpu.memory_space<smem>>
    %70 = vector.broadcast %69 : f32 to vector<8x256xf32>
    %71 = arith.mulf %68, %70 : vector<8x256xf32>
    %72 = arith.addf %71, %61 : vector<8x256xf32>
    %c0_47 = arith.constant 0 : index
    %c0_48 = arith.constant 0 : index
    %73 = vector.load %arg20[%c0_47, %c0_48] : memref<8x256xf32, #tpu.memory_space<vmem>>, vector<8x256xf32>
    tpu.vector_store %arg20[%c0_47, %c0_48], %72 {strides = array<i32>} : memref<8x256xf32, #tpu.memory_space<vmem>>, vector<8x256xf32>,
    return
  }
  func.func @transform_0(%arg0: i32) -> i32 {
    %c0_i32 = arith.constant 0 : i32
    %c0_i32_0 = arith.constant 0 : i32
    return %c0_i32 : i32
  }
  func.func @transform_1(%arg0: i32) -> (i32, i32) {
    %c0_i32 = arith.constant 0 : i32
    %c0_i32_0 = arith.constant 0 : i32
    return %arg0, %c0_i32 : i32, i32
  }
  func.func @transform_2(%arg0: i32) -> (i32, i32) {
    %c0_i32 = arith.constant 0 : i32
    %c0_i32_0 = arith.constant 0 : i32
    return %arg0, %c0_i32 : i32, i32
  }
  func.func @transform_3(%arg0: i32) -> (i32, i32) {
    %c0_i32 = arith.constant 0 : i32
    %c0_i32_0 = arith.constant 0 : i32
    %c0_i32_1 = arith.constant 0 : i32
    return %c0_i32, %c0_i32_0 : i32, i32
  }
  func.func @transform_4(%arg0: i32) -> (i32, i32) {
    %c0_i32 = arith.constant 0 : i32
    %c0_i32_0 = arith.constant 0 : i32
    %c0_i32_1 = arith.constant 0 : i32
    return %c0_i32, %c0_i32_0 : i32, i32
  }
  func.func @transform_5(%arg0: i32) -> (i32, i32) {
    %c0_i32 = arith.constant 0 : i32
    %c0_i32_0 = arith.constant 0 : i32
    %c0_i32_1 = arith.constant 0 : i32
    return %c0_i32, %c0_i32_0 : i32, i32
  }
  func.func @transform_6(%arg0: i32) -> (i32, i32) {
    %c0_i32 = arith.constant 0 : i32
    %c0_i32_0 = arith.constant 0 : i32
    %c0_i32_1 = arith.constant 0 : i32
    return %c0_i32, %c0_i32_0 : i32, i32
  }
  func.func @transform_7(%arg0: i32) -> (i32, i32) {
    %c0_i32 = arith.constant 0 : i32
    %c0_i32_0 = arith.constant 0 : i32
    %c0_i32_1 = arith.constant 0 : i32
    return %c0_i32, %c0_i32_0 : i32, i32
  }
  func.func @transform_8(%arg0: i32) -> (i32, i32) {
    %c0_i32 = arith.constant 0 : i32
    %c0_i32_0 = arith.constant 0 : i32
    %c0_i32_1 = arith.constant 0 : i32
    return %c0_i32, %c0_i32_0 : i32, i32
  }
  func.func @transform_9(%arg0: i32) -> (i32, i32) {
    %c0_i32 = arith.constant 0 : i32
    %c0_i32_0 = arith.constant 0 : i32
    %c0_i32_1 = arith.constant 0 : i32
    return %c0_i32, %c0_i32_0 : i32, i32
  }
  func.func @transform_10(%arg0: i32) -> (i32, i32) {
    %c0_i32 = arith.constant 0 : i32
    %c0_i32_0 = arith.constant 0 : i32
    %c0_i32_1 = arith.constant 0 : i32
    return %c0_i32, %c0_i32_0 : i32, i32
  }
  func.func @transform_11(%arg0: i32) -> (i32, i32) {
    %c0_i32 = arith.constant 0 : i32
    %c0_i32_0 = arith.constant 0 : i32
    %c0_i32_1 = arith.constant 0 : i32
    return %c0_i32, %c0_i32_0 : i32, i32
  }
  func.func @transform_12(%arg0: i32) -> (i32, i32) {
    %c0_i32 = arith.constant 0 : i32
    %c0_i32_0 = arith.constant 0 : i32
    %c0_i32_1 = arith.constant 0 : i32
    return %c0_i32, %c0_i32_0 : i32, i32
  }
  func.func @transform_13(%arg0: i32) -> (i32, i32) {
    %c0_i32 = arith.constant 0 : i32
    %c0_i32_0 = arith.constant 0 : i32
    %c0_i32_1 = arith.constant 0 : i32
    return %c0_i32, %c0_i32_0 : i32, i32
  }
  func.func @transform_14(%arg0: i32) -> (i32, i32) {
    %c0_i32 = arith.constant 0 : i32
    %c0_i32_0 = arith.constant 0 : i32
    %c0_i32_1 = arith.constant 0 : i32
    return %c0_i32, %c0_i32_0 : i32, i32
  }
  func.func @transform_15(%arg0: i32) -> (i32, i32) {
    %c0_i32 = arith.constant 0 : i32
    %c0_i32_0 = arith.constant 0 : i32
    %c0_i32_1 = arith.constant 0 : i32
    return %c0_i32, %c0_i32_0 : i32, i32
  }
  func.func @transform_16(%arg0: i32) -> (i32, i32) {
    %c0_i32 = arith.constant 0 : i32
    %c0_i32_0 = arith.constant 0 : i32
    %c0_i32_1 = arith.constant 0 : i32
    return %c0_i32, %c0_i32_0 : i32, i32
  }
  func.func @transform_17(%arg0: i32) -> (i32, i32) {
    %c0_i32 = arith.constant 0 : i32
    %c0_i32_0 = arith.constant 0 : i32
    %c0_i32_1 = arith.constant 0 : i32
    return %c0_i32, %c0_i32_0 : i32, i32
  }
  func.func @transform_18(%arg0: i32) -> (i32, i32) {
    %c0_i32 = arith.constant 0 : i32
    %c0_i32_0 = arith.constant 0 : i32
    %c0_i32_1 = arith.constant 0 : i32
    return %c0_i32, %c0_i32_0 : i32, i32
  }
  func.func @transform_19(%arg0: i32) -> (i32, i32) {
    %c0_i32 = arith.constant 0 : i32
    %c0_i32_0 = arith.constant 0 : i32
    return %arg0, %c0_i32 : i32, i32
  }
}

module attributes {stable_mosaic.version = 11 : i64} {
  func.func @tirg_base_kernel(%arg0: i32, %arg1: memref<1xf32, #tpu.memory_space<smem>>, %arg2: memref<8x256xf32, #tpu.memory_space<vmem>>, %arg3: memref<8x256xf32, #tpu.memory_space<vmem>>, %arg4: memref<1x256xf32, #tpu.memory_space<vmem>>, %arg5: memref<1x256xf32, #tpu.memory_space<vmem>>, %arg6: memref<1x256xf32, #tpu.memory_space<vmem>>, %arg7: memref<1x256xf32, #tpu.memory_space<vmem>>, %arg8: memref<1x256xf32, #tpu.memory_space<vmem>>, %arg9: memref<1x256xf32, #tpu.memory_space<vmem>>, %arg10: memref<1x256xf32, #tpu.memory_space<vmem>>, %arg11: memref<1x256xf32, #tpu.memory_space<vmem>>, %arg12: memref<256x256xbf16, #tpu.memory_space<vmem>>, %arg13: memref<256x256xbf16, #tpu.memory_space<vmem>>, %arg14: memref<1x256xf32, #tpu.memory_space<vmem>>, %arg15: memref<256x512xbf16, #tpu.memory_space<vmem>>, %arg16: memref<256x512xbf16, #tpu.memory_space<vmem>>, %arg17: memref<1x512xf32, #tpu.memory_space<vmem>>, %arg18: memref<512x256xbf16, #tpu.memory_space<vmem>>, %arg19: memref<1x256xf32, #tpu.memory_space<vmem>>, %arg20: memref<8x256xf32, #tpu.memory_space<vmem>>) attributes {dimension_semantics = [#tpu.dimension_semantics<parallel>], iteration_bounds = array<i64: 2>, scalar_prefetch = 0 : i64, scratch_operands = 0 : i64, tpu.core_type = #tpu.core_type<tc>, window_params = [{transform_indices = @transform_0, window_bounds = array<i64: 1>}, {transform_indices = @transform_1, window_bounds = array<i64: 8, 256>}, {transform_indices = @transform_2, window_bounds = array<i64: 8, 256>}, {pipeline_mode = #tpu.pipeline_mode<synchronous>, transform_indices = @transform_3, window_bounds = array<i64: 1, 256>}, {pipeline_mode = #tpu.pipeline_mode<synchronous>, transform_indices = @transform_4, window_bounds = array<i64: 1, 256>}, {pipeline_mode = #tpu.pipeline_mode<synchronous>, transform_indices = @transform_5, window_bounds = array<i64: 1, 256>}, {pipeline_mode = #tpu.pipeline_mode<synchronous>, transform_indices = @transform_6, window_bounds = array<i64: 1, 256>}, {pipeline_mode = #tpu.pipeline_mode<synchronous>, transform_indices = @transform_7, window_bounds = array<i64: 1, 256>}, {pipeline_mode = #tpu.pipeline_mode<synchronous>, transform_indices = @transform_8, window_bounds = array<i64: 1, 256>}, {pipeline_mode = #tpu.pipeline_mode<synchronous>, transform_indices = @transform_9, window_bounds = array<i64: 1, 256>}, {pipeline_mode = #tpu.pipeline_mode<synchronous>, transform_indices = @transform_10, window_bounds = array<i64: 1, 256>}, {pipeline_mode = #tpu.pipeline_mode<synchronous>, transform_indices = @transform_11, window_bounds = array<i64: 256, 256>}, {pipeline_mode = #tpu.pipeline_mode<synchronous>, transform_indices = @transform_12, window_bounds = array<i64: 256, 256>}, {pipeline_mode = #tpu.pipeline_mode<synchronous>, transform_indices = @transform_13, window_bounds = array<i64: 1, 256>}, {pipeline_mode = #tpu.pipeline_mode<synchronous>, transform_indices = @transform_14, window_bounds = array<i64: 256, 512>}, {pipeline_mode = #tpu.pipeline_mode<synchronous>, transform_indices = @transform_15, window_bounds = array<i64: 256, 512>}, {pipeline_mode = #tpu.pipeline_mode<synchronous>, transform_indices = @transform_16, window_bounds = array<i64: 1, 512>}, {pipeline_mode = #tpu.pipeline_mode<synchronous>, transform_indices = @transform_17, window_bounds = array<i64: 512, 256>}, {pipeline_mode = #tpu.pipeline_mode<synchronous>, transform_indices = @transform_18, window_bounds = array<i64: 1, 256>}, {transform_indices = @transform_19, window_bounds = array<i64: 8, 256>}]} {
    %c0 = arith.constant 0 : index
    %c0_0 = arith.constant 0 : index
    %0 = vector.load %arg3[%c0, %c0_0] : memref<8x256xf32, #tpu.memory_space<vmem>>, vector<8x256xf32>
    %c0_1 = arith.constant 0 : index
    %c0_2 = arith.constant 0 : index
    %1 = vector.load %arg2[%c0_1, %c0_2] : memref<8x256xf32, #tpu.memory_space<vmem>>, vector<8x256xf32>
    %c0_3 = arith.constant 0 : index
    %c0_4 = arith.constant 0 : index
    %2 = vector.load %arg4[%c0_3, %c0_4] : memref<1x256xf32, #tpu.memory_space<vmem>>, vector<1x256xf32>
    %3 = vector.broadcast %2 : vector<1x256xf32> to vector<8x256xf32>
    %4 = arith.mulf %0, %3 : vector<8x256xf32>
    %c0_5 = arith.constant 0 : index
    %c0_6 = arith.constant 0 : index
    %5 = vector.load %arg5[%c0_5, %c0_6] : memref<1x256xf32, #tpu.memory_space<vmem>>, vector<1x256xf32>
    %6 = vector.broadcast %5 : vector<1x256xf32> to vector<8x256xf32>
    %7 = arith.addf %4, %6 : vector<8x256xf32>
    %cst = arith.constant 0.000000e+00 : f32
    %8 = vector.broadcast %cst : f32 to vector<8x256xf32>
    %9 = arith.maximumf %7, %8 : vector<8x256xf32>
    %10 = arith.truncf %9 : vector<8x256xf32> to vector<8x256xbf16>
    %c0_7 = arith.constant 0 : index
    %c0_8 = arith.constant 0 : index
    %11 = vector.load %arg6[%c0_7, %c0_8] : memref<1x256xf32, #tpu.memory_space<vmem>>, vector<1x256xf32>
    %12 = vector.broadcast %11 : vector<1x256xf32> to vector<8x256xf32>
    %13 = arith.mulf %1, %12 : vector<8x256xf32>
    %c0_9 = arith.constant 0 : index
    %c0_10 = arith.constant 0 : index
    %14 = vector.load %arg7[%c0_9, %c0_10] : memref<1x256xf32, #tpu.memory_space<vmem>>, vector<1x256xf32>
    %15 = vector.broadcast %14 : vector<1x256xf32> to vector<8x256xf32>
    %16 = arith.addf %13, %15 : vector<8x256xf32>
    %cst_11 = arith.constant 0.000000e+00 : f32
    %17 = vector.broadcast %cst_11 : f32 to vector<8x256xf32>
    %18 = arith.maximumf %16, %17 : vector<8x256xf32>
    %19 = arith.truncf %18 : vector<8x256xf32> to vector<8x256xbf16>
    %c0_12 = arith.constant 0 : index
    %c0_13 = arith.constant 0 : index
    %20 = vector.load %arg8[%c0_12, %c0_13] : memref<1x256xf32, #tpu.memory_space<vmem>>, vector<1x256xf32>
    %21 = vector.broadcast %20 : vector<1x256xf32> to vector<8x256xf32>
    %22 = arith.mulf %0, %21 : vector<8x256xf32>
    %c0_14 = arith.constant 0 : index
    %c0_15 = arith.constant 0 : index
    %23 = vector.load %arg9[%c0_14, %c0_15] : memref<1x256xf32, #tpu.memory_space<vmem>>, vector<1x256xf32>
    %24 = vector.broadcast %23 : vector<1x256xf32> to vector<8x256xf32>
    %25 = arith.addf %22, %24 : vector<8x256xf32>
    %cst_16 = arith.constant 0.000000e+00 : f32
    %26 = vector.broadcast %cst_16 : f32 to vector<8x256xf32>
    %27 = arith.maximumf %25, %26 : vector<8x256xf32>
    %28 = arith.truncf %27 : vector<8x256xf32> to vector<8x256xbf16>
    %c0_17 = arith.constant 0 : index
    %c0_18 = arith.constant 0 : index
    %29 = vector.load %arg10[%c0_17, %c0_18] : memref<1x256xf32, #tpu.memory_space<vmem>>, vector<1x256xf32>
    %30 = vector.broadcast %29 : vector<1x256xf32> to vector<8x256xf32>
    %31 = arith.mulf %1, %30 : vector<8x256xf32>
    %c0_19 = arith.constant 0 : index
    %c0_20 = arith.constant 0 : index
    %32 = vector.load %arg11[%c0_19, %c0_20] : memref<1x256xf32, #tpu.memory_space<vmem>>, vector<1x256xf32>
    %33 = vector.broadcast %32 : vector<1x256xf32> to vector<8x256xf32>
    %34 = arith.addf %31, %33 : vector<8x256xf32>
    %cst_21 = arith.constant 0.000000e+00 : f32
    %35 = vector.broadcast %cst_21 : f32 to vector<8x256xf32>
    %36 = arith.maximumf %34, %35 : vector<8x256xf32>
    %37 = arith.truncf %36 : vector<8x256xf32> to vector<8x256xbf16>
    %c0_22 = arith.constant 0 : index
    %c0_23 = arith.constant 0 : index
    %38 = vector.load %arg12[%c0_22, %c0_23] : memref<256x256xbf16, #tpu.memory_space<vmem>>, vector<256x256xbf16>
    %cst_24 = arith.constant dense<0.000000e+00> : vector<8x256xf32>
    %39 = tpu.matmul %10, %38, %cst_24 {dimension_numbers = #tpu.dot_dimension_numbers<[1], [0], [0], [1], [0, 0, 1, 1], [], []>} : vector<8x256xbf16>, vector<256x256xbf16>, vector<8x256xf32> -> vector<8x256xf32>
    %c0_25 = arith.constant 0 : index
    %c0_26 = arith.constant 0 : index
    %40 = vector.load %arg13[%c0_25, %c0_26] : memref<256x256xbf16, #tpu.memory_space<vmem>>, vector<256x256xbf16>
    %cst_27 = arith.constant dense<0.000000e+00> : vector<8x256xf32>
    %41 = tpu.matmul %19, %40, %cst_27 {dimension_numbers = #tpu.dot_dimension_numbers<[1], [0], [0], [1], [0, 0, 1, 1], [], []>} : vector<8x256xbf16>, vector<256x256xbf16>, vector<8x256xf32> -> vector<8x256xf32>
    %42 = arith.addf %39, %41 : vector<8x256xf32>
    %c0_28 = arith.constant 0 : index
    %c0_29 = arith.constant 0 : index
    %43 = vector.load %arg14[%c0_28, %c0_29] : memref<1x256xf32, #tpu.memory_space<vmem>>, vector<1x256xf32>
    %44 = vector.broadcast %43 : vector<1x256xf32> to vector<8x256xf32>
    %45 = arith.addf %42, %44 : vector<8x256xf32>
    %c0_30 = arith.constant 0 : index
    %c0_31 = arith.constant 0 : index
    %46 = vector.load %arg15[%c0_30, %c0_31] : memref<256x512xbf16, #tpu.memory_space<vmem>>, vector<256x512xbf16>
    %cst_32 = arith.constant dense<0.000000e+00> : vector<8x512xf32>
    %47 = tpu.matmul %28, %46, %cst_32 {dimension_numbers = #tpu.dot_dimension_numbers<[1], [0], [0], [1], [0, 0, 1, 1], [], []>} : vector<8x256xbf16>, vector<256x512xbf16>, vector<8x512xf32> -> vector<8x512xf32>
    %c0_33 = arith.constant 0 : index
    %c0_34 = arith.constant 0 : index
    %48 = vector.load %arg16[%c0_33, %c0_34] : memref<256x512xbf16, #tpu.memory_space<vmem>>, vector<256x512xbf16>
    %cst_35 = arith.constant dense<0.000000e+00> : vector<8x512xf32>
    %49 = tpu.matmul %37, %48, %cst_35 {dimension_numbers = #tpu.dot_dimension_numbers<[1], [0], [0], [1], [0, 0, 1, 1], [], []>} : vector<8x256xbf16>, vector<256x512xbf16>, vector<8x512xf32> -> vector<8x512xf32>
    %50 = arith.addf %47, %49 : vector<8x512xf32>
    %c0_36 = arith.constant 0 : index
    %c0_37 = arith.constant 0 : index
    %51 = vector.load %arg17[%c0_36, %c0_37] : memref<1x512xf32, #tpu.memory_space<vmem>>, vector<1x512xf32>
    %52 = vector.broadcast %51 : vector<1x512xf32> to vector<8x512xf32>
    %53 = arith.addf %50, %52 : vector<8x512xf32>
    %cst_38 = arith.constant 0.000000e+00 : f32
    %54 = vector.broadcast %cst_38 : f32 to vector<8x512xf32>
    %55 = arith.maximumf %53, %54 : vector<8x512xf32>
    %56 = arith.truncf %55 : vector<8x512xf32> to vector<8x512xbf16>
    %c0_39 = arith.constant 0 : index
    %c0_40 = arith.constant 0 : index
    %57 = vector.load %arg18[%c0_39, %c0_40] : memref<512x256xbf16, #tpu.memory_space<vmem>>, vector<512x256xbf16>
    %cst_41 = arith.constant dense<0.000000e+00> : vector<8x256xf32>
    %58 = tpu.matmul %56, %57, %cst_41 {dimension_numbers = #tpu.dot_dimension_numbers<[1], [0], [0], [1], [0, 0, 1, 1], [], []>} : vector<8x512xbf16>, vector<512x256xbf16>, vector<8x256xf32> -> vector<8x256xf32>
    %c0_42 = arith.constant 0 : index
    %c0_43 = arith.constant 0 : index
    %59 = vector.load %arg19[%c0_42, %c0_43] : memref<1x256xf32, #tpu.memory_space<vmem>>, vector<1x256xf32>
    %60 = vector.broadcast %59 : vector<1x256xf32> to vector<8x256xf32>
    %61 = arith.addf %58, %60 : vector<8x256xf32>
    %cst_44 = arith.constant 0.000000e+00 : f32
    %62 = vector.broadcast %cst_44 : f32 to vector<8x256xf32>
    %63 = arith.subf %62, %45 : vector<8x256xf32>
    %64 = math.exp %63 : vector<8x256xf32>
    %cst_45 = arith.constant 1.000000e+00 : f32
    %65 = vector.broadcast %cst_45 : f32 to vector<8x256xf32>
    %66 = arith.addf %65, %64 : vector<8x256xf32>
    %67 = tpu.reciprocal %66 {approx = true} : vector<8x256xf32> -> vector<8x256xf32>
    %68 = arith.mulf %67, %0 : vector<8x256xf32>
    %c0_46 = arith.constant 0 : index
    %69 = memref.load %arg1[%c0_46] : memref<1xf32, #tpu.memory_space<smem>>
    %70 = vector.broadcast %69 : f32 to vector<8x256xf32>
    %71 = arith.mulf %68, %70 : vector<8x256xf32>
    %72 = arith.addf %71, %61 : vector<8x256xf32>
    %c0_47 = arith.constant 0 : index
    %c0_48 = arith.constant 0 : index
    %73 = vector.load %arg20[%c0_47, %c0_48] : memref<8x256xf32, #tpu.memory_space<vmem>>, vector<8x256xf32>
    tpu.vector_store %arg20[%c0_47, %c0_48], %72 {strides = array<i32>} : memref<8x256xf32, #tpu.memory_space<vmem>>, vector<8x256xf32>,
    return
  }
  func.func @transform_0(%arg0: i32) -> i32 {
    %c0_i32 = arith.constant 0 : i32
    %c0_i32_0 = arith.constant 0 : i32
    return %c0_i32 : i32
  }
  func.func @transform_1(%arg0: i32) -> (i32, i32) {
    %c0_i32 = arith.constant 0 : i32
    %c0_i32_0 = arith.constant 0 : i32
    return %arg0, %c0_i32 : i32, i32
  }
  func.func @transform_2(%arg0: i32) -> (i32, i32) {
    %c0_i32 = arith.constant 0 : i32
    %c0_i32_0 = arith.constant 0 : i32
    return %arg0, %c0_i32 : i32, i32
  }
  func.func @transform_3(%arg0: i32) -> (i32, i32) {
    %c0_i32 = arith.constant 0 : i32
    %c0_i32_0 = arith.constant 0 : i32
    %c0_i32_1 = arith.constant 0 : i32
    return %c0_i32, %c0_i32_0 : i32, i32
  }
  func.func @transform_4(%arg0: i32) -> (i32, i32) {
    %c0_i32 = arith.constant 0 : i32
    %c0_i32_0 = arith.constant 0 : i32
    %c0_i32_1 = arith.constant 0 : i32
    return %c0_i32, %c0_i32_0 : i32, i32
  }
  func.func @transform_5(%arg0: i32) -> (i32, i32) {
    %c0_i32 = arith.constant 0 : i32
    %c0_i32_0 = arith.constant 0 : i32
    %c0_i32_1 = arith.constant 0 : i32
    return %c0_i32, %c0_i32_0 : i32, i32
  }
  func.func @transform_6(%arg0: i32) -> (i32, i32) {
    %c0_i32 = arith.constant 0 : i32
    %c0_i32_0 = arith.constant 0 : i32
    %c0_i32_1 = arith.constant 0 : i32
    return %c0_i32, %c0_i32_0 : i32, i32
  }
  func.func @transform_7(%arg0: i32) -> (i32, i32) {
    %c0_i32 = arith.constant 0 : i32
    %c0_i32_0 = arith.constant 0 : i32
    %c0_i32_1 = arith.constant 0 : i32
    return %c0_i32, %c0_i32_0 : i32, i32
  }
  func.func @transform_8(%arg0: i32) -> (i32, i32) {
    %c0_i32 = arith.constant 0 : i32
    %c0_i32_0 = arith.constant 0 : i32
    %c0_i32_1 = arith.constant 0 : i32
    return %c0_i32, %c0_i32_0 : i32, i32
  }
  func.func @transform_9(%arg0: i32) -> (i32, i32) {
    %c0_i32 = arith.constant 0 : i32
    %c0_i32_0 = arith.constant 0 : i32
    %c0_i32_1 = arith.constant 0 : i32
    return %c0_i32, %c0_i32_0 : i32, i32
  }
  func.func @transform_10(%arg0: i32) -> (i32, i32) {
    %c0_i32 = arith.constant 0 : i32
    %c0_i32_0 = arith.constant 0 : i32
    %c0_i32_1 = arith.constant 0 : i32
    return %c0_i32, %c0_i32_0 : i32, i32
  }
  func.func @transform_11(%arg0: i32) -> (i32, i32) {
    %c0_i32 = arith.constant 0 : i32
    %c0_i32_0 = arith.constant 0 : i32
    %c0_i32_1 = arith.constant 0 : i32
    return %c0_i32, %c0_i32_0 : i32, i32
  }
  func.func @transform_12(%arg0: i32) -> (i32, i32) {
    %c0_i32 = arith.constant 0 : i32
    %c0_i32_0 = arith.constant 0 : i32
    %c0_i32_1 = arith.constant 0 : i32
    return %c0_i32, %c0_i32_0 : i32, i32
  }
  func.func @transform_13(%arg0: i32) -> (i32, i32) {
    %c0_i32 = arith.constant 0 : i32
    %c0_i32_0 = arith.constant 0 : i32
    %c0_i32_1 = arith.constant 0 : i32
    return %c0_i32, %c0_i32_0 : i32, i32
  }
  func.func @transform_14(%arg0: i32) -> (i32, i32) {
    %c0_i32 = arith.constant 0 : i32
    %c0_i32_0 = arith.constant 0 : i32
    %c0_i32_1 = arith.constant 0 : i32
    return %c0_i32, %c0_i32_0 : i32, i32
  }
  func.func @transform_15(%arg0: i32) -> (i32, i32) {
    %c0_i32 = arith.constant 0 : i32
    %c0_i32_0 = arith.constant 0 : i32
    %c0_i32_1 = arith.constant 0 : i32
    return %c0_i32, %c0_i32_0 : i32, i32
  }
  func.func @transform_16(%arg0: i32) -> (i32, i32) {
    %c0_i32 = arith.constant 0 : i32
    %c0_i32_0 = arith.constant 0 : i32
    %c0_i32_1 = arith.constant 0 : i32
    return %c0_i32, %c0_i32_0 : i32, i32
  }
  func.func @transform_17(%arg0: i32) -> (i32, i32) {
    %c0_i32 = arith.constant 0 : i32
    %c0_i32_0 = arith.constant 0 : i32
    %c0_i32_1 = arith.constant 0 : i32
    return %c0_i32, %c0_i32_0 : i32, i32
  }
  func.func @transform_18(%arg0: i32) -> (i32, i32) {
    %c0_i32 = arith.constant 0 : i32
    %c0_i32_0 = arith.constant 0 : i32
    %c0_i32_1 = arith.constant 0 : i32
    return %c0_i32, %c0_i32_0 : i32, i32
  }
  func.func @transform_19(%arg0: i32) -> (i32, i32) {
    %c0_i32 = arith.constant 0 : i32
    %c0_i32_0 = arith.constant 0 : i32
    return %arg0, %c0_i32 : i32, i32
  }
}

</mosaic_0001>

<llo_original>
// kernel: tpu_custom_call.1
$region0: #{tpu_custom_call.1}
  #allocation0 [shape = 'u32[]', space=smem, size = 0x4, offset = 0x4, fixed_abs, tag = 'smem constant byte address 0x4 - core index']
  #allocation1 [shape = 'u32[72,128]{1,0:T(1,128)}', space=vmem, size = 0x9000, scoped, tag = 'internal scratch']
  #allocation2 [shape = 'f32[1]{0:T(128)S(6)}', space=smem, size = 0x200, scoped, tag = 'scoped memory for tpu_custom_call.1']
  %s0 = inlined_call_operand.<no memory space> [shape: f32[1], index: 0, kind: input, shape index: {}]
  %s1 = inlined_call_operand.hbm [shape: f32[16,256], index: 1, kind: input, shape index: {}]
  %s2 = inlined_call_operand.hbm [shape: f32[16,256], index: 2, kind: input, shape index: {}]
  %s3 = inlined_call_operand.vmem [shape: f32[1,256], index: 3, kind: input, shape index: {}]
  %s4 = inlined_call_operand.hbm [shape: f32[1,256], index: 4, kind: input, shape index: {}]
  %s5 = inlined_call_operand.hbm [shape: f32[1,256], index: 5, kind: input, shape index: {}]
  %s6 = inlined_call_operand.hbm [shape: f32[1,256], index: 6, kind: input, shape index: {}]
  %s7 = inlined_call_operand.hbm [shape: f32[1,256], index: 7, kind: input, shape index: {}]
  %s8 = inlined_call_operand.vmem [shape: f32[1,256], index: 8, kind: input, shape index: {}]
  %s9 = inlined_call_operand.hbm [shape: f32[1,256], index: 9, kind: input, shape index: {}]
  %s10 = inlined_call_operand.vmem [shape: f32[1,256], index: 10, kind: input, shape index: {}]
  %s11 = inlined_call_operand.hbm [shape: bf16[256,256], index: 11, kind: input, shape index: {}]
  %s12 = inlined_call_operand.hbm [shape: bf16[256,256], index: 12, kind: input, shape index: {}]
  %s13 = inlined_call_operand.vmem [shape: f32[1,256], index: 13, kind: input, shape index: {}]
  %s14 = inlined_call_operand.hbm [shape: bf16[256,512], index: 14, kind: input, shape index: {}]
  %s15 = inlined_call_operand.hbm [shape: bf16[256,512], index: 15, kind: input, shape index: {}]
  %s16 = inlined_call_operand.vmem [shape: f32[1,512], index: 16, kind: input, shape index: {}]
  %s17 = inlined_call_operand.hbm [shape: bf16[512,256], index: 17, kind: input, shape index: {}]
  %s18 = inlined_call_operand.vmem [shape: f32[1,256], index: 18, kind: input, shape index: {}]
  %s19 = inlined_call_operand.hbm [shape: f32[16,256], index: 19, kind: output, shape index: {}]
  %s20 = sld [smem:[#allocation0]]
  $region157: #{tpu_custom_call.1} parent=0
    _
  %s22 = ssub.s32 1, %s20
  %s23 = scalar_select 0, %s22, %s20
  %24 = sst [smem:[#allocation2]] %s0
  $region1: #{tpu_custom_call.1} parent=0
    #allocation3 [shape = 'u8[16384]{0}', space=vmem, size = 0x4000, scoped, tag = 'input window, operand 1']
    #allocation4 [shape = 's32[2]{0}', space=sflag, size = 0x8, scoped, tag = 'scoped memory for tpu_custom_call.1']
    #allocation5 [shape = 's32[2]{0}', space=sflag, size = 0x8, scoped, tag = 'scoped memory for tpu_custom_call.1']
    #allocation6 [shape = 'u8[16384]{0}', space=vmem, size = 0x4000, scoped, tag = 'input window, operand 2']
    #allocation7 [shape = 's32[2]{0}', space=sflag, size = 0x8, scoped, tag = 'scoped memory for tpu_custom_call.1']
    #allocation8 [shape = 'u8[1024]{0}', space=vmem, size = 0x400, scoped, tag = 'input window, operand 4, single buffered']
    #allocation9 [shape = 'u8[1024]{0}', space=vmem, size = 0x400, scoped, tag = 'input window, operand 5, single buffered']
    #allocation10 [shape = 's32[1]{0}', space=sflag, size = 0x4, scoped, tag = 'scoped memory for tpu_custom_call.1']
    #allocation11 [shape = 'u8[1024]{0}', space=vmem, size = 0x400, scoped, tag = 'input window, operand 6, single buffered']
    #allocation12 [shape = 'u8[1024]{0}', space=vmem, size = 0x400, scoped, tag = 'input window, operand 7, single buffered']
    #allocation13 [shape = 's32[1]{0}', space=sflag, size = 0x4, scoped, tag = 'scoped memory for tpu_custom_call.1']
    #allocation14 [shape = 'u8[1024]{0}', space=vmem, size = 0x400, scoped, tag = 'input window, operand 9, single buffered']
    #allocation15 [shape = 'u8[131072]{0}', space=vmem, size = 0x20000, scoped, tag = 'input window, operand 11, single buffered']
    #allocation16 [shape = 's32[1]{0}', space=sflag, size = 0x4, scoped, tag = 'scoped memory for tpu_custom_call.1']
    #allocation17 [shape = 'u8[131072]{0}', space=vmem, size = 0x20000, scoped, tag = 'input window, operand 12, single buffered']
    #allocation18 [shape = 'u8[262144]{0}', space=vmem, size = 0x40000, scoped, tag = 'input window, operand 14, single buffered']
    #allocation19 [shape = 's32[1]{0}', space=sflag, size = 0x4, scoped, tag = 'scoped memory for tpu_custom_call.1']
    #allocation20 [shape = 'u8[262144]{0}', space=vmem, size = 0x40000, scoped, tag = 'input window, operand 15, single buffered']
    #allocation21 [shape = 'u8[262144]{0}', space=vmem, size = 0x40000, scoped, tag = 'input window, operand 17, single buffered']
    #allocation22 [shape = 's32[1]{0}', space=sflag, size = 0x4, scoped, tag = 'scoped memory for tpu_custom_call.1']
    #allocation23 [shape = 'u8[16384]{0}', space=vmem, size = 0x4000, scoped, tag = 'output window, operand 0']
    %25 = vsyncpa [#allocation4], 0
    %s26 = scalar_lea.sflag [#allocation4], 1
    %27 = vsyncpa %s26, 0
    %28 = vsyncpa [#allocation7], 0
    %s29 = scalar_lea.sflag [#allocation7], 1
    %30 = vsyncpa %s29, 0
    %31 = vsyncpa [#allocation10], 0
    %32 = vsyncpa [#allocation13], 0
    %33 = vsyncpa [#allocation16], 0
    %34 = vsyncpa [#allocation19], 0
    %35 = vsyncpa [#allocation22], 0
    %36 = vsyncpa [#allocation5], 0
    %s37 = scalar_lea.sflag [#allocation5], 1
    %38 = vsyncpa %s37, 0
    loop: start=0, step=1, limit=4
    $region2: #{tpu_custom_call.1} parent=1 // loop_pre_header
      _
    $region3: #{tpu_custom_call.1} parent=1 // loop_header
      %s40 = sphi 0, %s44
      %p41 = scmp.ge.s32.totalorder %s40, 4
      %s48 = sphi 0, %s48
      %s50 = sphi 0, %s48
      %s51 = sphi 0, %s50
      %s65 = sphi 0, %s51
      %s71 = sphi 0, %s73
      %s74 = sphi 0, %s71
      %s75 = sphi 0, %s74
      %s91 = sphi 0, %s75
      %s97 = sphi 0, %s99
      %s100 = sphi 0, %s97
      %s101 = sphi 0, %s100
      %s117 = sphi 0, %s101
      %s121 = sphi 0, %s121
      %s123 = sphi 0, %s121
      %s124 = sphi 0, %s123
      %s138 = sphi 0, %s124
      %s142 = sphi 0, %s142
      %s144 = sphi 0, %s142
      %s145 = sphi 0, %s144
      %s159 = sphi 0, %s145
      %s163 = sphi 0, %s163
      %s165 = sphi 0, %s163
      %s166 = sphi 0, %s165
      %s180 = sphi 0, %s166
      %s184 = sphi 0, %s184
      %s186 = sphi 0, %s184
      %s187 = sphi 0, %s186
      %s201 = sphi 0, %s187
      %s205 = sphi 0, %s205
      %s207 = sphi 0, %s205
      %s208 = sphi 0, %s207
      %s222 = sphi 0, %s208
      %s226 = sphi 0, %s226
      %s228 = sphi 0, %s226
      %s229 = sphi 0, %s228
      %s243 = sphi 0, %s229
      %s247 = sphi 0, %s247
      %s249 = sphi 0, %s247
      %s250 = sphi 0, %s249
      %s264 = sphi 0, %s250
      %s268 = sphi 0, %s268
      %s270 = sphi 0, %s268
      %s271 = sphi 0, %s270
      %s285 = sphi 0, %s271
      %s289 = sphi 0, %s289
      %s291 = sphi 0, %s289
      %s292 = sphi 0, %s291
      %s306 = sphi 0, %s292
      %s310 = sphi 0, %s310
      %s312 = sphi 0, %s310
      %s313 = sphi 0, %s312
      %s327 = sphi 0, %s313
      %s331 = sphi 0, %s331
      %s333 = sphi 0, %s331
      %s334 = sphi 0, %s333
      %s348 = sphi 0, %s334
      %s352 = sphi 0, %s352
      %s354 = sphi 0, %s352
      %s355 = sphi 0, %s354
      %s369 = sphi 0, %s355
      %s373 = sphi 0, %s373
      %s375 = sphi 0, %s373
      %s376 = sphi 0, %s375
      %s390 = sphi 0, %s376
      %s394 = sphi 0, %s394
      %s396 = sphi 0, %s394
      %s397 = sphi 0, %s396
      %s411 = sphi 0, %s397
      %s415 = sphi 0, %s415
      %s417 = sphi 0, %s415
      %s418 = sphi 0, %s417
      %s432 = sphi 0, %s418
      %s436 = sphi 0, %s436
      %s438 = sphi 0, %s436
      %s439 = sphi 0, %s438
      %s453 = sphi 0, %s439
      %s459 = sphi 0, %s461
      %s462 = sphi 0, %s459
      %s463 = sphi 0, %s462
      %s479 = sphi 0, %s463
    $region4: #{tpu_custom_call.1} parent=1 // loop_header_branch
      %43 = sbr.rel (%p41) target = $region8
    $region5: #{tpu_custom_call.1} parent=1 // loop_body
      %s45 = ssub.s32 %s40, 1
      %s46 = ssub.s32 %s40, 2
      %s47 = sadd.s32 %s40, 1
      %s49 = sadd.s32 %s48, 1
      %p52 = scmp.eq.s32.totalorder %s40, 1
      %p53 = scmp.ne.s32.totalorder %s48, %s50
      %p54 = scmp.eq.s32.totalorder %s40, 0
      %p55 = por %p53, %p54
      %p56 = scmp.ne.s32.totalorder %s48, %s50
      %p57 = scmp.eq.s32.totalorder %s45, 1
      %p58 = por %p56, %p57
      %p59 = scmp.ne.s32.totalorder %s50, %s51
      %p60 = scmp.eq.s32.totalorder %s45, 0
      %p61 = por %p59, %p60
      %p62 = scmp.ne.s32.totalorder %s50, %s51
      %p63 = scmp.eq.s32.totalorder %s46, 1
      %p64 = por %p62, %p63
      %p66 = scmp.ne.s32.totalorder %s51, %s65
      %p67 = scmp.eq.s32.totalorder %s46, 0
      %p68 = por %p66, %p67
      %s69 = ssub.s32 %s40, %s47
      %p70 = scmp.eq.s32.totalorder %s69, 0
      %s72 = sadd.s32 %s71, 1
      %s73 = scalar_select %p70, %s71, %s72
      %p76 = pneg %p70
      %p77 = scmp.eq.s32.totalorder %s40, 1
      %p78 = por %p76, %p77
      %p79 = scmp.ne.s32.totalorder %s71, %s74
      %p80 = scmp.eq.s32.totalorder %s40, 0
      %p81 = por %p79, %p80
      %p82 = scmp.ne.s32.totalorder %s71, %s74
      %p83 = scmp.eq.s32.totalorder %s45, 1
      %p84 = por %p82, %p83
      %p85 = scmp.ne.s32.totalorder %s74, %s75
      %p86 = scmp.eq.s32.totalorder %s45, 0
      %p87 = por %p85, %p86
      %p88 = scmp.ne.s32.totalorder %s74, %s75
      %p89 = scmp.eq.s32.totalorder %s46, 1
      %p90 = por %p88, %p89
      %p92 = scmp.ne.s32.totalorder %s75, %s91
      %p93 = scmp.eq.s32.totalorder %s46, 0
      %p94 = por %p92, %p93
      %s95 = ssub.s32 %s40, %s47
      %p96 = scmp.eq.s32.totalorder %s95, 0
      %s98 = sadd.s32 %s97, 1
      %s99 = scalar_select %p96, %s97, %s98
      %p102 = pneg %p96
      %p103 = scmp.eq.s32.totalorder %s40, 1
      %p104 = por %p102, %p103
      %p105 = scmp.ne.s32.totalorder %s97, %s100
      %p106 = scmp.eq.s32.totalorder %s40, 0
      %p107 = por %p105, %p106
      %p108 = scmp.ne.s32.totalorder %s97, %s100
      %p109 = scmp.eq.s32.totalorder %s45, 1
      %p110 = por %p108, %p109
      %p111 = scmp.ne.s32.totalorder %s100, %s101
      %p112 = scmp.eq.s32.totalorder %s45, 0
      %p113 = por %p111, %p112
      %p114 = scmp.ne.s32.totalorder %s100, %s101
      %p115 = scmp.eq.s32.totalorder %s46, 1
      %p116 = por %p114, %p115
      %p118 = scmp.ne.s32.totalorder %s101, %s117
      %p119 = scmp.eq.s32.totalorder %s46, 0
      %p120 = por %p118, %p119
      %s122 = sadd.s32 %s121, 1
      %p125 = scmp.eq.s32.totalorder %s40, 1
      %p126 = scmp.ne.s32.totalorder %s121, %s123
      %p127 = scmp.eq.s32.totalorder %s40, 0
      %p128 = por %p126, %p127
      %p129 = scmp.ne.s32.totalorder %s121, %s123
      %p130 = scmp.eq.s32.totalorder %s45, 1
      %p131 = por %p129, %p130
      %p132 = scmp.ne.s32.totalorder %s123, %s124
      %p133 = scmp.eq.s32.totalorder %s45, 0
      %p134 = por %p132, %p133
      %p135 = scmp.ne.s32.totalorder %s123, %s124
      %p136 = scmp.eq.s32.totalorder %s46, 1
      %p137 = por %p135, %p136
      %p139 = scmp.ne.s32.totalorder %s124, %s138
      %p140 = scmp.eq.s32.totalorder %s46, 0
      %p141 = por %p139, %p140
      %s143 = sadd.s32 %s142, 1
      %p146 = scmp.eq.s32.totalorder %s40, 1
      %p147 = scmp.ne.s32.totalorder %s142, %s144
      %p148 = scmp.eq.s32.totalorder %s40, 0
      %p149 = por %p147, %p148
      %p150 = scmp.ne.s32.totalorder %s142, %s144
      %p151 = scmp.eq.s32.totalorder %s45, 1
      %p152 = por %p150, %p151
      %p153 = scmp.ne.s32.totalorder %s144, %s145
      %p154 = scmp.eq.s32.totalorder %s45, 0
      %p155 = por %p153, %p154
      %p156 = scmp.ne.s32.totalorder %s144, %s145
      %p157 = scmp.eq.s32.totalorder %s46, 1
      %p158 = por %p156, %p157
      %p160 = scmp.ne.s32.totalorder %s145, %s159
      %p161 = scmp.eq.s32.totalorder %s46, 0
      %p162 = por %p160, %p161
      %s164 = sadd.s32 %s163, 1
      %p167 = scmp.eq.s32.totalorder %s40, 1
      %p168 = scmp.ne.s32.totalorder %s163, %s165
      %p169 = scmp.eq.s32.totalorder %s40, 0
      %p170 = por %p168, %p169
      %p171 = scmp.ne.s32.totalorder %s163, %s165
      %p172 = scmp.eq.s32.totalorder %s45, 1
      %p173 = por %p171, %p172
      %p174 = scmp.ne.s32.totalorder %s165, %s166
      %p175 = scmp.eq.s32.totalorder %s45, 0
      %p176 = por %p174, %p175
      %p177 = scmp.ne.s32.totalorder %s165, %s166
      %p178 = scmp.eq.s32.totalorder %s46, 1
      %p179 = por %p177, %p178
      %p181 = scmp.ne.s32.totalorder %s166, %s180
      %p182 = scmp.eq.s32.totalorder %s46, 0
      %p183 = por %p181, %p182
      %s185 = sadd.s32 %s184, 1
      %p188 = scmp.eq.s32.totalorder %s40, 1
      %p189 = scmp.ne.s32.totalorder %s184, %s186
      %p190 = scmp.eq.s32.totalorder %s40, 0
      %p191 = por %p189, %p190
      %p192 = scmp.ne.s32.totalorder %s184, %s186
      %p193 = scmp.eq.s32.totalorder %s45, 1
      %p194 = por %p192, %p193
      %p195 = scmp.ne.s32.totalorder %s186, %s187
      %p196 = scmp.eq.s32.totalorder %s45, 0
      %p197 = por %p195, %p196
      %p198 = scmp.ne.s32.totalorder %s186, %s187
      %p199 = scmp.eq.s32.totalorder %s46, 1
      %p200 = por %p198, %p199
      %p202 = scmp.ne.s32.totalorder %s187, %s201
      %p203 = scmp.eq.s32.totalorder %s46, 0
      %p204 = por %p202, %p203
      %s206 = sadd.s32 %s205, 1
      %p209 = scmp.eq.s32.totalorder %s40, 1
      %p210 = scmp.ne.s32.totalorder %s205, %s207
      %p211 = scmp.eq.s32.totalorder %s40, 0
      %p212 = por %p210, %p211
      %p213 = scmp.ne.s32.totalorder %s205, %s207
      %p214 = scmp.eq.s32.totalorder %s45, 1
      %p215 = por %p213, %p214
      %p216 = scmp.ne.s32.totalorder %s207, %s208
      %p217 = scmp.eq.s32.totalorder %s45, 0
      %p218 = por %p216, %p217
      %p219 = scmp.ne.s32.totalorder %s207, %s208
      %p220 = scmp.eq.s32.totalorder %s46, 1
      %p221 = por %p219, %p220
      %p223 = scmp.ne.s32.totalorder %s208, %s222
      %p224 = scmp.eq.s32.totalorder %s46, 0
      %p225 = por %p223, %p224
      %s227 = sadd.s32 %s226, 1
      %p230 = scmp.eq.s32.totalorder %s40, 1
      %p231 = scmp.ne.s32.totalorder %s226, %s228
      %p232 = scmp.eq.s32.totalorder %s40, 0
      %p233 = por %p231, %p232
      %p234 = scmp.ne.s32.totalorder %s226, %s228
      %p235 = scmp.eq.s32.totalorder %s45, 1
      %p236 = por %p234, %p235
      %p237 = scmp.ne.s32.totalorder %s228, %s229
      %p238 = scmp.eq.s32.totalorder %s45, 0
      %p239 = por %p237, %p238
      %p240 = scmp.ne.s32.totalorder %s228, %s229
      %p241 = scmp.eq.s32.totalorder %s46, 1
      %p242 = por %p240, %p241
      %p244 = scmp.ne.s32.totalorder %s229, %s243
      %p245 = scmp.eq.s32.totalorder %s46, 0
      %p246 = por %p244, %p245
      %s248 = sadd.s32 %s247, 1
      %p251 = scmp.eq.s32.totalorder %s40, 1
      %p252 = scmp.ne.s32.totalorder %s247, %s249
      %p253 = scmp.eq.s32.totalorder %s40, 0
      %p254 = por %p252, %p253
      %p255 = scmp.ne.s32.totalorder %s247, %s249
      %p256 = scmp.eq.s32.totalorder %s45, 1
      %p257 = por %p255, %p256
      %p258 = scmp.ne.s32.totalorder %s249, %s250
      %p259 = scmp.eq.s32.totalorder %s45, 0
      %p260 = por %p258, %p259
      %p261 = scmp.ne.s32.totalorder %s249, %s250
      %p262 = scmp.eq.s32.totalorder %s46, 1
      %p263 = por %p261, %p262
      %p265 = scmp.ne.s32.totalorder %s250, %s264
      %p266 = scmp.eq.s32.totalorder %s46, 0
      %p267 = por %p265, %p266
      %s269 = sadd.s32 %s268, 1
      %p272 = scmp.eq.s32.totalorder %s40, 1
      %p273 = scmp.ne.s32.totalorder %s268, %s270
      %p274 = scmp.eq.s32.totalorder %s40, 0
      %p275 = por %p273, %p274
      %p276 = scmp.ne.s32.totalorder %s268, %s270
      %p277 = scmp.eq.s32.totalorder %s45, 1
      %p278 = por %p276, %p277
      %p279 = scmp.ne.s32.totalorder %s270, %s271
      %p280 = scmp.eq.s32.totalorder %s45, 0
      %p281 = por %p279, %p280
      %p282 = scmp.ne.s32.totalorder %s270, %s271
      %p283 = scmp.eq.s32.totalorder %s46, 1
      %p284 = por %p282, %p283
      %p286 = scmp.ne.s32.totalorder %s271, %s285
      %p287 = scmp.eq.s32.totalorder %s46, 0
      %p288 = por %p286, %p287
      %s290 = sadd.s32 %s289, 1
      %p293 = scmp.eq.s32.totalorder %s40, 1
      %p294 = scmp.ne.s32.totalorder %s289, %s291
      %p295 = scmp.eq.s32.totalorder %s40, 0
      %p296 = por %p294, %p295
      %p297 = scmp.ne.s32.totalorder %s289, %s291
      %p298 = scmp.eq.s32.totalorder %s45, 1
      %p299 = por %p297, %p298
      %p300 = scmp.ne.s32.totalorder %s291, %s292
      %p301 = scmp.eq.s32.totalorder %s45, 0
      %p302 = por %p300, %p301
      %p303 = scmp.ne.s32.totalorder %s291, %s292
      %p304 = scmp.eq.s32.totalorder %s46, 1
      %p305 = por %p303, %p304
      %p307 = scmp.ne.s32.totalorder %s292, %s306
      %p308 = scmp.eq.s32.totalorder %s46, 0
      %p309 = por %p307, %p308
      %s311 = sadd.s32 %s310, 1
      %p314 = scmp.eq.s32.totalorder %s40, 1
      %p315 = scmp.ne.s32.totalorder %s310, %s312
      %p316 = scmp.eq.s32.totalorder %s40, 0
      %p317 = por %p315, %p316
      %p318 = scmp.ne.s32.totalorder %s310, %s312
      %p319 = scmp.eq.s32.totalorder %s45, 1
      %p320 = por %p318, %p319
      %p321 = scmp.ne.s32.totalorder %s312, %s313
      %p322 = scmp.eq.s32.totalorder %s45, 0
      %p323 = por %p321, %p322
      %p324 = scmp.ne.s32.totalorder %s312, %s313
      %p325 = scmp.eq.s32.totalorder %s46, 1
      %p326 = por %p324, %p325
      %p328 = scmp.ne.s32.totalorder %s313, %s327
      %p329 = scmp.eq.s32.totalorder %s46, 0
      %p330 = por %p328, %p329
      %s332 = sadd.s32 %s331, 1
      %p335 = scmp.eq.s32.totalorder %s40, 1
      %p336 = scmp.ne.s32.totalorder %s331, %s333
      %p337 = scmp.eq.s32.totalorder %s40, 0
      %p338 = por %p336, %p337
      %p339 = scmp.ne.s32.totalorder %s331, %s333
      %p340 = scmp.eq.s32.totalorder %s45, 1
      %p341 = por %p339, %p340
      %p342 = scmp.ne.s32.totalorder %s333, %s334
      %p343 = scmp.eq.s32.totalorder %s45, 0
      %p344 = por %p342, %p343
      %p345 = scmp.ne.s32.totalorder %s333, %s334
      %p346 = scmp.eq.s32.totalorder %s46, 1
      %p347 = por %p345, %p346
      %p349 = scmp.ne.s32.totalorder %s334, %s348
      %p350 = scmp.eq.s32.totalorder %s46, 0
      %p351 = por %p349, %p350
      %s353 = sadd.s32 %s352, 1
      %p356 = scmp.eq.s32.totalorder %s40, 1
      %p357 = scmp.ne.s32.totalorder %s352, %s354
      %p358 = scmp.eq.s32.totalorder %s40, 0
      %p359 = por %p357, %p358
      %p360 = scmp.ne.s32.totalorder %s352, %s354
      %p361 = scmp.eq.s32.totalorder %s45, 1
      %p362 = por %p360, %p361
      %p363 = scmp.ne.s32.totalorder %s354, %s355
      %p364 = scmp.eq.s32.totalorder %s45, 0
      %p365 = por %p363, %p364
      %p366 = scmp.ne.s32.totalorder %s354, %s355
      %p367 = scmp.eq.s32.totalorder %s46, 1
      %p368 = por %p366, %p367
      %p370 = scmp.ne.s32.totalorder %s355, %s369
      %p371 = scmp.eq.s32.totalorder %s46, 0
      %p372 = por %p370, %p371
      %s374 = sadd.s32 %s373, 1
      %p377 = scmp.eq.s32.totalorder %s40, 1
      %p378 = scmp.ne.s32.totalorder %s373, %s375
      %p379 = scmp.eq.s32.totalorder %s40, 0
      %p380 = por %p378, %p379
      %p381 = scmp.ne.s32.totalorder %s373, %s375
      %p382 = scmp.eq.s32.totalorder %s45, 1
      %p383 = por %p381, %p382
      %p384 = scmp.ne.s32.totalorder %s375, %s376
      %p385 = scmp.eq.s32.totalorder %s45, 0
      %p386 = por %p384, %p385
      %p387 = scmp.ne.s32.totalorder %s375, %s376
      %p388 = scmp.eq.s32.totalorder %s46, 1
      %p389 = por %p387, %p388
      %p391 = scmp.ne.s32.totalorder %s376, %s390
      %p392 = scmp.eq.s32.totalorder %s46, 0
      %p393 = por %p391, %p392
      %s395 = sadd.s32 %s394, 1
      %p398 = scmp.eq.s32.totalorder %s40, 1
      %p399 = scmp.ne.s32.totalorder %s394, %s396
      %p400 = scmp.eq.s32.totalorder %s40, 0
      %p401 = por %p399, %p400
      %p402 = scmp.ne.s32.totalorder %s394, %s396
      %p403 = scmp.eq.s32.totalorder %s45, 1
      %p404 = por %p402, %p403
      %p405 = scmp.ne.s32.totalorder %s396, %s397
      %p406 = scmp.eq.s32.totalorder %s45, 0
      %p407 = por %p405, %p406
      %p408 = scmp.ne.s32.totalorder %s396, %s397
      %p409 = scmp.eq.s32.totalorder %s46, 1
      %p410 = por %p408, %p409
      %p412 = scmp.ne.s32.totalorder %s397, %s411
      %p413 = scmp.eq.s32.totalorder %s46, 0
      %p414 = por %p412, %p413
      %s416 = sadd.s32 %s415, 1
      %p419 = scmp.eq.s32.totalorder %s40, 1
      %p420 = scmp.ne.s32.totalorder %s415, %s417
      %p421 = scmp.eq.s32.totalorder %s40, 0
      %p422 = por %p420, %p421
      %p423 = scmp.ne.s32.totalorder %s415, %s417
      %p424 = scmp.eq.s32.totalorder %s45, 1
      %p425 = por %p423, %p424
      %p426 = scmp.ne.s32.totalorder %s417, %s418
      %p427 = scmp.eq.s32.totalorder %s45, 0
      %p428 = por %p426, %p427
      %p429 = scmp.ne.s32.totalorder %s417, %s418
      %p430 = scmp.eq.s32.totalorder %s46, 1
      %p431 = por %p429, %p430
      %p433 = scmp.ne.s32.totalorder %s418, %s432
      %p434 = scmp.eq.s32.totalorder %s46, 0
      %p435 = por %p433, %p434
      %s437 = sadd.s32 %s436, 1
      %p440 = scmp.eq.s32.totalorder %s40, 1
      %p441 = scmp.ne.s32.totalorder %s436, %s438
      %p442 = scmp.eq.s32.totalorder %s40, 0
      %p443 = por %p441, %p442
      %p444 = scmp.ne.s32.totalorder %s436, %s438
      %p445 = scmp.eq.s32.totalorder %s45, 1
      %p446 = por %p444, %p445
      %p447 = scmp.ne.s32.totalorder %s438, %s439
      %p448 = scmp.eq.s32.totalorder %s45, 0
      %p449 = por %p447, %p448
      %p450 = scmp.ne.s32.totalorder %s438, %s439
      %p451 = scmp.eq.s32.totalorder %s46, 1
      %p452 = por %p450, %p451
      %p454 = scmp.ne.s32.totalorder %s439, %s453
      %p455 = scmp.eq.s32.totalorder %s46, 0
      %p456 = por %p454, %p455
      %s457 = ssub.s32 %s40, %s47
      %p458 = scmp.eq.s32.totalorder %s457, 0
      %s460 = sadd.s32 %s459, 1
      %s461 = scalar_select %p458, %s459, %s460
      %p464 = pneg %p458
      %p465 = scmp.eq.s32.totalorder %s40, 1
      %p466 = por %p464, %p465
      %p467 = scmp.ne.s32.totalorder %s459, %s462
      %p468 = scmp.eq.s32.totalorder %s40, 0
      %p469 = por %p467, %p468
      %p470 = scmp.ne.s32.totalorder %s459, %s462
      %p471 = scmp.eq.s32.totalorder %s45, 1
      %p472 = por %p470, %p471
      %p473 = scmp.ne.s32.totalorder %s462, %s463
      %p474 = scmp.eq.s32.totalorder %s45, 0
      %p475 = por %p473, %p474
      %p476 = scmp.ne.s32.totalorder %s462, %s463
      %p477 = scmp.eq.s32.totalorder %s46, 1
      %p478 = por %p476, %p477
      %p480 = scmp.ne.s32.totalorder %s463, %s479
      %p481 = scmp.eq.s32.totalorder %s46, 0
      %p482 = por %p480, %p481
      %p483 = scmp.le.s32.totalorder 1, %s40
      %p484 = scmp.lt.s32.totalorder %s40, 3
      %p485 = pnand %p483, %p484
      %p486 = pneg %p485
      // Predicated region
      $region9: #{tpu_custom_call.1} parent=5 // pred_check
        _
      $region10: #{tpu_custom_call.1} parent=5 // pred_check_branch
        %488 = sbr.rel (%p485) target = $region12
      $region11: #{tpu_custom_call.1} parent=5 // pred_region
        %s489 = ssub.s32 %s40, 1
        // Predicated region
        $region13: #{tpu_custom_call.1} parent=11 // pred_check
          %p490 = pneg %p61
        $region14: #{tpu_custom_call.1} parent=11 // pred_check_branch
          %492 = sbr.rel (%p490) target = $region16
        $region15: #{tpu_custom_call.1} parent=11 // pred_region
          _
        $region16: #{tpu_custom_call.1} parent=11 // pred_fallthru
          _
        // Predicated region
        $region17: #{tpu_custom_call.1} parent=11 // pred_check
          %p493 = pneg %p134
        $region18: #{tpu_custom_call.1} parent=11 // pred_check_branch
          %495 = sbr.rel (%p493) target = $region20
        $region19: #{tpu_custom_call.1} parent=11 // pred_region
          _
        $region20: #{tpu_custom_call.1} parent=11 // pred_fallthru
          _
        // Predicated region
        $region21: #{tpu_custom_call.1} parent=11 // pred_check
          %p496 = pneg %p155
        $region22: #{tpu_custom_call.1} parent=11 // pred_check_branch
          %498 = sbr.rel (%p496) target = $region24
        $region23: #{tpu_custom_call.1} parent=11 // pred_region
          %500 = vsyncadd [#allocation7], 0
          %s502 = sshll.u32 %s4, 4
          %s503 = int_to_ptr.hbm [resolvable:$true] %s502
          %s504 = sshll.u32 [#allocation8], 4
          %s505 = int_to_ptr.vmem [resolvable:$true] %s504
          %507 = dma.hbm_to_vmem [thread:$0]  %s503, 32, %s505, [#allocation7]
        $region24: #{tpu_custom_call.1} parent=11 // pred_fallthru
          _
        // Predicated region
        $region25: #{tpu_custom_call.1} parent=11 // pred_check
          %p508 = pneg %p176
        $region26: #{tpu_custom_call.1} parent=11 // pred_check_branch
          %510 = sbr.rel (%p508) target = $region28
        $region27: #{tpu_custom_call.1} parent=11 // pred_region
          %512 = vsyncadd [#allocation10], 0
          %s514 = sshll.u32 %s5, 4
          %s515 = int_to_ptr.hbm [resolvable:$true] %s514
          %s516 = sshll.u32 [#allocation9], 4
          %s517 = int_to_ptr.vmem [resolvable:$true] %s516
          %519 = dma.hbm_to_vmem [thread:$0]  %s515, 32, %s517, [#allocation10]
        $region28: #{tpu_custom_call.1} parent=11 // pred_fallthru
          _
        // Predicated region
        $region29: #{tpu_custom_call.1} parent=11 // pred_check
          %p520 = pneg %p197
        $region30: #{tpu_custom_call.1} parent=11 // pred_check_branch
          %522 = sbr.rel (%p520) target = $region32
        $region31: #{tpu_custom_call.1} parent=11 // pred_region
          %524 = vsyncadd [#allocation10], 0
          %s526 = sshll.u32 %s6, 4
          %s527 = int_to_ptr.hbm [resolvable:$true] %s526
          %s528 = sshll.u32 [#allocation11], 4
          %s529 = int_to_ptr.vmem [resolvable:$true] %s528
          %531 = dma.hbm_to_vmem [thread:$0]  %s527, 32, %s529, [#allocation10]
        $region32: #{tpu_custom_call.1} parent=11 // pred_fallthru
          _
        // Predicated region
        $region33: #{tpu_custom_call.1} parent=11 // pred_check
          %p532 = pneg %p218
        $region34: #{tpu_custom_call.1} parent=11 // pred_check_branch
          %534 = sbr.rel (%p532) target = $region36
        $region35: #{tpu_custom_call.1} parent=11 // pred_region
          %536 = vsyncadd [#allocation13], 0
          %s538 = sshll.u32 %s7, 4
          %s539 = int_to_ptr.hbm [resolvable:$true] %s538
          %s540 = sshll.u32 [#allocation12], 4
          %s541 = int_to_ptr.vmem [resolvable:$true] %s540
          %543 = dma.hbm_to_vmem [thread:$0]  %s539, 32, %s541, [#allocation13]
        $region36: #{tpu_custom_call.1} parent=11 // pred_fallthru
          _
        // Predicated region
        $region37: #{tpu_custom_call.1} parent=11 // pred_check
          %p544 = pneg %p239
        $region38: #{tpu_custom_call.1} parent=11 // pred_check_branch
          %546 = sbr.rel (%p544) target = $region40
        $region39: #{tpu_custom_call.1} parent=11 // pred_region
          _
        $region40: #{tpu_custom_call.1} parent=11 // pred_fallthru
          _
        // Predicated region
        $region41: #{tpu_custom_call.1} parent=11 // pred_check
          %p547 = pneg %p260
        $region42: #{tpu_custom_call.1} parent=11 // pred_check_branch
          %549 = sbr.rel (%p547) target = $region44
        $region43: #{tpu_custom_call.1} parent=11 // pred_region
          %551 = vsyncadd [#allocation13], 0
          %s553 = sshll.u32 %s9, 4
          %s554 = int_to_ptr.hbm [resolvable:$true] %s553
          %s555 = sshll.u32 [#allocation14], 4
          %s556 = int_to_ptr.vmem [resolvable:$true] %s555
          %558 = dma.hbm_to_vmem [thread:$0]  %s554, 32, %s556, [#allocation13]
        $region44: #{tpu_custom_call.1} parent=11 // pred_fallthru
          _
        // Predicated region
        $region45: #{tpu_custom_call.1} parent=11 // pred_check
          %p559 = pneg %p281
        $region46: #{tpu_custom_call.1} parent=11 // pred_check_branch
          %561 = sbr.rel (%p559) target = $region48
        $region47: #{tpu_custom_call.1} parent=11 // pred_region
          _
        $region48: #{tpu_custom_call.1} parent=11 // pred_fallthru
          _
        // Predicated region
        $region49: #{tpu_custom_call.1} parent=11 // pred_check
          %p562 = pneg %p302
        $region50: #{tpu_custom_call.1} parent=11 // pred_check_branch
          %564 = sbr.rel (%p562) target = $region52
        $region51: #{tpu_custom_call.1} parent=11 // pred_region
          %566 = vsyncadd [#allocation16], 0
          %s567 = sshll.u32 %s11, 4
          %s568 = int_to_ptr.hbm [resolvable:$true] %s567
          %s569 = sshll.u32 [#allocation15], 4
          %s570 = int_to_ptr.vmem [resolvable:$true] %s569
          %575 = dma.hbm_to_vmem [thread:$0]  %s568, 4096, %s570, [#allocation16], 128, 128, 8
        $region52: #{tpu_custom_call.1} parent=11 // pred_fallthru
          _
        // Predicated region
        $region53: #{tpu_custom_call.1} parent=11 // pred_check
          %p576 = pneg %p323
        $region54: #{tpu_custom_call.1} parent=11 // pred_check_branch
          %578 = sbr.rel (%p576) target = $region56
        $region55: #{tpu_custom_call.1} parent=11 // pred_region
          %580 = vsyncadd [#allocation16], 0
          %s581 = sshll.u32 %s12, 4
          %s582 = int_to_ptr.hbm [resolvable:$true] %s581
          %s583 = sshll.u32 [#allocation17], 4
          %s584 = int_to_ptr.vmem [resolvable:$true] %s583
          %589 = dma.hbm_to_vmem [thread:$0]  %s582, 4096, %s584, [#allocation16], 128, 128, 8
        $region56: #{tpu_custom_call.1} parent=11 // pred_fallthru
          _
        // Predicated region
        $region57: #{tpu_custom_call.1} parent=11 // pred_check
          %p590 = pneg %p344
        $region58: #{tpu_custom_call.1} parent=11 // pred_check_branch
          %592 = sbr.rel (%p590) target = $region60
        $region59: #{tpu_custom_call.1} parent=11 // pred_region
          _
        $region60: #{tpu_custom_call.1} parent=11 // pred_fallthru
          _
        // Predicated region
        $region61: #{tpu_custom_call.1} parent=11 // pred_check
          %p593 = pneg %p365
        $region62: #{tpu_custom_call.1} parent=11 // pred_check_branch
          %595 = sbr.rel (%p593) target = $region64
        $region63: #{tpu_custom_call.1} parent=11 // pred_region
          %597 = vsyncadd [#allocation19], 0
          %s598 = sshll.u32 %s14, 4
          %s599 = int_to_ptr.hbm [resolvable:$true] %s598
          %s600 = sshll.u32 [#allocation18], 4
          %s601 = int_to_ptr.vmem [resolvable:$true] %s600
          %606 = dma.hbm_to_vmem [thread:$0]  %s599, 8192, %s601, [#allocation19], 256, 256, 16
        $region64: #{tpu_custom_call.1} parent=11 // pred_fallthru
          _
        // Predicated region
        $region65: #{tpu_custom_call.1} parent=11 // pred_check
          %p607 = pneg %p386
        $region66: #{tpu_custom_call.1} parent=11 // pred_check_branch
          %609 = sbr.rel (%p607) target = $region68
        $region67: #{tpu_custom_call.1} parent=11 // pred_region
          %611 = vsyncadd [#allocation19], 0
          %s612 = sshll.u32 %s15, 4
          %s613 = int_to_ptr.hbm [resolvable:$true] %s612
          %s614 = sshll.u32 [#allocation20], 4
          %s615 = int_to_ptr.vmem [resolvable:$true] %s614
          %620 = dma.hbm_to_vmem [thread:$0]  %s613, 8192, %s615, [#allocation19], 256, 256, 16
        $region68: #{tpu_custom_call.1} parent=11 // pred_fallthru
          _
        // Predicated region
        $region69: #{tpu_custom_call.1} parent=11 // pred_check
          %p621 = pneg %p407
        $region70: #{tpu_custom_call.1} parent=11 // pred_check_branch
          %623 = sbr.rel (%p621) target = $region72
        $region71: #{tpu_custom_call.1} parent=11 // pred_region
          _
        $region72: #{tpu_custom_call.1} parent=11 // pred_fallthru
          _
        // Predicated region
        $region73: #{tpu_custom_call.1} parent=11 // pred_check
          %p624 = pneg %p428
        $region74: #{tpu_custom_call.1} parent=11 // pred_check_branch
          %626 = sbr.rel (%p624) target = $region76
        $region75: #{tpu_custom_call.1} parent=11 // pred_region
          %628 = vsyncadd [#allocation22], 0
          %s629 = sshll.u32 %s17, 4
          %s630 = int_to_ptr.hbm [resolvable:$true] %s629
          %s631 = sshll.u32 [#allocation21], 4
          %s632 = int_to_ptr.vmem [resolvable:$true] %s631
          %637 = dma.hbm_to_vmem [thread:$0]  %s630, 8192, %s632, [#allocation22], 128, 128, 8
        $region76: #{tpu_custom_call.1} parent=11 // pred_fallthru
          _
        // Predicated region
        $region77: #{tpu_custom_call.1} parent=11 // pred_check
          %p638 = pneg %p449
        $region78: #{tpu_custom_call.1} parent=11 // pred_check_branch
          %640 = sbr.rel (%p638) target = $region80
        $region79: #{tpu_custom_call.1} parent=11 // pred_region
          _
        $region80: #{tpu_custom_call.1} parent=11 // pred_fallthru
          _
      $region12: #{tpu_custom_call.1} parent=5 // pred_fallthru
        _
      %p641 = scmp.lt.s32.totalorder %s40, 2
      // Predicated region
      $region81: #{tpu_custom_call.1} parent=5 // pred_check
        %p642 = pneg %p641
      $region82: #{tpu_custom_call.1} parent=5 // pred_check_branch
        %644 = sbr.rel (%p642) target = $region84
      $region83: #{tpu_custom_call.1} parent=5 // pred_region
        // Predicated region
        $region85: #{tpu_custom_call.1} parent=83 // pred_check
          %p645 = pneg %p81
        $region86: #{tpu_custom_call.1} parent=83 // pred_check_branch
          %647 = sbr.rel (%p645) target = $region88
        $region87: #{tpu_custom_call.1} parent=83 // pred_region
          %s648 = sand.u32 %s71, 1
          %s649 = scalar_lea.sflag [#allocation4], %s648
          %s650 = sand.u32 %s71, 1
          %s651 = smul.addr %s650, 16
          %s652 = scalar_lea.vmem [#allocation3], %s651
          %654 = vsyncadd %s649, 0
          %s655 = smul.addr %s40, 2
          %s656 = smul.addr %s655, 8
          %s657 = scalar_lea.hbm %s1, %s656
          %s659 = sshll.u32 %s657, 4
          %s660 = int_to_ptr.hbm [resolvable:$true] %s659
          %s661 = sshll.u32 %s652, 4
          %s662 = int_to_ptr.vmem [resolvable:$true] %s661
          %664 = dma.hbm_to_vmem [thread:$0]  %s660, 256, %s662, %s649
        $region88: #{tpu_custom_call.1} parent=83 // pred_fallthru
          _
        // Predicated region
        $region89: #{tpu_custom_call.1} parent=83 // pred_check
          %p665 = pneg %p107
        $region90: #{tpu_custom_call.1} parent=83 // pred_check_branch
          %667 = sbr.rel (%p665) target = $region92
        $region91: #{tpu_custom_call.1} parent=83 // pred_region
          %s668 = sand.u32 %s40, 1
          %s669 = scalar_lea.sflag [#allocation7], %s668
          %s670 = sand.u32 %s97, 1
          %s671 = smul.addr %s670, 16
          %s672 = scalar_lea.vmem [#allocation6], %s671
          %674 = vsyncadd %s669, 0
          %s675 = smul.addr %s40, 2
          %s676 = smul.addr %s675, 8
          %s677 = scalar_lea.hbm %s2, %s676
          %s679 = sshll.u32 %s677, 4
          %s680 = int_to_ptr.hbm [resolvable:$true] %s679
          %s681 = sshll.u32 %s672, 4
          %s682 = int_to_ptr.vmem [resolvable:$true] %s681
          %684 = dma.hbm_to_vmem [thread:$0]  %s680, 256, %s682, %s669
        $region92: #{tpu_custom_call.1} parent=83 // pred_fallthru
          _
      $region84: #{tpu_custom_call.1} parent=5 // pred_fallthru
        _
      %p685 = scmp.le.s32.totalorder 1, %s40
      %p686 = scmp.lt.s32.totalorder %s40, 3
      %p687 = pnand %p685, %p686
      %p688 = pneg %p687
      // Predicated region
      $region93: #{tpu_custom_call.1} parent=5 // pred_check
        _
      $region94: #{tpu_custom_call.1} parent=5 // pred_check_branch
        %690 = sbr.rel (%p687) target = $region96
      $region95: #{tpu_custom_call.1} parent=5 // pred_region
        %s691 = ssub.s32 %s40, 1
        %s692 = sand.u32 %s74, 1
        %s693 = scalar_lea.sflag [#allocation4], %s692
        %s694 = sand.u32 %s74, 1
        %s695 = smul.addr %s694, 16
        %s696 = scalar_lea.vmem [#allocation3], %s695
        // Predicated region
        $region97: #{tpu_custom_call.1} parent=95 // pred_check
          %p697 = pneg %p87
        $region98: #{tpu_custom_call.1} parent=95 // pred_check_branch
          %699 = sbr.rel (%p697) target = $region100
        $region99: #{tpu_custom_call.1} parent=95 // pred_region
          %701 = dma.done %s693, 256
        $region100: #{tpu_custom_call.1} parent=95 // pred_fallthru
          _
        %s702 = sand.u32 %s45, 1
        %s703 = scalar_lea.sflag [#allocation7], %s702
        %s704 = sand.u32 %s100, 1
        %s705 = smul.addr %s704, 16
        %s706 = scalar_lea.vmem [#allocation6], %s705
        // Predicated region
        $region101: #{tpu_custom_call.1} parent=95 // pred_check
          %p707 = pneg %p113
        $region102: #{tpu_custom_call.1} parent=95 // pred_check_branch
          %709 = sbr.rel (%p707) target = $region104
        $region103: #{tpu_custom_call.1} parent=95 // pred_region
          %711 = dma.done %s703, 256
        $region104: #{tpu_custom_call.1} parent=95 // pred_fallthru
          _
        // Predicated region
        $region105: #{tpu_custom_call.1} parent=95 // pred_check
          %p712 = pneg %p155
        $region106: #{tpu_custom_call.1} parent=95 // pred_check_branch
          %714 = sbr.rel (%p712) target = $region108
        $region107: #{tpu_custom_call.1} parent=95 // pred_region
          %716 = dma.done [#allocation7], 32
        $region108: #{tpu_custom_call.1} parent=95 // pred_fallthru
          _
        // Predicated region
        $region109: #{tpu_custom_call.1} parent=95 // pred_check
          %p717 = pneg %p176
        $region110: #{tpu_custom_call.1} parent=95 // pred_check_branch
          %719 = sbr.rel (%p717) target = $region112
        $region111: #{tpu_custom_call.1} parent=95 // pred_region
          %721 = dma.done [#allocation10], 32
        $region112: #{tpu_custom_call.1} parent=95 // pred_fallthru
          _
        // Predicated region
        $region113: #{tpu_custom_call.1} parent=95 // pred_check
          %p722 = pneg %p197
        $region114: #{tpu_custom_call.1} parent=95 // pred_check_branch
          %724 = sbr.rel (%p722) target = $region116
        $region115: #{tpu_custom_call.1} parent=95 // pred_region
          %726 = dma.done [#allocation10], 32
        $region116: #{tpu_custom_call.1} parent=95 // pred_fallthru
          _
        // Predicated region
        $region117: #{tpu_custom_call.1} parent=95 // pred_check
          %p727 = pneg %p218
        $region118: #{tpu_custom_call.1} parent=95 // pred_check_branch
          %729 = sbr.rel (%p727) target = $region120
        $region119: #{tpu_custom_call.1} parent=95 // pred_region
          %731 = dma.done [#allocation13], 32
        $region120: #{tpu_custom_call.1} parent=95 // pred_fallthru
          _
        // Predicated region
        $region121: #{tpu_custom_call.1} parent=95 // pred_check
          %p732 = pneg %p260
        $region122: #{tpu_custom_call.1} parent=95 // pred_check_branch
          %734 = sbr.rel (%p732) target = $region124
        $region123: #{tpu_custom_call.1} parent=95 // pred_region
          %736 = dma.done [#allocation13], 32
        $region124: #{tpu_custom_call.1} parent=95 // pred_fallthru
          _
        // Predicated region
        $region125: #{tpu_custom_call.1} parent=95 // pred_check
          %p737 = pneg %p302
        $region126: #{tpu_custom_call.1} parent=95 // pred_check_branch
          %739 = sbr.rel (%p737) target = $region128
        $region127: #{tpu_custom_call.1} parent=95 // pred_region
          %741 = dma.done [#allocation16], 4096
        $region128: #{tpu_custom_call.1} parent=95 // pred_fallthru
          _
        // Predicated region
        $region129: #{tpu_custom_call.1} parent=95 // pred_check
          %p742 = pneg %p323
        $region130: #{tpu_custom_call.1} parent=95 // pred_check_branch
          %744 = sbr.rel (%p742) target = $region132
        $region131: #{tpu_custom_call.1} parent=95 // pred_region
          %746 = dma.done [#allocation16], 4096
        $region132: #{tpu_custom_call.1} parent=95 // pred_fallthru
          _
        // Predicated region
        $region133: #{tpu_custom_call.1} parent=95 // pred_check
          %p747 = pneg %p365
        $region134: #{tpu_custom_call.1} parent=95 // pred_check_branch
          %749 = sbr.rel (%p747) target = $region136
        $region135: #{tpu_custom_call.1} parent=95 // pred_region
          %751 = dma.done [#allocation19], 8192
        $region136: #{tpu_custom_call.1} parent=95 // pred_fallthru
          _
        // Predicated region
        $region137: #{tpu_custom_call.1} parent=95 // pred_check
          %p752 = pneg %p386
        $region138: #{tpu_custom_call.1} parent=95 // pred_check_branch
          %754 = sbr.rel (%p752) target = $region140
        $region139: #{tpu_custom_call.1} parent=95 // pred_region
          %756 = dma.done [#allocation19], 8192
        $region140: #{tpu_custom_call.1} parent=95 // pred_fallthru
          _
        // Predicated region
        $region141: #{tpu_custom_call.1} parent=95 // pred_check
          %p757 = pneg %p428
        $region142: #{tpu_custom_call.1} parent=95 // pred_check_branch
          %759 = sbr.rel (%p757) target = $region144
        $region143: #{tpu_custom_call.1} parent=95 // pred_region
          %761 = dma.done [#allocation22], 8192
        $region144: #{tpu_custom_call.1} parent=95 // pred_fallthru
          _
        %p762 = pneg %p61
        %p763 = pneg %p58
        %s764 = sand.u32 %s74, 1
        %s765 = scalar_lea.sflag [#allocation4], %s764
        %s766 = sand.u32 %s74, 1
        %s767 = smul.addr %s766, 16
        %s768 = scalar_lea.vmem [#allocation3], %s767
        %p769 = pneg %p87
        %p770 = pneg %p84
        %s771 = sand.u32 %s45, 1
        %s772 = scalar_lea.sflag [#allocation7], %s771
        %s773 = sand.u32 %s100, 1
        %s774 = smul.addr %s773, 16
        %s775 = scalar_lea.vmem [#allocation6], %s774
        %p776 = pneg %p113
        %p777 = pneg %p110
        %p778 = pneg %p134
        %p779 = pneg %p131
        %p780 = pneg %p155
        %p781 = pneg %p152
        %p782 = pneg %p176
        %p783 = pneg %p173
        %p784 = pneg %p197
        %p785 = pneg %p194
        %p786 = pneg %p218
        %p787 = pneg %p215
        %p788 = pneg %p239
        %p789 = pneg %p236
        %p790 = pneg %p260
        %p791 = pneg %p257
        %p792 = pneg %p281
        %p793 = pneg %p278
        %p794 = pneg %p302
        %p795 = pneg %p299
        %p796 = pneg %p323
        %p797 = pneg %p320
        %p798 = pneg %p344
        %p799 = pneg %p341
        %p800 = pneg %p365
        %p801 = pneg %p362
        %p802 = pneg %p386
        %p803 = pneg %p383
        %p804 = pneg %p407
        %p805 = pneg %p404
        %p806 = pneg %p428
        %p807 = pneg %p425
        %p808 = pneg %p449
        %p809 = pneg %p446
        %p810 = pneg %p475
        %p811 = pneg %p472
        %s812 = sand.u32 %s462, 1
        %s813 = scalar_lea.sflag [#allocation5], %s812
        %s814 = sand.u32 %s462, 1
        %s815 = smul.addr %s814, 16
        %s816 = scalar_lea.vmem [#allocation23], %s815
        %v817 = vld [vmem:[%s706] sm:$0xff]
        %v818 = vld [vmem:[%s706 + $0x8] sm:$0xff]
        %v819 = vld [vmem:[%s696] sm:$0xff]
        %v820 = vld [vmem:[%s696 + $0x8] sm:$0xff]
        %v821 = vld [vmem:[%s3] sm:$0x3]
        %v823 = vperm.slane %v821, 0
        %v824 = vperm.slane %v821, 1
        %v827 = vmul.f32 %v817, %v823
        %v828 = vmul.f32 %v818, %v824
        %v829 = vld [vmem:[#allocation8] sm:$0x3]
        %v831 = vperm.slane %v829, 0
        %v832 = vperm.slane %v829, 1
        %v835 = vadd.f32 %v827, %v831
        %v836 = vadd.f32 %v828, %v832
        %v837 = vmax.f32 %v835, 0.0
        %v838 = vmax.f32 %v836, 0.0
        %v839 = vpack.c.bf16 %v837, %v837
        %v840 = vpack.c.bf16 %v838, %v838
        %v841 = vld [vmem:[#allocation9] sm:$0x3]
        %v843 = vperm.slane %v841, 0
        %v844 = vperm.slane %v841, 1
        %v847 = vmul.f32 %v819, %v843
        %v848 = vmul.f32 %v820, %v844
        %v849 = vld [vmem:[#allocation11] sm:$0x3]
        %v851 = vperm.slane %v849, 0
        %v852 = vperm.slane %v849, 1
        %v855 = vadd.f32 %v847, %v851
        %v856 = vadd.f32 %v848, %v852
        %v857 = vmax.f32 %v855, 0.0
        %v858 = vmax.f32 %v856, 0.0
        %v859 = vpack.c.bf16 %v857, %v857
        %v860 = vpack.c.bf16 %v858, %v858
        %v861 = vld [vmem:[#allocation12] sm:$0x3]
        %v863 = vperm.slane %v861, 0
        %v864 = vperm.slane %v861, 1
        %v867 = vmul.f32 %v817, %v863
        %v868 = vmul.f32 %v818, %v864
        %v869 = vld [vmem:[%s8] sm:$0x3]
        %v871 = vperm.slane %v869, 0
        %v872 = vperm.slane %v869, 1
        %v875 = vadd.f32 %v867, %v871
        %v876 = vadd.f32 %v868, %v872
        %v877 = vmax.f32 %v875, 0.0
        %v878 = vmax.f32 %v876, 0.0
        %v879 = vpack.c.bf16 %v877, %v877
        %v880 = vpack.c.bf16 %v878, %v878
        %v881 = vld [vmem:[#allocation14] sm:$0x3]
        %v883 = vperm.slane %v881, 0
        %v884 = vperm.slane %v881, 1
        %v887 = vmul.f32 %v819, %v883
        %v888 = vmul.f32 %v820, %v884
        %v889 = vld [vmem:[%s10] sm:$0x3]
        %v891 = vperm.slane %v889, 0
        %v892 = vperm.slane %v889, 1
        %v895 = vadd.f32 %v887, %v891
        %v896 = vadd.f32 %v888, %v892
        %v897 = vmax.f32 %v895, 0.0
        %v898 = vmax.f32 %v896, 0.0
        %v899 = vpack.c.bf16 %v897, %v897
        %v900 = vpack.c.bf16 %v898, %v898
        %v901 = vld [vmem:[#allocation15] sm:$0xff]
        %v902 = vld [vmem:[#allocation15 + $0x8] sm:$0xff]
        %v903 = vld [vmem:[#allocation15 + $0x10] sm:$0xff]
        %v904 = vld [vmem:[#allocation15 + $0x18] sm:$0xff]
        %v905 = vld [vmem:[#allocation15 + $0x20] sm:$0xff]
        %v906 = vld [vmem:[#allocation15 + $0x28] sm:$0xff]
        %v907 = vld [vmem:[#allocation15 + $0x30] sm:$0xff]
        %v908 = vld [vmem:[#allocation15 + $0x38] sm:$0xff]
        %v909 = vld [vmem:[#allocation15 + $0x40] sm:$0xff]
        %v910 = vld [vmem:[#allocation15 + $0x48] sm:$0xff]
        %v911 = vld [vmem:[#allocation15 + $0x50] sm:$0xff]
        %v912 = vld [vmem:[#allocation15 + $0x58] sm:$0xff]
        %v913 = vld [vmem:[#allocation15 + $0x60] sm:$0xff]
        %v914 = vld [vmem:[#allocation15 + $0x68] sm:$0xff]
        %v915 = vld [vmem:[#allocation15 + $0x70] sm:$0xff]
        %v916 = vld [vmem:[#allocation15 + $0x78] sm:$0xff]
        %v917 = vld [vmem:[#allocation15 + $0x80] sm:$0xff]
        %v918 = vld [vmem:[#allocation15 + $0x88] sm:$0xff]
        %v919 = vld [vmem:[#allocation15 + $0x90] sm:$0xff]
        %v920 = vld [vmem:[#allocation15 + $0x98] sm:$0xff]
        %v921 = vld [vmem:[#allocation15 + $0xa0] sm:$0xff]
        %v922 = vld [vmem:[#allocation15 + $0xa8] sm:$0xff]
        %v923 = vld [vmem:[#allocation15 + $0xb0] sm:$0xff]
        %v924 = vld [vmem:[#allocation15 + $0xb8] sm:$0xff]
        %v925 = vld [vmem:[#allocation15 + $0xc0] sm:$0xff]
        %v926 = vld [vmem:[#allocation15 + $0xc8] sm:$0xff]
        %v927 = vld [vmem:[#allocation15 + $0xd0] sm:$0xff]
        %v928 = vld [vmem:[#allocation15 + $0xd8] sm:$0xff]
        %v929 = vld [vmem:[#allocation15 + $0xe0] sm:$0xff]
        %v930 = vld [vmem:[#allocation15 + $0xe8] sm:$0xff]
        %v931 = vld [vmem:[#allocation15 + $0xf0] sm:$0xff]
        %v932 = vld [vmem:[#allocation15 + $0xf8] sm:$0xff]
        %v933 = vld [vmem:[#allocation17] sm:$0xff]
        %v934 = vld [vmem:[#allocation17 + $0x8] sm:$0xff]
        %v935 = vld [vmem:[#allocation17 + $0x10] sm:$0xff]
        %v936 = vld [vmem:[#allocation17 + $0x18] sm:$0xff]
        %v937 = vld [vmem:[#allocation17 + $0x20] sm:$0xff]
        %v938 = vld [vmem:[#allocation17 + $0x28] sm:$0xff]
        %v939 = vld [vmem:[#allocation17 + $0x30] sm:$0xff]
        %v940 = vld [vmem:[#allocation17 + $0x38] sm:$0xff]
        %v941 = vld [vmem:[#allocation17 + $0x40] sm:$0xff]
        %v942 = vld [vmem:[#allocation17 + $0x48] sm:$0xff]
        %v943 = vld [vmem:[#allocation17 + $0x50] sm:$0xff]
        %v944 = vld [vmem:[#allocation17 + $0x58] sm:$0xff]
        %v945 = vld [vmem:[#allocation17 + $0x60] sm:$0xff]
        %v946 = vld [vmem:[#allocation17 + $0x68] sm:$0xff]
        %v947 = vld [vmem:[#allocation17 + $0x70] sm:$0xff]
        %v948 = vld [vmem:[#allocation17 + $0x78] sm:$0xff]
        %v949 = vld [vmem:[#allocation17 + $0x80] sm:$0xff]
        %v950 = vld [vmem:[#allocation17 + $0x88] sm:$0xff]
        %v951 = vld [vmem:[#allocation17 + $0x90] sm:$0xff]
        %v952 = vld [vmem:[#allocation17 + $0x98] sm:$0xff]
        %v953 = vld [vmem:[#allocation17 + $0xa0] sm:$0xff]
        %v954 = vld [vmem:[#allocation17 + $0xa8] sm:$0xff]
        %v955 = vld [vmem:[#allocation17 + $0xb0] sm:$0xff]
        %v956 = vld [vmem:[#allocation17 + $0xb8] sm:$0xff]
        %v957 = vld [vmem:[#allocation17 + $0xc0] sm:$0xff]
        %v958 = vld [vmem:[#allocation17 + $0xc8] sm:$0xff]
        %v959 = vld [vmem:[#allocation17 + $0xd0] sm:$0xff]
        %v960 = vld [vmem:[#allocation17 + $0xd8] sm:$0xff]
        %v961 = vld [vmem:[#allocation17 + $0xe0] sm:$0xff]
        %v962 = vld [vmem:[#allocation17 + $0xe8] sm:$0xff]
        %v963 = vld [vmem:[#allocation17 + $0xf0] sm:$0xff]
        %v964 = vld [vmem:[#allocation17 + $0xf8] sm:$0xff]
        %v997 = vunpack.c.l.b16 %v933
        %v998 = vunpack.c.h.b16 %v933
        %v999 = vunpack.c.l.b16 %v934
        %v1000 = vunpack.c.h.b16 %v934
        %v1001 = vunpack.c.l.b16 %v935
        %v1002 = vunpack.c.h.b16 %v935
        %v1003 = vunpack.c.l.b16 %v936
        %v1004 = vunpack.c.h.b16 %v936
        %v1005 = vunpack.c.l.b16 %v937
        %v1006 = vunpack.c.h.b16 %v937
        %v1007 = vunpack.c.l.b16 %v938
        %v1008 = vunpack.c.h.b16 %v938
        %v1009 = vunpack.c.l.b16 %v939
        %v1010 = vunpack.c.h.b16 %v939
        %v1011 = vunpack.c.l.b16 %v940
        %v1012 = vunpack.c.h.b16 %v940
        %v1013 = vunpack.c.l.b16 %v941
        %v1014 = vunpack.c.h.b16 %v941
        %v1015 = vunpack.c.l.b16 %v942
        %v1016 = vunpack.c.h.b16 %v942
        %v1017 = vunpack.c.l.b16 %v943
        %v1018 = vunpack.c.h.b16 %v943
        %v1019 = vunpack.c.l.b16 %v944
        %v1020 = vunpack.c.h.b16 %v944
        %v1021 = vunpack.c.l.b16 %v945
        %v1022 = vunpack.c.h.b16 %v945
        %v1023 = vunpack.c.l.b16 %v946
        %v1024 = vunpack.c.h.b16 %v946
        %v1025 = vunpack.c.l.b16 %v947
        %v1026 = vunpack.c.h.b16 %v947
        %v1027 = vunpack.c.l.b16 %v948
        %v1028 = vunpack.c.h.b16 %v948
        %v1029 = vunpack.c.l.b16 %v949
        %v1030 = vunpack.c.h.b16 %v949
        %v1031 = vunpack.c.l.b16 %v950
        %v1032 = vunpack.c.h.b16 %v950
        %v1033 = vunpack.c.l.b16 %v951
        %v1034 = vunpack.c.h.b16 %v951
        %v1035 = vunpack.c.l.b16 %v952
        %v1036 = vunpack.c.h.b16 %v952
        %v1037 = vunpack.c.l.b16 %v953
        %v1038 = vunpack.c.h.b16 %v953
        %v1039 = vunpack.c.l.b16 %v954
        %v1040 = vunpack.c.h.b16 %v954
        %v1041 = vunpack.c.l.b16 %v955
        %v1042 = vunpack.c.h.b16 %v955
        %v1043 = vunpack.c.l.b16 %v956
        %v1044 = vunpack.c.h.b16 %v956
        %v1045 = vunpack.c.l.b16 %v957
        %v1046 = vunpack.c.h.b16 %v957
        %v1047 = vunpack.c.l.b16 %v958
        %v1048 = vunpack.c.h.b16 %v958
        %v1049 = vunpack.c.l.b16 %v959
        %v1050 = vunpack.c.h.b16 %v959
        %v1051 = vunpack.c.l.b16 %v960
        %v1052 = vunpack.c.h.b16 %v960
        %v1053 = vunpack.c.l.b16 %v961
        %v1054 = vunpack.c.h.b16 %v961
        %v1055 = vunpack.c.l.b16 %v962
        %v1056 = vunpack.c.h.b16 %v962
        %v1057 = vunpack.c.l.b16 %v963
        %v1058 = vunpack.c.h.b16 %v963
        %v1059 = vunpack.c.l.b16 %v964
        %v1060 = vunpack.c.h.b16 %v964
        %v1061 = vpack.c.b16 %v999, %v997
        %v1062 = vpack.c.b16 %v1000, %v998
        %v1063 = vpack.c.b16 %v1003, %v1001
        %v1064 = vpack.c.b16 %v1004, %v1002
        %v1065 = vpack.c.b16 %v1007, %v1005
        %v1066 = vpack.c.b16 %v1008, %v1006
        %v1067 = vpack.c.b16 %v1011, %v1009
        %v1068 = vpack.c.b16 %v1012, %v1010
        %v1069 = vpack.c.b16 %v1015, %v1013
        %v1070 = vpack.c.b16 %v1016, %v1014
        %v1071 = vpack.c.b16 %v1019, %v1017
        %v1072 = vpack.c.b16 %v1020, %v1018
        %v1073 = vpack.c.b16 %v1023, %v1021
        %v1074 = vpack.c.b16 %v1024, %v1022
        %v1075 = vpack.c.b16 %v1027, %v1025
        %v1076 = vpack.c.b16 %v1028, %v1026
        %v1077 = vpack.c.b16 %v1031, %v1029
        %v1078 = vpack.c.b16 %v1032, %v1030
        %v1079 = vpack.c.b16 %v1035, %v1033
        %v1080 = vpack.c.b16 %v1036, %v1034
        %v1081 = vpack.c.b16 %v1039, %v1037
        %v1082 = vpack.c.b16 %v1040, %v1038
        %v1083 = vpack.c.b16 %v1043, %v1041
        %v1084 = vpack.c.b16 %v1044, %v1042
        %v1085 = vpack.c.b16 %v1047, %v1045
        %v1086 = vpack.c.b16 %v1048, %v1046
        %v1087 = vpack.c.b16 %v1051, %v1049
        %v1088 = vpack.c.b16 %v1052, %v1050
        %v1089 = vpack.c.b16 %v1055, %v1053
        %v1090 = vpack.c.b16 %v1056, %v1054
        %v1091 = vpack.c.b16 %v1059, %v1057
        %v1092 = vpack.c.b16 %v1060, %v1058
        %1125 = vmatpush.bf16.msra.mxu0 %v1075
        %1126 = vmatpush.bf16.msra.mxu0 %v1073
        %1127 = vmatpush.bf16.msra.mxu0 %v1071
        %1128 = vmatpush.bf16.msra.mxu0 %v1069
        %1129 = vmatpush.bf16.msra.mxu0 %v1067
        %1130 = vmatpush.bf16.msra.mxu0 %v1065
        %1131 = vmatpush.bf16.msra.mxu0 %v1063
        %1132 = vmatpush.bf16.msra.mxu0 %v1061
        %1133 = vmatmul.bf16.gmra.mxu0 %v859
        %v1134 = vpop.f32.mrf.mxu0
        %v1135 = vadd.f32 0.0, %v1134
        %v1136 = vpop.f32.mrf.mxu0
        %1137 = vdwg.mxu0
        %1138 = vmatpush.bf16.msra.mxu0 %v1091
        %1139 = vmatpush.bf16.msra.mxu0 %v1089
        %1140 = vmatpush.bf16.msra.mxu0 %v1087
        %1141 = vmatpush.bf16.msra.mxu0 %v1085
        %1142 = vmatpush.bf16.msra.mxu0 %v1083
        %1143 = vmatpush.bf16.msra.mxu0 %v1081
        %1144 = vmatpush.bf16.msra.mxu0 %v1079
        %1145 = vmatpush.bf16.msra.mxu0 %v1077
        %1146 = vmatmul.bf16.gmra.mxu0 %v860
        %v1147 = vpop.f32.mrf.mxu0
        %v1148 = vadd.f32 %v1135, %v1147
        %v1149 = vpop.f32.mrf.mxu0
        %1150 = vdwg.mxu0
        %1151 = vmatpush.bf16.msra.mxu0 %v1076
        %1152 = vmatpush.bf16.msra.mxu0 %v1074
        %1153 = vmatpush.bf16.msra.mxu0 %v1072
        %1154 = vmatpush.bf16.msra.mxu0 %v1070
        %1155 = vmatpush.bf16.msra.mxu0 %v1068
        %1156 = vmatpush.bf16.msra.mxu0 %v1066
        %1157 = vmatpush.bf16.msra.mxu0 %v1064
        %1158 = vmatpush.bf16.msra.mxu0 %v1062
        %1159 = vmatmul.bf16.gmra.mxu0 %v859
        %v1160 = vpop.f32.mrf.mxu0
        %v1161 = vadd.f32 0.0, %v1160
        %v1162 = vpop.f32.mrf.mxu0
        %1163 = vdwg.mxu0
        %1164 = vmatpush.bf16.msra.mxu0 %v1092
        %1165 = vmatpush.bf16.msra.mxu0 %v1090
        %1166 = vmatpush.bf16.msra.mxu0 %v1088
        %1167 = vmatpush.bf16.msra.mxu0 %v1086
        %1168 = vmatpush.bf16.msra.mxu0 %v1084
        %1169 = vmatpush.bf16.msra.mxu0 %v1082
        %1170 = vmatpush.bf16.msra.mxu0 %v1080
        %1171 = vmatpush.bf16.msra.mxu0 %v1078
        %1172 = vmatmul.bf16.gmra.mxu0 %v860
        %v1173 = vpop.f32.mrf.mxu0
        %v1174 = vadd.f32 %v1161, %v1173
        %v1175 = vpop.f32.mrf.mxu0
        %1176 = vdwg.mxu0
        %v1209 = vunpack.c.l.b16 %v901
        %v1210 = vunpack.c.h.b16 %v901
        %v1211 = vunpack.c.l.b16 %v902
        %v1212 = vunpack.c.h.b16 %v902
        %v1213 = vunpack.c.l.b16 %v903
        %v1214 = vunpack.c.h.b16 %v903
        %v1215 = vunpack.c.l.b16 %v904
        %v1216 = vunpack.c.h.b16 %v904
        %v1217 = vunpack.c.l.b16 %v905
        %v1218 = vunpack.c.h.b16 %v905
        %v1219 = vunpack.c.l.b16 %v906
        %v1220 = vunpack.c.h.b16 %v906
        %v1221 = vunpack.c.l.b16 %v907
        %v1222 = vunpack.c.h.b16 %v907
        %v1223 = vunpack.c.l.b16 %v908
        %v1224 = vunpack.c.h.b16 %v908
        %v1225 = vunpack.c.l.b16 %v909
        %v1226 = vunpack.c.h.b16 %v909
        %v1227 = vunpack.c.l.b16 %v910
        %v1228 = vunpack.c.h.b16 %v910
        %v1229 = vunpack.c.l.b16 %v911
        %v1230 = vunpack.c.h.b16 %v911
        %v1231 = vunpack.c.l.b16 %v912
        %v1232 = vunpack.c.h.b16 %v912
        %v1233 = vunpack.c.l.b16 %v913
        %v1234 = vunpack.c.h.b16 %v913
        %v1235 = vunpack.c.l.b16 %v914
        %v1236 = vunpack.c.h.b16 %v914
        %v1237 = vunpack.c.l.b16 %v915
        %v1238 = vunpack.c.h.b16 %v915
        %v1239 = vunpack.c.l.b16 %v916
        %v1240 = vunpack.c.h.b16 %v916
        %v1241 = vunpack.c.l.b16 %v917
        %v1242 = vunpack.c.h.b16 %v917
        %v1243 = vunpack.c.l.b16 %v918
        %v1244 = vunpack.c.h.b16 %v918
        %v1245 = vunpack.c.l.b16 %v919
        %v1246 = vunpack.c.h.b16 %v919
        %v1247 = vunpack.c.l.b16 %v920
        %v1248 = vunpack.c.h.b16 %v920
        %v1249 = vunpack.c.l.b16 %v921
        %v1250 = vunpack.c.h.b16 %v921
        %v1251 = vunpack.c.l.b16 %v922
        %v1252 = vunpack.c.h.b16 %v922
        %v1253 = vunpack.c.l.b16 %v923
        %v1254 = vunpack.c.h.b16 %v923
        %v1255 = vunpack.c.l.b16 %v924
        %v1256 = vunpack.c.h.b16 %v924
        %v1257 = vunpack.c.l.b16 %v925
        %v1258 = vunpack.c.h.b16 %v925
        %v1259 = vunpack.c.l.b16 %v926
        %v1260 = vunpack.c.h.b16 %v926
        %v1261 = vunpack.c.l.b16 %v927
        %v1262 = vunpack.c.h.b16 %v927
        %v1263 = vunpack.c.l.b16 %v928
        %v1264 = vunpack.c.h.b16 %v928
        %v1265 = vunpack.c.l.b16 %v929
        %v1266 = vunpack.c.h.b16 %v929
        %v1267 = vunpack.c.l.b16 %v930
        %v1268 = vunpack.c.h.b16 %v930
        %v1269 = vunpack.c.l.b16 %v931
        %v1270 = vunpack.c.h.b16 %v931
        %v1271 = vunpack.c.l.b16 %v932
        %v1272 = vunpack.c.h.b16 %v932
        %v1273 = vpack.c.b16 %v1211, %v1209
        %v1274 = vpack.c.b16 %v1212, %v1210
        %v1275 = vpack.c.b16 %v1215, %v1213
        %v1276 = vpack.c.b16 %v1216, %v1214
        %v1277 = vpack.c.b16 %v1219, %v1217
        %v1278 = vpack.c.b16 %v1220, %v1218
        %v1279 = vpack.c.b16 %v1223, %v1221
        %v1280 = vpack.c.b16 %v1224, %v1222
        %v1281 = vpack.c.b16 %v1227, %v1225
        %v1282 = vpack.c.b16 %v1228, %v1226
        %v1283 = vpack.c.b16 %v1231, %v1229
        %v1284 = vpack.c.b16 %v1232, %v1230
        %v1285 = vpack.c.b16 %v1235, %v1233
        %v1286 = vpack.c.b16 %v1236, %v1234
        %v1287 = vpack.c.b16 %v1239, %v1237
        %v1288 = vpack.c.b16 %v1240, %v1238
        %v1289 = vpack.c.b16 %v1243, %v1241
        %v1290 = vpack.c.b16 %v1244, %v1242
        %v1291 = vpack.c.b16 %v1247, %v1245
        %v1292 = vpack.c.b16 %v1248, %v1246
        %v1293 = vpack.c.b16 %v1251, %v1249
        %v1294 = vpack.c.b16 %v1252, %v1250
        %v1295 = vpack.c.b16 %v1255, %v1253
        %v1296 = vpack.c.b16 %v1256, %v1254
        %v1297 = vpack.c.b16 %v1259, %v1257
        %v1298 = vpack.c.b16 %v1260, %v1258
        %v1299 = vpack.c.b16 %v1263, %v1261
        %v1300 = vpack.c.b16 %v1264, %v1262
        %v1301 = vpack.c.b16 %v1267, %v1265
        %v1302 = vpack.c.b16 %v1268, %v1266
        %v1303 = vpack.c.b16 %v1271, %v1269
        %v1304 = vpack.c.b16 %v1272, %v1270
        %1337 = vmatpush.bf16.msra.mxu0 %v1287
        %1338 = vmatpush.bf16.msra.mxu0 %v1285
        %1339 = vmatpush.bf16.msra.mxu0 %v1283
        %1340 = vmatpush.bf16.msra.mxu0 %v1281
        %1341 = vmatpush.bf16.msra.mxu0 %v1279
        %1342 = vmatpush.bf16.msra.mxu0 %v1277
        %1343 = vmatpush.bf16.msra.mxu0 %v1275
        %1344 = vmatpush.bf16.msra.mxu0 %v1273
        %1345 = vmatmul.bf16.gmra.mxu0 %v839
        %v1346 = vpop.f32.mrf.mxu0
        %v1347 = vadd.f32 %v1148, %v1346
        %v1348 = vpop.f32.mrf.mxu0
        %1349 = vdwg.mxu0
        %1350 = vmatpush.bf16.msra.mxu0 %v1303
        %1351 = vmatpush.bf16.msra.mxu0 %v1301
        %1352 = vmatpush.bf16.msra.mxu0 %v1299
        %1353 = vmatpush.bf16.msra.mxu0 %v1297
        %1354 = vmatpush.bf16.msra.mxu0 %v1295
        %1355 = vmatpush.bf16.msra.mxu0 %v1293
        %1356 = vmatpush.bf16.msra.mxu0 %v1291
        %1357 = vmatpush.bf16.msra.mxu0 %v1289
        %1358 = vmatmul.bf16.gmra.mxu0 %v840
        %v1359 = vpop.f32.mrf.mxu0
        %v1360 = vadd.f32 %v1347, %v1359
        %v1361 = vpop.f32.mrf.mxu0
        %1362 = vdwg.mxu0
        %1363 = vmatpush.bf16.msra.mxu0 %v1288
        %1364 = vmatpush.bf16.msra.mxu0 %v1286
        %1365 = vmatpush.bf16.msra.mxu0 %v1284
        %1366 = vmatpush.bf16.msra.mxu0 %v1282
        %1367 = vmatpush.bf16.msra.mxu0 %v1280
        %1368 = vmatpush.bf16.msra.mxu0 %v1278
        %1369 = vmatpush.bf16.msra.mxu0 %v1276
        %1370 = vmatpush.bf16.msra.mxu0 %v1274
        %1371 = vmatmul.bf16.gmra.mxu0 %v839
        %v1372 = vpop.f32.mrf.mxu0
        %v1373 = vadd.f32 %v1174, %v1372
        %v1374 = vpop.f32.mrf.mxu0
        %1375 = vdwg.mxu0
        %1376 = vmatpush.bf16.msra.mxu0 %v1304
        %1377 = vmatpush.bf16.msra.mxu0 %v1302
        %1378 = vmatpush.bf16.msra.mxu0 %v1300
        %1379 = vmatpush.bf16.msra.mxu0 %v1298
        %1380 = vmatpush.bf16.msra.mxu0 %v1296
        %1381 = vmatpush.bf16.msra.mxu0 %v1294
        %1382 = vmatpush.bf16.msra.mxu0 %v1292
        %1383 = vmatpush.bf16.msra.mxu0 %v1290
        %1384 = vmatmul.bf16.gmra.mxu0 %v840
        %v1385 = vpop.f32.mrf.mxu0
        %v1386 = vadd.f32 %v1373, %v1385
        %v1387 = vpop.f32.mrf.mxu0
        %1388 = vdwg.mxu0
        %v1389 = vld [vmem:[%s13] sm:$0x3]
        %v1391 = vperm.slane %v1389, 0
        %v1392 = vperm.slane %v1389, 1
        %v1395 = vadd.f32 %v1360, %v1391
        %v1396 = vadd.f32 %v1386, %v1392
        %v1397 = vld [vmem:[#allocation18] sm:$0xff]
        %v1398 = vld [vmem:[#allocation18 + $0x8] sm:$0xff]
        %v1399 = vld [vmem:[#allocation18 + $0x10] sm:$0xff]
        %v1400 = vld [vmem:[#allocation18 + $0x18] sm:$0xff]
        %v1401 = vld [vmem:[#allocation18 + $0x20] sm:$0xff]
        %v1402 = vld [vmem:[#allocation18 + $0x28] sm:$0xff]
        %v1403 = vld [vmem:[#allocation18 + $0x30] sm:$0xff]
        %v1404 = vld [vmem:[#allocation18 + $0x38] sm:$0xff]
        %v1405 = vld [vmem:[#allocation18 + $0x40] sm:$0xff]
        %v1406 = vld [vmem:[#allocation18 + $0x48] sm:$0xff]
        %v1407 = vld [vmem:[#allocation18 + $0x50] sm:$0xff]
        %v1408 = vld [vmem:[#allocation18 + $0x58] sm:$0xff]
        %v1409 = vld [vmem:[#allocation18 + $0x60] sm:$0xff]
        %v1410 = vld [vmem:[#allocation18 + $0x68] sm:$0xff]
        %v1411 = vld [vmem:[#allocation18 + $0x70] sm:$0xff]
        %v1412 = vld [vmem:[#allocation18 + $0x78] sm:$0xff]
        %v1413 = vld [vmem:[#allocation18 + $0x80] sm:$0xff]
        %v1414 = vld [vmem:[#allocation18 + $0x88] sm:$0xff]
        %v1415 = vld [vmem:[#allocation18 + $0x90] sm:$0xff]
        %v1416 = vld [vmem:[#allocation18 + $0x98] sm:$0xff]
        %v1417 = vld [vmem:[#allocation18 + $0xa0] sm:$0xff]
        %v1418 = vld [vmem:[#allocation18 + $0xa8] sm:$0xff]
        %v1419 = vld [vmem:[#allocation18 + $0xb0] sm:$0xff]
        %v1420 = vld [vmem:[#allocation18 + $0xb8] sm:$0xff]
        %v1421 = vld [vmem:[#allocation18 + $0xc0] sm:$0xff]
        %v1422 = vld [vmem:[#allocation18 + $0xc8] sm:$0xff]
        %v1423 = vld [vmem:[#allocation18 + $0xd0] sm:$0xff]
        %v1424 = vld [vmem:[#allocation18 + $0xd8] sm:$0xff]
        %v1425 = vld [vmem:[#allocation18 + $0xe0] sm:$0xff]
        %v1426 = vld [vmem:[#allocation18 + $0xe8] sm:$0xff]
        %v1427 = vld [vmem:[#allocation18 + $0xf0] sm:$0xff]
        %v1428 = vld [vmem:[#allocation18 + $0xf8] sm:$0xff]
        %v1429 = vld [vmem:[#allocation18 + $0x100] sm:$0xff]
        %v1430 = vld [vmem:[#allocation18 + $0x108] sm:$0xff]
        %v1431 = vld [vmem:[#allocation18 + $0x110] sm:$0xff]
        %v1432 = vld [vmem:[#allocation18 + $0x118] sm:$0xff]
        %v1433 = vld [vmem:[#allocation18 + $0x120] sm:$0xff]
        %v1434 = vld [vmem:[#allocation18 + $0x128] sm:$0xff]
        %v1435 = vld [vmem:[#allocation18 + $0x130] sm:$0xff]
        %v1436 = vld [vmem:[#allocation18 + $0x138] sm:$0xff]
        %v1437 = vld [vmem:[#allocation18 + $0x140] sm:$0xff]
        %v1438 = vld [vmem:[#allocation18 + $0x148] sm:$0xff]
        %v1439 = vld [vmem:[#allocation18 + $0x150] sm:$0xff]
        %v1440 = vld [vmem:[#allocation18 + $0x158] sm:$0xff]
        %v1441 = vld [vmem:[#allocation18 + $0x160] sm:$0xff]
        %v1442 = vld [vmem:[#allocation18 + $0x168] sm:$0xff]
        %v1443 = vld [vmem:[#allocation18 + $0x170] sm:$0xff]
        %v1444 = vld [vmem:[#allocation18 + $0x178] sm:$0xff]
        %v1445 = vld [vmem:[#allocation18 + $0x180] sm:$0xff]
        %v1446 = vld [vmem:[#allocation18 + $0x188] sm:$0xff]
        %v1447 = vld [vmem:[#allocation18 + $0x190] sm:$0xff]
        %v1448 = vld [vmem:[#allocation18 + $0x198] sm:$0xff]
        %v1449 = vld [vmem:[#allocation18 + $0x1a0] sm:$0xff]
        %v1450 = vld [vmem:[#allocation18 + $0x1a8] sm:$0xff]
        %v1451 = vld [vmem:[#allocation18 + $0x1b0] sm:$0xff]
        %v1452 = vld [vmem:[#allocation18 + $0x1b8] sm:$0xff]
        %v1453 = vld [vmem:[#allocation18 + $0x1c0] sm:$0xff]
        %v1454 = vld [vmem:[#allocation18 + $0x1c8] sm:$0xff]
        %v1455 = vld [vmem:[#allocation18 + $0x1d0] sm:$0xff]
        %v1456 = vld [vmem:[#allocation18 + $0x1d8] sm:$0xff]
        %v1457 = vld [vmem:[#allocation18 + $0x1e0] sm:$0xff]
        %v1458 = vld [vmem:[#allocation18 + $0x1e8] sm:$0xff]
        %v1459 = vld [vmem:[#allocation18 + $0x1f0] sm:$0xff]
        %v1460 = vld [vmem:[#allocation18 + $0x1f8] sm:$0xff]
        %v1461 = vld [vmem:[#allocation20] sm:$0xff]
        %v1462 = vld [vmem:[#allocation20 + $0x8] sm:$0xff]
        %v1463 = vld [vmem:[#allocation20 + $0x10] sm:$0xff]
        %v1464 = vld [vmem:[#allocation20 + $0x18] sm:$0xff]
        %v1465 = vld [vmem:[#allocation20 + $0x20] sm:$0xff]
        %v1466 = vld [vmem:[#allocation20 + $0x28] sm:$0xff]
        %v1467 = vld [vmem:[#allocation20 + $0x30] sm:$0xff]
        %v1468 = vld [vmem:[#allocation20 + $0x38] sm:$0xff]
        %v1469 = vld [vmem:[#allocation20 + $0x40] sm:$0xff]
        %v1470 = vld [vmem:[#allocation20 + $0x48] sm:$0xff]
        %v1471 = vld [vmem:[#allocation20 + $0x50] sm:$0xff]
        %v1472 = vld [vmem:[#allocation20 + $0x58] sm:$0xff]
        %v1473 = vld [vmem:[#allocation20 + $0x60] sm:$0xff]
        %v1474 = vld [vmem:[#allocation20 + $0x68] sm:$0xff]
        %v1475 = vld [vmem:[#allocation20 + $0x70] sm:$0xff]
        %v1476 = vld [vmem:[#allocation20 + $0x78] sm:$0xff]
        %v1477 = vld [vmem:[#allocation20 + $0x80] sm:$0xff]
        %v1478 = vld [vmem:[#allocation20 + $0x88] sm:$0xff]
        %v1479 = vld [vmem:[#allocation20 + $0x90] sm:$0xff]
        %v1480 = vld [vmem:[#allocation20 + $0x98] sm:$0xff]
        %v1481 = vld [vmem:[#allocation20 + $0xa0] sm:$0xff]
        %v1482 = vld [vmem:[#allocation20 + $0xa8] sm:$0xff]
        %v1483 = vld [vmem:[#allocation20 + $0xb0] sm:$0xff]
        %v1484 = vld [vmem:[#allocation20 + $0xb8] sm:$0xff]
        %v1485 = vld [vmem:[#allocation20 + $0xc0] sm:$0xff]
        %v1486 = vld [vmem:[#allocation20 + $0xc8] sm:$0xff]
        %v1487 = vld [vmem:[#allocation20 + $0xd0] sm:$0xff]
        %v1488 = vld [vmem:[#allocation20 + $0xd8] sm:$0xff]
        %v1489 = vld [vmem:[#allocation20 + $0xe0] sm:$0xff]
        %v1490 = vld [vmem:[#allocation20 + $0xe8] sm:$0xff]
        %v1491 = vld [vmem:[#allocation20 + $0xf0] sm:$0xff]
        %v1492 = vld [vmem:[#allocation20 + $0xf8] sm:$0xff]
        %v1493 = vld [vmem:[#allocation20 + $0x100] sm:$0xff]
        %v1494 = vld [vmem:[#allocation20 + $0x108] sm:$0xff]
        %v1495 = vld [vmem:[#allocation20 + $0x110] sm:$0xff]
        %v1496 = vld [vmem:[#allocation20 + $0x118] sm:$0xff]
        %v1497 = vld [vmem:[#allocation20 + $0x120] sm:$0xff]
        %v1498 = vld [vmem:[#allocation20 + $0x128] sm:$0xff]
        %v1499 = vld [vmem:[#allocation20 + $0x130] sm:$0xff]
        %v1500 = vld [vmem:[#allocation20 + $0x138] sm:$0xff]
        %v1501 = vld [vmem:[#allocation20 + $0x140] sm:$0xff]
        %v1502 = vld [vmem:[#allocation20 + $0x148] sm:$0xff]
        %v1503 = vld [vmem:[#allocation20 + $0x150] sm:$0xff]
        %v1504 = vld [vmem:[#allocation20 + $0x158] sm:$0xff]
        %v1505 = vld [vmem:[#allocation20 + $0x160] sm:$0xff]
        %v1506 = vld [vmem:[#allocation20 + $0x168] sm:$0xff]
        %v1507 = vld [vmem:[#allocation20 + $0x170] sm:$0xff]
        %v1508 = vld [vmem:[#allocation20 + $0x178] sm:$0xff]
        %v1509 = vld [vmem:[#allocation20 + $0x180] sm:$0xff]
        %v1510 = vld [vmem:[#allocation20 + $0x188] sm:$0xff]
        %v1511 = vld [vmem:[#allocation20 + $0x190] sm:$0xff]
        %v1512 = vld [vmem:[#allocation20 + $0x198] sm:$0xff]
        %v1513 = vld [vmem:[#allocation20 + $0x1a0] sm:$0xff]
        %v1514 = vld [vmem:[#allocation20 + $0x1a8] sm:$0xff]
        %v1515 = vld [vmem:[#allocation20 + $0x1b0] sm:$0xff]
        %v1516 = vld [vmem:[#allocation20 + $0x1b8] sm:$0xff]
        %v1517 = vld [vmem:[#allocation20 + $0x1c0] sm:$0xff]
        %v1518 = vld [vmem:[#allocation20 + $0x1c8] sm:$0xff]
        %v1519 = vld [vmem:[#allocation20 + $0x1d0] sm:$0xff]
        %v1520 = vld [vmem:[#allocation20 + $0x1d8] sm:$0xff]
        %v1521 = vld [vmem:[#allocation20 + $0x1e0] sm:$0xff]
        %v1522 = vld [vmem:[#allocation20 + $0x1e8] sm:$0xff]
        %v1523 = vld [vmem:[#allocation20 + $0x1f0] sm:$0xff]
        %v1524 = vld [vmem:[#allocation20 + $0x1f8] sm:$0xff]
        %v1589 = vunpack.c.l.b16 %v1461
        %v1590 = vunpack.c.h.b16 %v1461
        %v1591 = vunpack.c.l.b16 %v1462
        %v1592 = vunpack.c.h.b16 %v1462
        %v1593 = vunpack.c.l.b16 %v1463
        %v1594 = vunpack.c.h.b16 %v1463
        %v1595 = vunpack.c.l.b16 %v1464
        %v1596 = vunpack.c.h.b16 %v1464
        %v1597 = vunpack.c.l.b16 %v1465
        %v1598 = vunpack.c.h.b16 %v1465
        %v1599 = vunpack.c.l.b16 %v1466
        %v1600 = vunpack.c.h.b16 %v1466
        %v1601 = vunpack.c.l.b16 %v1467
        %v1602 = vunpack.c.h.b16 %v1467
        %v1603 = vunpack.c.l.b16 %v1468
        %v1604 = vunpack.c.h.b16 %v1468
        %v1605 = vunpack.c.l.b16 %v1469
        %v1606 = vunpack.c.h.b16 %v1469
        %v1607 = vunpack.c.l.b16 %v1470
        %v1608 = vunpack.c.h.b16 %v1470
        %v1609 = vunpack.c.l.b16 %v1471
        %v1610 = vunpack.c.h.b16 %v1471
        %v1611 = vunpack.c.l.b16 %v1472
        %v1612 = vunpack.c.h.b16 %v1472
        %v1613 = vunpack.c.l.b16 %v1473
        %v1614 = vunpack.c.h.b16 %v1473
        %v1615 = vunpack.c.l.b16 %v1474
        %v1616 = vunpack.c.h.b16 %v1474
        %v1617 = vunpack.c.l.b16 %v1475
        %v1618 = vunpack.c.h.b16 %v1475
        %v1619 = vunpack.c.l.b16 %v1476
        %v1620 = vunpack.c.h.b16 %v1476
        %v1621 = vunpack.c.l.b16 %v1477
        %v1622 = vunpack.c.h.b16 %v1477
        %v1623 = vunpack.c.l.b16 %v1478
        %v1624 = vunpack.c.h.b16 %v1478
        %v1625 = vunpack.c.l.b16 %v1479
        %v1626 = vunpack.c.h.b16 %v1479
        %v1627 = vunpack.c.l.b16 %v1480
        %v1628 = vunpack.c.h.b16 %v1480
        %v1629 = vunpack.c.l.b16 %v1481
        %v1630 = vunpack.c.h.b16 %v1481
        %v1631 = vunpack.c.l.b16 %v1482
        %v1632 = vunpack.c.h.b16 %v1482
        %v1633 = vunpack.c.l.b16 %v1483
        %v1634 = vunpack.c.h.b16 %v1483
        %v1635 = vunpack.c.l.b16 %v1484
        %v1636 = vunpack.c.h.b16 %v1484
        %v1637 = vunpack.c.l.b16 %v1485
        %v1638 = vunpack.c.h.b16 %v1485
        %v1639 = vunpack.c.l.b16 %v1486
        %v1640 = vunpack.c.h.b16 %v1486
        %v1641 = vunpack.c.l.b16 %v1487
        %v1642 = vunpack.c.h.b16 %v1487
        %v1643 = vunpack.c.l.b16 %v1488
        %v1644 = vunpack.c.h.b16 %v1488
        %v1645 = vunpack.c.l.b16 %v1489
        %v1646 = vunpack.c.h.b16 %v1489
        %v1647 = vunpack.c.l.b16 %v1490
        %v1648 = vunpack.c.h.b16 %v1490
        %v1649 = vunpack.c.l.b16 %v1491
        %v1650 = vunpack.c.h.b16 %v1491
        %v1651 = vunpack.c.l.b16 %v1492
        %v1652 = vunpack.c.h.b16 %v1492
        %v1653 = vunpack.c.l.b16 %v1493
        %v1654 = vunpack.c.h.b16 %v1493
        %v1655 = vunpack.c.l.b16 %v1494
        %v1656 = vunpack.c.h.b16 %v1494
        %v1657 = vunpack.c.l.b16 %v1495
        %v1658 = vunpack.c.h.b16 %v1495
        %v1659 = vunpack.c.l.b16 %v1496
        %v1660 = vunpack.c.h.b16 %v1496
        %v1661 = vunpack.c.l.b16 %v1497
        %v1662 = vunpack.c.h.b16 %v1497
        %v1663 = vunpack.c.l.b16 %v1498
        %v1664 = vunpack.c.h.b16 %v1498
        %v1665 = vunpack.c.l.b16 %v1499
        %v1666 = vunpack.c.h.b16 %v1499
        %v1667 = vunpack.c.l.b16 %v1500
        %v1668 = vunpack.c.h.b16 %v1500
        %v1669 = vunpack.c.l.b16 %v1501
        %v1670 = vunpack.c.h.b16 %v1501
        %v1671 = vunpack.c.l.b16 %v1502
        %v1672 = vunpack.c.h.b16 %v1502
        %v1673 = vunpack.c.l.b16 %v1503
        %v1674 = vunpack.c.h.b16 %v1503
        %v1675 = vunpack.c.l.b16 %v1504
        %v1676 = vunpack.c.h.b16 %v1504
        %v1677 = vunpack.c.l.b16 %v1505
        %v1678 = vunpack.c.h.b16 %v1505
        %v1679 = vunpack.c.l.b16 %v1506
        %v1680 = vunpack.c.h.b16 %v1506
        %v1681 = vunpack.c.l.b16 %v1507
        %v1682 = vunpack.c.h.b16 %v1507
        %v1683 = vunpack.c.l.b16 %v1508
        %v1684 = vunpack.c.h.b16 %v1508
        %v1685 = vunpack.c.l.b16 %v1509
        %v1686 = vunpack.c.h.b16 %v1509
        %v1687 = vunpack.c.l.b16 %v1510
        %v1688 = vunpack.c.h.b16 %v1510
        %v1689 = vunpack.c.l.b16 %v1511
        %v1690 = vunpack.c.h.b16 %v1511
        %v1691 = vunpack.c.l.b16 %v1512
        %v1692 = vunpack.c.h.b16 %v1512
        %v1693 = vunpack.c.l.b16 %v1513
        %v1694 = vunpack.c.h.b16 %v1513
        %v1695 = vunpack.c.l.b16 %v1514
        %v1696 = vunpack.c.h.b16 %v1514
        %v1697 = vunpack.c.l.b16 %v1515
        %v1698 = vunpack.c.h.b16 %v1515
        %v1699 = vunpack.c.l.b16 %v1516
        %v1700 = vunpack.c.h.b16 %v1516
        %v1701 = vunpack.c.l.b16 %v1517
        %v1702 = vunpack.c.h.b16 %v1517
        %v1703 = vunpack.c.l.b16 %v1518
        %v1704 = vunpack.c.h.b16 %v1518
        %v1705 = vunpack.c.l.b16 %v1519
        %v1706 = vunpack.c.h.b16 %v1519
        %v1707 = vunpack.c.l.b16 %v1520
        %v1708 = vunpack.c.h.b16 %v1520
        %v1709 = vunpack.c.l.b16 %v1521
        %v1710 = vunpack.c.h.b16 %v1521
        %v1711 = vunpack.c.l.b16 %v1522
        %v1712 = vunpack.c.h.b16 %v1522
        %v1713 = vunpack.c.l.b16 %v1523
        %v1714 = vunpack.c.h.b16 %v1523
        %v1715 = vunpack.c.l.b16 %v1524
        %v1716 = vunpack.c.h.b16 %v1524
        %v1717 = vpack.c.b16 %v1593, %v1589
        %v1718 = vpack.c.b16 %v1594, %v1590
        %v1719 = vpack.c.b16 %v1595, %v1591
        %v1720 = vpack.c.b16 %v1596, %v1592
        %v1721 = vpack.c.b16 %v1601, %v1597
        %v1722 = vpack.c.b16 %v1602, %v1598
        %v1723 = vpack.c.b16 %v1603, %v1599
        %v1724 = vpack.c.b16 %v1604, %v1600
        %v1725 = vpack.c.b16 %v1609, %v1605
        %v1726 = vpack.c.b16 %v1610, %v1606
        %v1727 = vpack.c.b16 %v1611, %v1607
        %v1728 = vpack.c.b16 %v1612, %v1608
        %v1729 = vpack.c.b16 %v1617, %v1613
        %v1730 = vpack.c.b16 %v1618, %v1614
        %v1731 = vpack.c.b16 %v1619, %v1615
        %v1732 = vpack.c.b16 %v1620, %v1616
        %v1733 = vpack.c.b16 %v1625, %v1621
        %v1734 = vpack.c.b16 %v1626, %v1622
        %v1735 = vpack.c.b16 %v1627, %v1623
        %v1736 = vpack.c.b16 %v1628, %v1624
        %v1737 = vpack.c.b16 %v1633, %v1629
        %v1738 = vpack.c.b16 %v1634, %v1630
        %v1739 = vpack.c.b16 %v1635, %v1631
        %v1740 = vpack.c.b16 %v1636, %v1632
        %v1741 = vpack.c.b16 %v1641, %v1637
        %v1742 = vpack.c.b16 %v1642, %v1638
        %v1743 = vpack.c.b16 %v1643, %v1639
        %v1744 = vpack.c.b16 %v1644, %v1640
        %v1745 = vpack.c.b16 %v1649, %v1645
        %v1746 = vpack.c.b16 %v1650, %v1646
        %v1747 = vpack.c.b16 %v1651, %v1647
        %v1748 = vpack.c.b16 %v1652, %v1648
        %v1749 = vpack.c.b16 %v1657, %v1653
        %v1750 = vpack.c.b16 %v1658, %v1654
        %v1751 = vpack.c.b16 %v1659, %v1655
        %v1752 = vpack.c.b16 %v1660, %v1656
        %v1753 = vpack.c.b16 %v1665, %v1661
        %v1754 = vpack.c.b16 %v1666, %v1662
        %v1755 = vpack.c.b16 %v1667, %v1663
        %v1756 = vpack.c.b16 %v1668, %v1664
        %v1757 = vpack.c.b16 %v1673, %v1669
        %v1758 = vpack.c.b16 %v1674, %v1670
        %v1759 = vpack.c.b16 %v1675, %v1671
        %v1760 = vpack.c.b16 %v1676, %v1672
        %v1761 = vpack.c.b16 %v1681, %v1677
        %v1762 = vpack.c.b16 %v1682, %v1678
        %v1763 = vpack.c.b16 %v1683, %v1679
        %v1764 = vpack.c.b16 %v1684, %v1680
        %v1765 = vpack.c.b16 %v1689, %v1685
        %v1766 = vpack.c.b16 %v1690, %v1686
        %v1767 = vpack.c.b16 %v1691, %v1687
        %v1768 = vpack.c.b16 %v1692, %v1688
        %v1769 = vpack.c.b16 %v1697, %v1693
        %v1770 = vpack.c.b16 %v1698, %v1694
        %v1771 = vpack.c.b16 %v1699, %v1695
        %v1772 = vpack.c.b16 %v1700, %v1696
        %v1773 = vpack.c.b16 %v1705, %v1701
        %v1774 = vpack.c.b16 %v1706, %v1702
        %v1775 = vpack.c.b16 %v1707, %v1703
        %v1776 = vpack.c.b16 %v1708, %v1704
        %v1777 = vpack.c.b16 %v1713, %v1709
        %v1778 = vpack.c.b16 %v1714, %v1710
        %v1779 = vpack.c.b16 %v1715, %v1711
        %v1780 = vpack.c.b16 %v1716, %v1712
        %1845 = vmatpush.bf16.msra.mxu0 %v1745
        %1846 = vmatpush.bf16.msra.mxu0 %v1741
        %1847 = vmatpush.bf16.msra.mxu0 %v1737
        %1848 = vmatpush.bf16.msra.mxu0 %v1733
        %1849 = vmatpush.bf16.msra.mxu0 %v1729
        %1850 = vmatpush.bf16.msra.mxu0 %v1725
        %1851 = vmatpush.bf16.msra.mxu0 %v1721
        %1852 = vmatpush.bf16.msra.mxu0 %v1717
        %1853 = vmatmul.bf16.gmra.mxu0 %v899
        %v1854 = vpop.f32.mrf.mxu0
        %v1855 = vadd.f32 0.0, %v1854
        %v1856 = vpop.f32.mrf.mxu0
        %1857 = vdwg.mxu0
        %1858 = vmatpush.bf16.msra.mxu0 %v1777
        %1859 = vmatpush.bf16.msra.mxu0 %v1773
        %1860 = vmatpush.bf16.msra.mxu0 %v1769
        %1861 = vmatpush.bf16.msra.mxu0 %v1765
        %1862 = vmatpush.bf16.msra.mxu0 %v1761
        %1863 = vmatpush.bf16.msra.mxu0 %v1757
        %1864 = vmatpush.bf16.msra.mxu0 %v1753
        %1865 = vmatpush.bf16.msra.mxu0 %v1749
        %1866 = vmatmul.bf16.gmra.mxu0 %v900
        %v1867 = vpop.f32.mrf.mxu0
        %v1868 = vadd.f32 %v1855, %v1867
        %v1869 = vpop.f32.mrf.mxu0
        %1870 = vdwg.mxu0
        %1871 = vmatpush.bf16.msra.mxu0 %v1746
        %1872 = vmatpush.bf16.msra.mxu0 %v1742
        %1873 = vmatpush.bf16.msra.mxu0 %v1738
        %1874 = vmatpush.bf16.msra.mxu0 %v1734
        %1875 = vmatpush.bf16.msra.mxu0 %v1730
        %1876 = vmatpush.bf16.msra.mxu0 %v1726
        %1877 = vmatpush.bf16.msra.mxu0 %v1722
        %1878 = vmatpush.bf16.msra.mxu0 %v1718
        %1879 = vmatmul.bf16.gmra.mxu0 %v899
        %v1880 = vpop.f32.mrf.mxu0
        %v1881 = vadd.f32 0.0, %v1880
        %v1882 = vpop.f32.mrf.mxu0
        %1883 = vdwg.mxu0
        %1884 = vmatpush.bf16.msra.mxu0 %v1778
        %1885 = vmatpush.bf16.msra.mxu0 %v1774
        %1886 = vmatpush.bf16.msra.mxu0 %v1770
        %1887 = vmatpush.bf16.msra.mxu0 %v1766
        %1888 = vmatpush.bf16.msra.mxu0 %v1762
        %1889 = vmatpush.bf16.msra.mxu0 %v1758
        %1890 = vmatpush.bf16.msra.mxu0 %v1754
        %1891 = vmatpush.bf16.msra.mxu0 %v1750
        %1892 = vmatmul.bf16.gmra.mxu0 %v900
        %v1893 = vpop.f32.mrf.mxu0
        %v1894 = vadd.f32 %v1881, %v1893
        %v1895 = vpop.f32.mrf.mxu0
        %1896 = vdwg.mxu0
        %1897 = vmatpush.bf16.msra.mxu0 %v1747
        %1898 = vmatpush.bf16.msra.mxu0 %v1743
        %1899 = vmatpush.bf16.msra.mxu0 %v1739
        %1900 = vmatpush.bf16.msra.mxu0 %v1735
        %1901 = vmatpush.bf16.msra.mxu0 %v1731
        %1902 = vmatpush.bf16.msra.mxu0 %v1727
        %1903 = vmatpush.bf16.msra.mxu0 %v1723
        %1904 = vmatpush.bf16.msra.mxu0 %v1719
        %1905 = vmatmul.bf16.gmra.mxu0 %v899
        %v1906 = vpop.f32.mrf.mxu0
        %v1907 = vadd.f32 0.0, %v1906
        %v1908 = vpop.f32.mrf.mxu0
        %1909 = vdwg.mxu0
        %1910 = vmatpush.bf16.msra.mxu0 %v1779
        %1911 = vmatpush.bf16.msra.mxu0 %v1775
        %1912 = vmatpush.bf16.msra.mxu0 %v1771
        %1913 = vmatpush.bf16.msra.mxu0 %v1767
        %1914 = vmatpush.bf16.msra.mxu0 %v1763
        %1915 = vmatpush.bf16.msra.mxu0 %v1759
        %1916 = vmatpush.bf16.msra.mxu0 %v1755
        %1917 = vmatpush.bf16.msra.mxu0 %v1751
        %1918 = vmatmul.bf16.gmra.mxu0 %v900
        %v1919 = vpop.f32.mrf.mxu0
        %v1920 = vadd.f32 %v1907, %v1919
        %v1921 = vpop.f32.mrf.mxu0
        %1922 = vdwg.mxu0
        %1923 = vmatpush.bf16.msra.mxu0 %v1748
        %1924 = vmatpush.bf16.msra.mxu0 %v1744
        %1925 = vmatpush.bf16.msra.mxu0 %v1740
        %1926 = vmatpush.bf16.msra.mxu0 %v1736
        %1927 = vmatpush.bf16.msra.mxu0 %v1732
        %1928 = vmatpush.bf16.msra.mxu0 %v1728
        %1929 = vmatpush.bf16.msra.mxu0 %v1724
        %1930 = vmatpush.bf16.msra.mxu0 %v1720
        %1931 = vmatmul.bf16.gmra.mxu0 %v899
        %v1932 = vpop.f32.mrf.mxu0
        %v1933 = vadd.f32 0.0, %v1932
        %v1934 = vpop.f32.mrf.mxu0
        %1935 = vdwg.mxu0
        %1936 = vmatpush.bf16.msra.mxu0 %v1780
        %1937 = vmatpush.bf16.msra.mxu0 %v1776
        %1938 = vmatpush.bf16.msra.mxu0 %v1772
        %1939 = vmatpush.bf16.msra.mxu0 %v1768
        %1940 = vmatpush.bf16.msra.mxu0 %v1764
        %1941 = vmatpush.bf16.msra.mxu0 %v1760
        %1942 = vmatpush.bf16.msra.mxu0 %v1756
        %1943 = vmatpush.bf16.msra.mxu0 %v1752
        %1944 = vmatmul.bf16.gmra.mxu0 %v900
        %v1945 = vpop.f32.mrf.mxu0
        %v1946 = vadd.f32 %v1933, %v1945
        %v1947 = vpop.f32.mrf.mxu0
        %1948 = vdwg.mxu0
        %v2013 = vunpack.c.l.b16 %v1397
        %v2014 = vunpack.c.h.b16 %v1397
        %v2015 = vunpack.c.l.b16 %v1398
        %v2016 = vunpack.c.h.b16 %v1398
        %v2017 = vunpack.c.l.b16 %v1399
        %v2018 = vunpack.c.h.b16 %v1399
        %v2019 = vunpack.c.l.b16 %v1400
        %v2020 = vunpack.c.h.b16 %v1400
        %v2021 = vunpack.c.l.b16 %v1401
        %v2022 = vunpack.c.h.b16 %v1401
        %v2023 = vunpack.c.l.b16 %v1402
        %v2024 = vunpack.c.h.b16 %v1402
        %v2025 = vunpack.c.l.b16 %v1403
        %v2026 = vunpack.c.h.b16 %v1403
        %v2027 = vunpack.c.l.b16 %v1404
        %v2028 = vunpack.c.h.b16 %v1404
        %v2029 = vunpack.c.l.b16 %v1405
        %v2030 = vunpack.c.h.b16 %v1405
        %v2031 = vunpack.c.l.b16 %v1406
        %v2032 = vunpack.c.h.b16 %v1406
        %v2033 = vunpack.c.l.b16 %v1407
        %v2034 = vunpack.c.h.b16 %v1407
        %v2035 = vunpack.c.l.b16 %v1408
        %v2036 = vunpack.c.h.b16 %v1408
        %v2037 = vunpack.c.l.b16 %v1409
        %v2038 = vunpack.c.h.b16 %v1409
        %v2039 = vunpack.c.l.b16 %v1410
        %v2040 = vunpack.c.h.b16 %v1410
        %v2041 = vunpack.c.l.b16 %v1411
        %v2042 = vunpack.c.h.b16 %v1411
        %v2043 = vunpack.c.l.b16 %v1412
        %v2044 = vunpack.c.h.b16 %v1412
        %v2045 = vunpack.c.l.b16 %v1413
        %v2046 = vunpack.c.h.b16 %v1413
        %v2047 = vunpack.c.l.b16 %v1414
        %v2048 = vunpack.c.h.b16 %v1414
        %v2049 = vunpack.c.l.b16 %v1415
        %v2050 = vunpack.c.h.b16 %v1415
        %v2051 = vunpack.c.l.b16 %v1416
        %v2052 = vunpack.c.h.b16 %v1416
        %v2053 = vunpack.c.l.b16 %v1417
        %v2054 = vunpack.c.h.b16 %v1417
        %v2055 = vunpack.c.l.b16 %v1418
        %v2056 = vunpack.c.h.b16 %v1418
        %v2057 = vunpack.c.l.b16 %v1419
        %v2058 = vunpack.c.h.b16 %v1419
        %v2059 = vunpack.c.l.b16 %v1420
        %v2060 = vunpack.c.h.b16 %v1420
        %v2061 = vunpack.c.l.b16 %v1421
        %v2062 = vunpack.c.h.b16 %v1421
        %v2063 = vunpack.c.l.b16 %v1422
        %v2064 = vunpack.c.h.b16 %v1422
        %v2065 = vunpack.c.l.b16 %v1423
        %v2066 = vunpack.c.h.b16 %v1423
        %v2067 = vunpack.c.l.b16 %v1424
        %v2068 = vunpack.c.h.b16 %v1424
        %v2069 = vunpack.c.l.b16 %v1425
        %v2070 = vunpack.c.h.b16 %v1425
        %v2071 = vunpack.c.l.b16 %v1426
        %v2072 = vunpack.c.h.b16 %v1426
        %v2073 = vunpack.c.l.b16 %v1427
        %v2074 = vunpack.c.h.b16 %v1427
        %v2075 = vunpack.c.l.b16 %v1428
        %v2076 = vunpack.c.h.b16 %v1428
        %v2077 = vunpack.c.l.b16 %v1429
        %v2078 = vunpack.c.h.b16 %v1429
        %v2079 = vunpack.c.l.b16 %v1430
        %v2080 = vunpack.c.h.b16 %v1430
        %v2081 = vunpack.c.l.b16 %v1431
        %v2082 = vunpack.c.h.b16 %v1431
        %v2083 = vunpack.c.l.b16 %v1432
        %v2084 = vunpack.c.h.b16 %v1432
        %v2085 = vunpack.c.l.b16 %v1433
        %v2086 = vunpack.c.h.b16 %v1433
        %v2087 = vunpack.c.l.b16 %v1434
        %v2088 = vunpack.c.h.b16 %v1434
        %v2089 = vunpack.c.l.b16 %v1435
        %v2090 = vunpack.c.h.b16 %v1435
        %v2091 = vunpack.c.l.b16 %v1436
        %v2092 = vunpack.c.h.b16 %v1436
        %v2093 = vunpack.c.l.b16 %v1437
        %v2094 = vunpack.c.h.b16 %v1437
        %v2095 = vunpack.c.l.b16 %v1438
        %v2096 = vunpack.c.h.b16 %v1438
        %v2097 = vunpack.c.l.b16 %v1439
        %v2098 = vunpack.c.h.b16 %v1439
        %v2099 = vunpack.c.l.b16 %v1440
        %v2100 = vunpack.c.h.b16 %v1440
        %v2101 = vunpack.c.l.b16 %v1441
        %v2102 = vunpack.c.h.b16 %v1441
        %v2103 = vunpack.c.l.b16 %v1442
        %v2104 = vunpack.c.h.b16 %v1442
        %v2105 = vunpack.c.l.b16 %v1443
        %v2106 = vunpack.c.h.b16 %v1443
        %v2107 = vunpack.c.l.b16 %v1444
        %v2108 = vunpack.c.h.b16 %v1444
        %v2109 = vunpack.c.l.b16 %v1445
        %v2110 = vunpack.c.h.b16 %v1445
        %v2111 = vunpack.c.l.b16 %v1446
        %v2112 = vunpack.c.h.b16 %v1446
        %v2113 = vunpack.c.l.b16 %v1447
        %v2114 = vunpack.c.h.b16 %v1447
        %v2115 = vunpack.c.l.b16 %v1448
        %v2116 = vunpack.c.h.b16 %v1448
        %v2117 = vunpack.c.l.b16 %v1449
        %v2118 = vunpack.c.h.b16 %v1449
        %v2119 = vunpack.c.l.b16 %v1450
        %v2120 = vunpack.c.h.b16 %v1450
        %v2121 = vunpack.c.l.b16 %v1451
        %v2122 = vunpack.c.h.b16 %v1451
        %v2123 = vunpack.c.l.b16 %v1452
        %v2124 = vunpack.c.h.b16 %v1452
        %v2125 = vunpack.c.l.b16 %v1453
        %v2126 = vunpack.c.h.b16 %v1453
        %v2127 = vunpack.c.l.b16 %v1454
        %v2128 = vunpack.c.h.b16 %v1454
        %v2129 = vunpack.c.l.b16 %v1455
        %v2130 = vunpack.c.h.b16 %v1455
        %v2131 = vunpack.c.l.b16 %v1456
        %v2132 = vunpack.c.h.b16 %v1456
        %v2133 = vunpack.c.l.b16 %v1457
        %v2134 = vunpack.c.h.b16 %v1457
        %v2135 = vunpack.c.l.b16 %v1458
        %v2136 = vunpack.c.h.b16 %v1458
        %v2137 = vunpack.c.l.b16 %v1459
        %v2138 = vunpack.c.h.b16 %v1459
        %v2139 = vunpack.c.l.b16 %v1460
        %v2140 = vunpack.c.h.b16 %v1460
        %v2141 = vpack.c.b16 %v2017, %v2013
        %v2142 = vpack.c.b16 %v2018, %v2014
        %v2143 = vpack.c.b16 %v2019, %v2015
        %v2144 = vpack.c.b16 %v2020, %v2016
        %v2145 = vpack.c.b16 %v2025, %v2021
        %v2146 = vpack.c.b16 %v2026, %v2022
        %v2147 = vpack.c.b16 %v2027, %v2023
        %v2148 = vpack.c.b16 %v2028, %v2024
        %v2149 = vpack.c.b16 %v2033, %v2029
        %v2150 = vpack.c.b16 %v2034, %v2030
        %v2151 = vpack.c.b16 %v2035, %v2031
        %v2152 = vpack.c.b16 %v2036, %v2032
        %v2153 = vpack.c.b16 %v2041, %v2037
        %v2154 = vpack.c.b16 %v2042, %v2038
        %v2155 = vpack.c.b16 %v2043, %v2039
        %v2156 = vpack.c.b16 %v2044, %v2040
        %v2157 = vpack.c.b16 %v2049, %v2045
        %v2158 = vpack.c.b16 %v2050, %v2046
        %v2159 = vpack.c.b16 %v2051, %v2047
        %v2160 = vpack.c.b16 %v2052, %v2048
        %v2161 = vpack.c.b16 %v2057, %v2053
        %v2162 = vpack.c.b16 %v2058, %v2054
        %v2163 = vpack.c.b16 %v2059, %v2055
        %v2164 = vpack.c.b16 %v2060, %v2056
        %v2165 = vpack.c.b16 %v2065, %v2061
        %v2166 = vpack.c.b16 %v2066, %v2062
        %v2167 = vpack.c.b16 %v2067, %v2063
        %v2168 = vpack.c.b16 %v2068, %v2064
        %v2169 = vpack.c.b16 %v2073, %v2069
        %v2170 = vpack.c.b16 %v2074, %v2070
        %v2171 = vpack.c.b16 %v2075, %v2071
        %v2172 = vpack.c.b16 %v2076, %v2072
        %v2173 = vpack.c.b16 %v2081, %v2077
        %v2174 = vpack.c.b16 %v2082, %v2078
        %v2175 = vpack.c.b16 %v2083, %v2079
        %v2176 = vpack.c.b16 %v2084, %v2080
        %v2177 = vpack.c.b16 %v2089, %v2085
        %v2178 = vpack.c.b16 %v2090, %v2086
        %v2179 = vpack.c.b16 %v2091, %v2087
        %v2180 = vpack.c.b16 %v2092, %v2088
        %v2181 = vpack.c.b16 %v2097, %v2093
        %v2182 = vpack.c.b16 %v2098, %v2094
        %v2183 = vpack.c.b16 %v2099, %v2095
        %v2184 = vpack.c.b16 %v2100, %v2096
        %v2185 = vpack.c.b16 %v2105, %v2101
        %v2186 = vpack.c.b16 %v2106, %v2102
        %v2187 = vpack.c.b16 %v2107, %v2103
        %v2188 = vpack.c.b16 %v2108, %v2104
        %v2189 = vpack.c.b16 %v2113, %v2109
        %v2190 = vpack.c.b16 %v2114, %v2110
        %v2191 = vpack.c.b16 %v2115, %v2111
        %v2192 = vpack.c.b16 %v2116, %v2112
        %v2193 = vpack.c.b16 %v2121, %v2117
        %v2194 = vpack.c.b16 %v2122, %v2118
        %v2195 = vpack.c.b16 %v2123, %v2119
        %v2196 = vpack.c.b16 %v2124, %v2120
        %v2197 = vpack.c.b16 %v2129, %v2125
        %v2198 = vpack.c.b16 %v2130, %v2126
        %v2199 = vpack.c.b16 %v2131, %v2127
        %v2200 = vpack.c.b16 %v2132, %v2128
        %v2201 = vpack.c.b16 %v2137, %v2133
        %v2202 = vpack.c.b16 %v2138, %v2134
        %v2203 = vpack.c.b16 %v2139, %v2135
        %v2204 = vpack.c.b16 %v2140, %v2136
        %2269 = vmatpush.bf16.msra.mxu0 %v2169
        %2270 = vmatpush.bf16.msra.mxu0 %v2165
        %2271 = vmatpush.bf16.msra.mxu0 %v2161
        %2272 = vmatpush.bf16.msra.mxu0 %v2157
        %2273 = vmatpush.bf16.msra.mxu0 %v2153
        %2274 = vmatpush.bf16.msra.mxu0 %v2149
        %2275 = vmatpush.bf16.msra.mxu0 %v2145
        %2276 = vmatpush.bf16.msra.mxu0 %v2141
        %2277 = vmatmul.bf16.gmra.mxu0 %v879
        %v2278 = vpop.f32.mrf.mxu0
        %v2279 = vadd.f32 %v1868, %v2278
        %v2280 = vpop.f32.mrf.mxu0
        %2281 = vdwg.mxu0
        %2282 = vmatpush.bf16.msra.mxu0 %v2201
        %2283 = vmatpush.bf16.msra.mxu0 %v2197
        %2284 = vmatpush.bf16.msra.mxu0 %v2193
        %2285 = vmatpush.bf16.msra.mxu0 %v2189
        %2286 = vmatpush.bf16.msra.mxu0 %v2185
        %2287 = vmatpush.bf16.msra.mxu0 %v2181
        %2288 = vmatpush.bf16.msra.mxu0 %v2177
        %2289 = vmatpush.bf16.msra.mxu0 %v2173
        %2290 = vmatmul.bf16.gmra.mxu0 %v880
        %v2291 = vpop.f32.mrf.mxu0
        %v2292 = vadd.f32 %v2279, %v2291
        %v2293 = vpop.f32.mrf.mxu0
        %2294 = vdwg.mxu0
        %2295 = vmatpush.bf16.msra.mxu0 %v2170
        %2296 = vmatpush.bf16.msra.mxu0 %v2166
        %2297 = vmatpush.bf16.msra.mxu0 %v2162
        %2298 = vmatpush.bf16.msra.mxu0 %v2158
        %2299 = vmatpush.bf16.msra.mxu0 %v2154
        %2300 = vmatpush.bf16.msra.mxu0 %v2150
        %2301 = vmatpush.bf16.msra.mxu0 %v2146
        %2302 = vmatpush.bf16.msra.mxu0 %v2142
        %2303 = vmatmul.bf16.gmra.mxu0 %v879
        %v2304 = vpop.f32.mrf.mxu0
        %v2305 = vadd.f32 %v1894, %v2304
        %v2306 = vpop.f32.mrf.mxu0
        %2307 = vdwg.mxu0
        %2308 = vmatpush.bf16.msra.mxu0 %v2202
        %2309 = vmatpush.bf16.msra.mxu0 %v2198
        %2310 = vmatpush.bf16.msra.mxu0 %v2194
        %2311 = vmatpush.bf16.msra.mxu0 %v2190
        %2312 = vmatpush.bf16.msra.mxu0 %v2186
        %2313 = vmatpush.bf16.msra.mxu0 %v2182
        %2314 = vmatpush.bf16.msra.mxu0 %v2178
        %2315 = vmatpush.bf16.msra.mxu0 %v2174
        %2316 = vmatmul.bf16.gmra.mxu0 %v880
        %v2317 = vpop.f32.mrf.mxu0
        %v2318 = vadd.f32 %v2305, %v2317
        %v2319 = vpop.f32.mrf.mxu0
        %2320 = vdwg.mxu0
        %2321 = vmatpush.bf16.msra.mxu0 %v2171
        %2322 = vmatpush.bf16.msra.mxu0 %v2167
        %2323 = vmatpush.bf16.msra.mxu0 %v2163
        %2324 = vmatpush.bf16.msra.mxu0 %v2159
        %2325 = vmatpush.bf16.msra.mxu0 %v2155
        %2326 = vmatpush.bf16.msra.mxu0 %v2151
        %2327 = vmatpush.bf16.msra.mxu0 %v2147
        %2328 = vmatpush.bf16.msra.mxu0 %v2143
        %2329 = vmatmul.bf16.gmra.mxu0 %v879
        %v2330 = vpop.f32.mrf.mxu0
        %v2331 = vadd.f32 %v1920, %v2330
        %v2332 = vpop.f32.mrf.mxu0
        %2333 = vdwg.mxu0
        %2334 = vmatpush.bf16.msra.mxu0 %v2203
        %2335 = vmatpush.bf16.msra.mxu0 %v2199
        %2336 = vmatpush.bf16.msra.mxu0 %v2195
        %2337 = vmatpush.bf16.msra.mxu0 %v2191
        %2338 = vmatpush.bf16.msra.mxu0 %v2187
        %2339 = vmatpush.bf16.msra.mxu0 %v2183
        %2340 = vmatpush.bf16.msra.mxu0 %v2179
        %2341 = vmatpush.bf16.msra.mxu0 %v2175
        %2342 = vmatmul.bf16.gmra.mxu0 %v880
        %v2343 = vpop.f32.mrf.mxu0
        %v2344 = vadd.f32 %v2331, %v2343
        %v2345 = vpop.f32.mrf.mxu0
        %2346 = vdwg.mxu0
        %2347 = vmatpush.bf16.msra.mxu0 %v2172
        %2348 = vmatpush.bf16.msra.mxu0 %v2168
        %2349 = vmatpush.bf16.msra.mxu0 %v2164
        %2350 = vmatpush.bf16.msra.mxu0 %v2160
        %2351 = vmatpush.bf16.msra.mxu0 %v2156
        %2352 = vmatpush.bf16.msra.mxu0 %v2152
        %2353 = vmatpush.bf16.msra.mxu0 %v2148
        %2354 = vmatpush.bf16.msra.mxu0 %v2144
        %2355 = vmatmul.bf16.gmra.mxu0 %v879
        %v2356 = vpop.f32.mrf.mxu0
        %v2357 = vadd.f32 %v1946, %v2356
        %v2358 = vpop.f32.mrf.mxu0
        %2359 = vdwg.mxu0
        %2360 = vmatpush.bf16.msra.mxu0 %v2204
        %2361 = vmatpush.bf16.msra.mxu0 %v2200
        %2362 = vmatpush.bf16.msra.mxu0 %v2196
        %2363 = vmatpush.bf16.msra.mxu0 %v2192
        %2364 = vmatpush.bf16.msra.mxu0 %v2188
        %2365 = vmatpush.bf16.msra.mxu0 %v2184
        %2366 = vmatpush.bf16.msra.mxu0 %v2180
        %2367 = vmatpush.bf16.msra.mxu0 %v2176
        %2368 = vmatmul.bf16.gmra.mxu0 %v880
        %v2369 = vpop.f32.mrf.mxu0
        %v2370 = vadd.f32 %v2357, %v2369
        %v2371 = vpop.f32.mrf.mxu0
        %2372 = vdwg.mxu0
        %v2373 = vld [vmem:[%s16] sm:$0xf]
        %v2375 = vperm.slane %v2373, 0
        %v2376 = vperm.slane %v2373, 1
        %v2377 = vperm.slane %v2373, 2
        %v2378 = vperm.slane %v2373, 3
        %v2383 = vadd.f32 %v2292, %v2375
        %v2384 = vadd.f32 %v2318, %v2376
        %v2385 = vadd.f32 %v2344, %v2377
        %v2386 = vadd.f32 %v2370, %v2378
        %v2387 = vmax.f32 %v2383, 0.0
        %v2388 = vmax.f32 %v2384, 0.0
        %v2389 = vmax.f32 %v2385, 0.0
        %v2390 = vmax.f32 %v2386, 0.0
        %v2391 = vpack.c.bf16 %v2387, %v2387
        %v2392 = vpack.c.bf16 %v2388, %v2388
        %v2393 = vpack.c.bf16 %v2389, %v2389
        %v2394 = vpack.c.bf16 %v2390, %v2390
        %v2395 = vld [vmem:[#allocation21] sm:$0xff]
        %v2396 = vld [vmem:[#allocation21 + $0x8] sm:$0xff]
        %v2397 = vld [vmem:[#allocation21 + $0x10] sm:$0xff]
        %v2398 = vld [vmem:[#allocation21 + $0x18] sm:$0xff]
        %v2399 = vld [vmem:[#allocation21 + $0x20] sm:$0xff]
        %v2400 = vld [vmem:[#allocation21 + $0x28] sm:$0xff]
        %v2401 = vld [vmem:[#allocation21 + $0x30] sm:$0xff]
        %v2402 = vld [vmem:[#allocation21 + $0x38] sm:$0xff]
        %v2403 = vld [vmem:[#allocation21 + $0x40] sm:$0xff]
        %v2404 = vld [vmem:[#allocation21 + $0x48] sm:$0xff]
        %v2405 = vld [vmem:[#allocation21 + $0x50] sm:$0xff]
        %v2406 = vld [vmem:[#allocation21 + $0x58] sm:$0xff]
        %v2407 = vld [vmem:[#allocation21 + $0x60] sm:$0xff]
        %v2408 = vld [vmem:[#allocation21 + $0x68] sm:$0xff]
        %v2409 = vld [vmem:[#allocation21 + $0x70] sm:$0xff]
        %v2410 = vld [vmem:[#allocation21 + $0x78] sm:$0xff]
        %v2411 = vld [vmem:[#allocation21 + $0x80] sm:$0xff]
        %v2412 = vld [vmem:[#allocation21 + $0x88] sm:$0xff]
        %v2413 = vld [vmem:[#allocation21 + $0x90] sm:$0xff]
        %v2414 = vld [vmem:[#allocation21 + $0x98] sm:$0xff]
        %v2415 = vld [vmem:[#allocation21 + $0xa0] sm:$0xff]
        %v2416 = vld [vmem:[#allocation21 + $0xa8] sm:$0xff]
        %v2417 = vld [vmem:[#allocation21 + $0xb0] sm:$0xff]
        %v2418 = vld [vmem:[#allocation21 + $0xb8] sm:$0xff]
        %v2419 = vld [vmem:[#allocation21 + $0xc0] sm:$0xff]
        %v2420 = vld [vmem:[#allocation21 + $0xc8] sm:$0xff]
        %v2421 = vld [vmem:[#allocation21 + $0xd0] sm:$0xff]
        %v2422 = vld [vmem:[#allocation21 + $0xd8] sm:$0xff]
        %v2423 = vld [vmem:[#allocation21 + $0xe0] sm:$0xff]
        %v2424 = vld [vmem:[#allocation21 + $0xe8] sm:$0xff]
        %v2425 = vld [vmem:[#allocation21 + $0xf0] sm:$0xff]
        %v2426 = vld [vmem:[#allocation21 + $0xf8] sm:$0xff]
        %v2427 = vld [vmem:[#allocation21 + $0x100] sm:$0xff]
        %v2428 = vld [vmem:[#allocation21 + $0x108] sm:$0xff]
        %v2429 = vld [vmem:[#allocation21 + $0x110] sm:$0xff]
        %v2430 = vld [vmem:[#allocation21 + $0x118] sm:$0xff]
        %v2431 = vld [vmem:[#allocation21 + $0x120] sm:$0xff]
        %v2432 = vld [vmem:[#allocation21 + $0x128] sm:$0xff]
        %v2433 = vld [vmem:[#allocation21 + $0x130] sm:$0xff]
        %v2434 = vld [vmem:[#allocation21 + $0x138] sm:$0xff]
        %v2435 = vld [vmem:[#allocation21 + $0x140] sm:$0xff]
        %v2436 = vld [vmem:[#allocation21 + $0x148] sm:$0xff]
        %v2437 = vld [vmem:[#allocation21 + $0x150] sm:$0xff]
        %v2438 = vld [vmem:[#allocation21 + $0x158] sm:$0xff]
        %v2439 = vld [vmem:[#allocation21 + $0x160] sm:$0xff]
        %v2440 = vld [vmem:[#allocation21 + $0x168] sm:$0xff]
        %v2441 = vld [vmem:[#allocation21 + $0x170] sm:$0xff]
        %v2442 = vld [vmem:[#allocation21 + $0x178] sm:$0xff]
        %v2443 = vld [vmem:[#allocation21 + $0x180] sm:$0xff]
        %v2444 = vld [vmem:[#allocation21 + $0x188] sm:$0xff]
        %v2445 = vld [vmem:[#allocation21 + $0x190] sm:$0xff]
        %v2446 = vld [vmem:[#allocation21 + $0x198] sm:$0xff]
        %v2447 = vld [vmem:[#allocation21 + $0x1a0] sm:$0xff]
        %v2448 = vld [vmem:[#allocation21 + $0x1a8] sm:$0xff]
        %v2449 = vld [vmem:[#allocation21 + $0x1b0] sm:$0xff]
        %v2450 = vld [vmem:[#allocation21 + $0x1b8] sm:$0xff]
        %v2451 = vld [vmem:[#allocation21 + $0x1c0] sm:$0xff]
        %v2452 = vld [vmem:[#allocation21 + $0x1c8] sm:$0xff]
        %v2453 = vld [vmem:[#allocation21 + $0x1d0] sm:$0xff]
        %v2454 = vld [vmem:[#allocation21 + $0x1d8] sm:$0xff]
        %v2455 = vld [vmem:[#allocation21 + $0x1e0] sm:$0xff]
        %v2456 = vld [vmem:[#allocation21 + $0x1e8] sm:$0xff]
        %v2457 = vld [vmem:[#allocation21 + $0x1f0] sm:$0xff]
        %v2458 = vld [vmem:[#allocation21 + $0x1f8] sm:$0xff]
        %v2459 = vld [vmem:[%s18] sm:$0x3]
        %v2461 = vperm.slane %v2459, 0
        %v2462 = vperm.slane %v2459, 1
        %v2529 = vunpack.c.l.b16 %v2395
        %v2530 = vunpack.c.h.b16 %v2395
        %v2531 = vunpack.c.l.b16 %v2396
        %v2532 = vunpack.c.h.b16 %v2396
        %v2533 = vunpack.c.l.b16 %v2397
        %v2534 = vunpack.c.h.b16 %v2397
        %v2535 = vunpack.c.l.b16 %v2398
        %v2536 = vunpack.c.h.b16 %v2398
        %v2537 = vunpack.c.l.b16 %v2399
        %v2538 = vunpack.c.h.b16 %v2399
        %v2539 = vunpack.c.l.b16 %v2400
        %v2540 = vunpack.c.h.b16 %v2400
        %v2541 = vunpack.c.l.b16 %v2401
        %v2542 = vunpack.c.h.b16 %v2401
        %v2543 = vunpack.c.l.b16 %v2402
        %v2544 = vunpack.c.h.b16 %v2402
        %v2545 = vunpack.c.l.b16 %v2403
        %v2546 = vunpack.c.h.b16 %v2403
        %v2547 = vunpack.c.l.b16 %v2404
        %v2548 = vunpack.c.h.b16 %v2404
        %v2549 = vunpack.c.l.b16 %v2405
        %v2550 = vunpack.c.h.b16 %v2405
        %v2551 = vunpack.c.l.b16 %v2406
        %v2552 = vunpack.c.h.b16 %v2406
        %v2553 = vunpack.c.l.b16 %v2407
        %v2554 = vunpack.c.h.b16 %v2407
        %v2555 = vunpack.c.l.b16 %v2408
        %v2556 = vunpack.c.h.b16 %v2408
        %v2557 = vunpack.c.l.b16 %v2409
        %v2558 = vunpack.c.h.b16 %v2409
        %v2559 = vunpack.c.l.b16 %v2410
        %v2560 = vunpack.c.h.b16 %v2410
        %v2561 = vunpack.c.l.b16 %v2411
        %v2562 = vunpack.c.h.b16 %v2411
        %v2563 = vunpack.c.l.b16 %v2412
        %v2564 = vunpack.c.h.b16 %v2412
        %v2565 = vunpack.c.l.b16 %v2413
        %v2566 = vunpack.c.h.b16 %v2413
        %v2567 = vunpack.c.l.b16 %v2414
        %v2568 = vunpack.c.h.b16 %v2414
        %v2569 = vunpack.c.l.b16 %v2415
        %v2570 = vunpack.c.h.b16 %v2415
        %v2571 = vunpack.c.l.b16 %v2416
        %v2572 = vunpack.c.h.b16 %v2416
        %v2573 = vunpack.c.l.b16 %v2417
        %v2574 = vunpack.c.h.b16 %v2417
        %v2575 = vunpack.c.l.b16 %v2418
        %v2576 = vunpack.c.h.b16 %v2418
        %v2577 = vunpack.c.l.b16 %v2419
        %v2578 = vunpack.c.h.b16 %v2419
        %v2579 = vunpack.c.l.b16 %v2420
        %v2580 = vunpack.c.h.b16 %v2420
        %v2581 = vunpack.c.l.b16 %v2421
        %v2582 = vunpack.c.h.b16 %v2421
        %v2583 = vunpack.c.l.b16 %v2422
        %v2584 = vunpack.c.h.b16 %v2422
        %v2585 = vunpack.c.l.b16 %v2423
        %v2586 = vunpack.c.h.b16 %v2423
        %v2587 = vunpack.c.l.b16 %v2424
        %v2588 = vunpack.c.h.b16 %v2424
        %v2589 = vunpack.c.l.b16 %v2425
        %v2590 = vunpack.c.h.b16 %v2425
        %v2591 = vunpack.c.l.b16 %v2426
        %v2592 = vunpack.c.h.b16 %v2426
        %v2593 = vunpack.c.l.b16 %v2427
        %v2594 = vunpack.c.h.b16 %v2427
        %v2595 = vunpack.c.l.b16 %v2428
        %v2596 = vunpack.c.h.b16 %v2428
        %v2597 = vunpack.c.l.b16 %v2429
        %v2598 = vunpack.c.h.b16 %v2429
        %v2599 = vunpack.c.l.b16 %v2430
        %v2600 = vunpack.c.h.b16 %v2430
        %v2601 = vunpack.c.l.b16 %v2431
        %v2602 = vunpack.c.h.b16 %v2431
        %v2603 = vunpack.c.l.b16 %v2432
        %v2604 = vunpack.c.h.b16 %v2432
        %v2605 = vunpack.c.l.b16 %v2433
        %v2606 = vunpack.c.h.b16 %v2433
        %v2607 = vunpack.c.l.b16 %v2434
        %v2608 = vunpack.c.h.b16 %v2434
        %v2609 = vunpack.c.l.b16 %v2435
        %v2610 = vunpack.c.h.b16 %v2435
        %v2611 = vunpack.c.l.b16 %v2436
        %v2612 = vunpack.c.h.b16 %v2436
        %v2613 = vunpack.c.l.b16 %v2437
        %v2614 = vunpack.c.h.b16 %v2437
        %v2615 = vunpack.c.l.b16 %v2438
        %v2616 = vunpack.c.h.b16 %v2438
        %v2617 = vunpack.c.l.b16 %v2439
        %v2618 = vunpack.c.h.b16 %v2439
        %v2619 = vunpack.c.l.b16 %v2440
        %v2620 = vunpack.c.h.b16 %v2440
        %v2621 = vunpack.c.l.b16 %v2441
        %v2622 = vunpack.c.h.b16 %v2441
        %v2623 = vunpack.c.l.b16 %v2442
        %v2624 = vunpack.c.h.b16 %v2442
        %v2625 = vunpack.c.l.b16 %v2443
        %v2626 = vunpack.c.h.b16 %v2443
        %v2627 = vunpack.c.l.b16 %v2444
        %v2628 = vunpack.c.h.b16 %v2444
        %v2629 = vunpack.c.l.b16 %v2445
        %v2630 = vunpack.c.h.b16 %v2445
        %v2631 = vunpack.c.l.b16 %v2446
        %v2632 = vunpack.c.h.b16 %v2446
        %v2633 = vunpack.c.l.b16 %v2447
        %v2634 = vunpack.c.h.b16 %v2447
        %v2635 = vunpack.c.l.b16 %v2448
        %v2636 = vunpack.c.h.b16 %v2448
        %v2637 = vunpack.c.l.b16 %v2449
        %v2638 = vunpack.c.h.b16 %v2449
        %v2639 = vunpack.c.l.b16 %v2450
        %v2640 = vunpack.c.h.b16 %v2450
        %v2641 = vunpack.c.l.b16 %v2451
        %v2642 = vunpack.c.h.b16 %v2451
        %v2643 = vunpack.c.l.b16 %v2452
        %v2644 = vunpack.c.h.b16 %v2452
        %v2645 = vunpack.c.l.b16 %v2453
        %v2646 = vunpack.c.h.b16 %v2453
        %v2647 = vunpack.c.l.b16 %v2454
        %v2648 = vunpack.c.h.b16 %v2454
        %v2649 = vunpack.c.l.b16 %v2455
        %v2650 = vunpack.c.h.b16 %v2455
        %v2651 = vunpack.c.l.b16 %v2456
        %v2652 = vunpack.c.h.b16 %v2456
        %v2653 = vunpack.c.l.b16 %v2457
        %v2654 = vunpack.c.h.b16 %v2457
        %v2655 = vunpack.c.l.b16 %v2458
        %v2656 = vunpack.c.h.b16 %v2458
        %v2657 = vpack.c.b16 %v2531, %v2529
        %v2658 = vpack.c.b16 %v2532, %v2530
        %v2659 = vpack.c.b16 %v2535, %v2533
        %v2660 = vpack.c.b16 %v2536, %v2534
        %v2661 = vpack.c.b16 %v2539, %v2537
        %v2662 = vpack.c.b16 %v2540, %v2538
        %v2663 = vpack.c.b16 %v2543, %v2541
        %v2664 = vpack.c.b16 %v2544, %v2542
        %v2665 = vpack.c.b16 %v2547, %v2545
        %v2666 = vpack.c.b16 %v2548, %v2546
        %v2667 = vpack.c.b16 %v2551, %v2549
        %v2668 = vpack.c.b16 %v2552, %v2550
        %v2669 = vpack.c.b16 %v2555, %v2553
        %v2670 = vpack.c.b16 %v2556, %v2554
        %v2671 = vpack.c.b16 %v2559, %v2557
        %v2672 = vpack.c.b16 %v2560, %v2558
        %v2673 = vpack.c.b16 %v2563, %v2561
        %v2674 = vpack.c.b16 %v2564, %v2562
        %v2675 = vpack.c.b16 %v2567, %v2565
        %v2676 = vpack.c.b16 %v2568, %v2566
        %v2677 = vpack.c.b16 %v2571, %v2569
        %v2678 = vpack.c.b16 %v2572, %v2570
        %v2679 = vpack.c.b16 %v2575, %v2573
        %v2680 = vpack.c.b16 %v2576, %v2574
        %v2681 = vpack.c.b16 %v2579, %v2577
        %v2682 = vpack.c.b16 %v2580, %v2578
        %v2683 = vpack.c.b16 %v2583, %v2581
        %v2684 = vpack.c.b16 %v2584, %v2582
        %v2685 = vpack.c.b16 %v2587, %v2585
        %v2686 = vpack.c.b16 %v2588, %v2586
        %v2687 = vpack.c.b16 %v2591, %v2589
        %v2688 = vpack.c.b16 %v2592, %v2590
        %v2689 = vpack.c.b16 %v2595, %v2593
        %v2690 = vpack.c.b16 %v2596, %v2594
        %v2691 = vpack.c.b16 %v2599, %v2597
        %v2692 = vpack.c.b16 %v2600, %v2598
        %v2693 = vpack.c.b16 %v2603, %v2601
        %v2694 = vpack.c.b16 %v2604, %v2602
        %v2695 = vpack.c.b16 %v2607, %v2605
        %v2696 = vpack.c.b16 %v2608, %v2606
        %v2697 = vpack.c.b16 %v2611, %v2609
        %v2698 = vpack.c.b16 %v2612, %v2610
        %v2699 = vpack.c.b16 %v2615, %v2613
        %v2700 = vpack.c.b16 %v2616, %v2614
        %v2701 = vpack.c.b16 %v2619, %v2617
        %v2702 = vpack.c.b16 %v2620, %v2618
        %v2703 = vpack.c.b16 %v2623, %v2621
        %v2704 = vpack.c.b16 %v2624, %v2622
        %v2705 = vpack.c.b16 %v2627, %v2625
        %v2706 = vpack.c.b16 %v2628, %v2626
        %v2707 = vpack.c.b16 %v2631, %v2629
        %v2708 = vpack.c.b16 %v2632, %v2630
        %v2709 = vpack.c.b16 %v2635, %v2633
        %v2710 = vpack.c.b16 %v2636, %v2634
        %v2711 = vpack.c.b16 %v2639, %v2637
        %v2712 = vpack.c.b16 %v2640, %v2638
        %v2713 = vpack.c.b16 %v2643, %v2641
        %v2714 = vpack.c.b16 %v2644, %v2642
        %v2715 = vpack.c.b16 %v2647, %v2645
        %v2716 = vpack.c.b16 %v2648, %v2646
        %v2717 = vpack.c.b16 %v2651, %v2649
        %v2718 = vpack.c.b16 %v2652, %v2650
        %v2719 = vpack.c.b16 %v2655, %v2653
        %v2720 = vpack.c.b16 %v2656, %v2654
        %2785 = vmatpush.bf16.msra.mxu0 %v2671
        %2786 = vmatpush.bf16.msra.mxu0 %v2669
        %2787 = vmatpush.bf16.msra.mxu0 %v2667
        %2788 = vmatpush.bf16.msra.mxu0 %v2665
        %2789 = vmatpush.bf16.msra.mxu0 %v2663
        %2790 = vmatpush.bf16.msra.mxu0 %v2661
        %2791 = vmatpush.bf16.msra.mxu0 %v2659
        %2792 = vmatpush.bf16.msra.mxu0 %v2657
        %2793 = vmatmul.bf16.gmra.mxu0 %v2391
        %v2794 = vpop.f32.mrf.mxu0
        %v2795 = vadd.f32 %v2461, %v2794
        %v2796 = vpop.f32.mrf.mxu0
        %2797 = vdwg.mxu0
        %2798 = vmatpush.bf16.msra.mxu0 %v2687
        %2799 = vmatpush.bf16.msra.mxu0 %v2685
        %2800 = vmatpush.bf16.msra.mxu0 %v2683
        %2801 = vmatpush.bf16.msra.mxu0 %v2681
        %2802 = vmatpush.bf16.msra.mxu0 %v2679
        %2803 = vmatpush.bf16.msra.mxu0 %v2677
        %2804 = vmatpush.bf16.msra.mxu0 %v2675
        %2805 = vmatpush.bf16.msra.mxu0 %v2673
        %2806 = vmatmul.bf16.gmra.mxu0 %v2392
        %v2807 = vpop.f32.mrf.mxu0
        %v2808 = vadd.f32 %v2795, %v2807
        %v2809 = vpop.f32.mrf.mxu0
        %2810 = vdwg.mxu0
        %2811 = vmatpush.bf16.msra.mxu0 %v2703
        %2812 = vmatpush.bf16.msra.mxu0 %v2701
        %2813 = vmatpush.bf16.msra.mxu0 %v2699
        %2814 = vmatpush.bf16.msra.mxu0 %v2697
        %2815 = vmatpush.bf16.msra.mxu0 %v2695
        %2816 = vmatpush.bf16.msra.mxu0 %v2693
        %2817 = vmatpush.bf16.msra.mxu0 %v2691
        %2818 = vmatpush.bf16.msra.mxu0 %v2689
        %2819 = vmatmul.bf16.gmra.mxu0 %v2393
        %v2820 = vpop.f32.mrf.mxu0
        %v2821 = vadd.f32 %v2808, %v2820
        %v2822 = vpop.f32.mrf.mxu0
        %2823 = vdwg.mxu0
        %2824 = vmatpush.bf16.msra.mxu0 %v2719
        %2825 = vmatpush.bf16.msra.mxu0 %v2717
        %2826 = vmatpush.bf16.msra.mxu0 %v2715
        %2827 = vmatpush.bf16.msra.mxu0 %v2713
        %2828 = vmatpush.bf16.msra.mxu0 %v2711
        %2829 = vmatpush.bf16.msra.mxu0 %v2709
        %2830 = vmatpush.bf16.msra.mxu0 %v2707
        %2831 = vmatpush.bf16.msra.mxu0 %v2705
        %2832 = vmatmul.bf16.gmra.mxu0 %v2394
        %v2833 = vpop.f32.mrf.mxu0
        %v2834 = vadd.f32 %v2821, %v2833
        %v2835 = vpop.f32.mrf.mxu0
        %2836 = vdwg.mxu0
        %2837 = vmatpush.bf16.msra.mxu0 %v2672
        %2838 = vmatpush.bf16.msra.mxu0 %v2670
        %2839 = vmatpush.bf16.msra.mxu0 %v2668
        %2840 = vmatpush.bf16.msra.mxu0 %v2666
        %2841 = vmatpush.bf16.msra.mxu0 %v2664
        %2842 = vmatpush.bf16.msra.mxu0 %v2662
        %2843 = vmatpush.bf16.msra.mxu0 %v2660
        %2844 = vmatpush.bf16.msra.mxu0 %v2658
        %2845 = vmatmul.bf16.gmra.mxu0 %v2391
        %v2846 = vpop.f32.mrf.mxu0
        %v2847 = vadd.f32 %v2462, %v2846
        %v2848 = vpop.f32.mrf.mxu0
        %2849 = vdwg.mxu0
        %2850 = vmatpush.bf16.msra.mxu0 %v2688
        %2851 = vmatpush.bf16.msra.mxu0 %v2686
        %2852 = vmatpush.bf16.msra.mxu0 %v2684
        %2853 = vmatpush.bf16.msra.mxu0 %v2682
        %2854 = vmatpush.bf16.msra.mxu0 %v2680
        %2855 = vmatpush.bf16.msra.mxu0 %v2678
        %2856 = vmatpush.bf16.msra.mxu0 %v2676
        %2857 = vmatpush.bf16.msra.mxu0 %v2674
        %2858 = vmatmul.bf16.gmra.mxu0 %v2392
        %v2859 = vpop.f32.mrf.mxu0
        %v2860 = vadd.f32 %v2847, %v2859
        %v2861 = vpop.f32.mrf.mxu0
        %2862 = vdwg.mxu0
        %2863 = vmatpush.bf16.msra.mxu0 %v2704
        %2864 = vmatpush.bf16.msra.mxu0 %v2702
        %2865 = vmatpush.bf16.msra.mxu0 %v2700
        %2866 = vmatpush.bf16.msra.mxu0 %v2698
        %2867 = vmatpush.bf16.msra.mxu0 %v2696
        %2868 = vmatpush.bf16.msra.mxu0 %v2694
        %2869 = vmatpush.bf16.msra.mxu0 %v2692
        %2870 = vmatpush.bf16.msra.mxu0 %v2690
        %2871 = vmatmul.bf16.gmra.mxu0 %v2393
        %v2872 = vpop.f32.mrf.mxu0
        %v2873 = vadd.f32 %v2860, %v2872
        %v2874 = vpop.f32.mrf.mxu0
        %2875 = vdwg.mxu0
        %2876 = vmatpush.bf16.msra.mxu0 %v2720
        %2877 = vmatpush.bf16.msra.mxu0 %v2718
        %2878 = vmatpush.bf16.msra.mxu0 %v2716
        %2879 = vmatpush.bf16.msra.mxu0 %v2714
        %2880 = vmatpush.bf16.msra.mxu0 %v2712
        %2881 = vmatpush.bf16.msra.mxu0 %v2710
        %2882 = vmatpush.bf16.msra.mxu0 %v2708
        %2883 = vmatpush.bf16.msra.mxu0 %v2706
        %2884 = vmatmul.bf16.gmra.mxu0 %v2394
        %v2885 = vpop.f32.mrf.mxu0
        %v2886 = vadd.f32 %v2873, %v2885
        %v2887 = vpop.f32.mrf.mxu0
        %2888 = vdwg.mxu0
        %v2889 = vsub.f32 0.0, %v1395
        %v2890 = vsub.f32 0.0, %v1396
        %v2891 = vmul.f32 %v2889, 1.442695
        %v2892 = vpow.pop %v2891
        %v2893 = vmul.f32 %v2890, 1.442695
        %v2894 = vpow.pop %v2893
        %v2895 = vadd.f32 %v2892, 1.0
        %v2896 = vadd.f32 %v2894, 1.0
        %v2897 = vrcp.pop %v2895
        %v2898 = vrcp.pop %v2896
        %v2899 = vmul.f32 %v2897, %v817
        %v2900 = vmul.f32 %v2898, %v818
        %s2901 = sld [smem:[#allocation2]]
        %v2902 = vstv %s2901
        %v2903 = vmul.f32 %v2899, %v2902
        %v2904 = vmul.f32 %v2900, %v2902
        %v2905 = vadd.f32 %v2903, %v2834
        %v2906 = vadd.f32 %v2904, %v2886
        %2907 = vst [vmem:[%s816] sm:$0xff] %v2905
        %2908 = vst [vmem:[%s816 + $0x8] sm:$0xff] %v2906
        %s2909 = sand.u32 %s462, 1
        %s2910 = scalar_lea.sflag [#allocation5], %s2909
        %s2911 = sand.u32 %s462, 1
        %s2912 = smul.addr %s2911, 16
        %s2913 = scalar_lea.vmem [#allocation23], %s2912
        // Predicated region
        $region145: #{tpu_custom_call.1} parent=95 // pred_check
          %p2914 = pneg %p472
        $region146: #{tpu_custom_call.1} parent=95 // pred_check_branch
          %2916 = sbr.rel (%p2914) target = $region148
        $region147: #{tpu_custom_call.1} parent=95 // pred_region
          %2918 = vsyncadd %s2910, 0
          %s2919 = smul.addr %s45, 2
          %s2920 = smul.addr %s2919, 8
          %s2921 = scalar_lea.hbm %s19, %s2920
          %s2923 = sshll.u32 %s2913, 4
          %s2924 = int_to_ptr.vmem [resolvable:$true] %s2923
          %s2925 = sshll.u32 %s2921, 4
          %s2926 = int_to_ptr.hbm [resolvable:$true] %s2925
          %2928 = dma.vmem_to_hbm [thread:$0]  %s2924, 256, %s2926, %s2910
        $region148: #{tpu_custom_call.1} parent=95 // pred_fallthru
          _
      $region96: #{tpu_custom_call.1} parent=5 // pred_fallthru
        _
      %p2929 = scmp.le.s32.totalorder 2, %s40
      // Predicated region
      $region149: #{tpu_custom_call.1} parent=5 // pred_check
        %p2930 = pneg %p2929
      $region150: #{tpu_custom_call.1} parent=5 // pred_check_branch
        %2932 = sbr.rel (%p2930) target = $region152
      $region151: #{tpu_custom_call.1} parent=5 // pred_region
        %s2933 = ssub.s32 %s40, 2
        // Predicated region
        $region153: #{tpu_custom_call.1} parent=151 // pred_check
          %p2934 = pneg %p478
        $region154: #{tpu_custom_call.1} parent=151 // pred_check_branch
          %2936 = sbr.rel (%p2934) target = $region156
        $region155: #{tpu_custom_call.1} parent=151 // pred_region
          %s2937 = sand.u32 %s463, 1
          %s2938 = scalar_lea.sflag [#allocation5], %s2937
          %s2939 = sand.u32 %s463, 1
          %s2940 = smul.addr %s2939, 16
          %s2941 = scalar_lea.vmem [#allocation23], %s2940
          %2943 = dma.done %s2938, 256
        $region156: #{tpu_custom_call.1} parent=151 // pred_fallthru
          _
      $region152: #{tpu_custom_call.1} parent=5 // pred_fallthru
        _
    $region6: #{tpu_custom_call.1} parent=1 // loop_footer
      %s44 = sadd.s32 1, %s40
    $region7: #{tpu_custom_call.1} parent=1 // loop_footer_branch
      %39 = sbr.rel target = $region3
    $region8: #{tpu_custom_call.1} parent=1 // loop_exit
      _
    %2944 = vsyncpa [#allocation4], 1
    %s2945 = scalar_lea.sflag [#allocation4], 1
    %2946 = vsyncpa %s2945, 1
    %2947 = vsyncpa [#allocation7], 1
    %s2948 = scalar_lea.sflag [#allocation7], 1
    %2949 = vsyncpa %s2948, 1
    %2950 = vsyncpa [#allocation10], 1
    %2951 = vsyncpa [#allocation13], 1
    %2952 = vsyncpa [#allocation16], 1
    %2953 = vsyncpa [#allocation19], 1
    %2954 = vsyncpa [#allocation22], 1
    %2955 = vsyncpa [#allocation5], 1
    %s2956 = scalar_lea.sflag [#allocation5], 1
    %2957 = vsyncpa %s2956, 1

// kernel: tpu_custom_call.1
$region0: #{tpu_custom_call.1}
  #allocation0 [shape = 'u32[]', space=smem, size = 0x4, offset = 0x4, fixed_abs, tag = 'smem constant byte address 0x4 - core index']
  #allocation1 [shape = 'u32[72,128]{1,0:T(1,128)}', space=vmem, size = 0x9000, scoped, tag = 'internal scratch']
  #allocation2 [shape = 'f32[1]{0:T(128)S(6)}', space=smem, size = 0x200, scoped, tag = 'scoped memory for tpu_custom_call.1']
  %s0 = inlined_call_operand.<no memory space> [shape: f32[1], index: 0, kind: input, shape index: {}]
  %s1 = inlined_call_operand.hbm [shape: f32[16,256], index: 1, kind: input, shape index: {}]
  %s2 = inlined_call_operand.hbm [shape: f32[16,256], index: 2, kind: input, shape index: {}]
  %s3 = inlined_call_operand.vmem [shape: f32[1,256], index: 3, kind: input, shape index: {}]
  %s4 = inlined_call_operand.hbm [shape: f32[1,256], index: 4, kind: input, shape index: {}]
  %s5 = inlined_call_operand.hbm [shape: f32[1,256], index: 5, kind: input, shape index: {}]
  %s6 = inlined_call_operand.hbm [shape: f32[1,256], index: 6, kind: input, shape index: {}]
  %s7 = inlined_call_operand.hbm [shape: f32[1,256], index: 7, kind: input, shape index: {}]
  %s8 = inlined_call_operand.vmem [shape: f32[1,256], index: 8, kind: input, shape index: {}]
  %s9 = inlined_call_operand.hbm [shape: f32[1,256], index: 9, kind: input, shape index: {}]
  %s10 = inlined_call_operand.vmem [shape: f32[1,256], index: 10, kind: input, shape index: {}]
  %s11 = inlined_call_operand.hbm [shape: bf16[256,256], index: 11, kind: input, shape index: {}]
  %s12 = inlined_call_operand.hbm [shape: bf16[256,256], index: 12, kind: input, shape index: {}]
  %s13 = inlined_call_operand.vmem [shape: f32[1,256], index: 13, kind: input, shape index: {}]
  %s14 = inlined_call_operand.hbm [shape: bf16[256,512], index: 14, kind: input, shape index: {}]
  %s15 = inlined_call_operand.hbm [shape: bf16[256,512], index: 15, kind: input, shape index: {}]
  %s16 = inlined_call_operand.vmem [shape: f32[1,512], index: 16, kind: input, shape index: {}]
  %s17 = inlined_call_operand.hbm [shape: bf16[512,256], index: 17, kind: input, shape index: {}]
  %s18 = inlined_call_operand.vmem [shape: f32[1,256], index: 18, kind: input, shape index: {}]
  %s19 = inlined_call_operand.hbm [shape: f32[16,256], index: 19, kind: output, shape index: {}]
  %s20 = sld [smem:[#allocation0]]
  $region157: #{tpu_custom_call.1} parent=0
    _
  %s22 = ssub.s32 1, %s20
  %s23 = scalar_select 0, %s22, %s20
  %24 = sst [smem:[#allocation2]] %s0
  $region1: #{tpu_custom_call.1} parent=0
    #allocation3 [shape = 'u8[16384]{0}', space=vmem, size = 0x4000, scoped, tag = 'input window, operand 1']
    #allocation4 [shape = 's32[2]{0}', space=sflag, size = 0x8, scoped, tag = 'scoped memory for tpu_custom_call.1']
    #allocation5 [shape = 's32[2]{0}', space=sflag, size = 0x8, scoped, tag = 'scoped memory for tpu_custom_call.1']
    #allocation6 [shape = 'u8[16384]{0}', space=vmem, size = 0x4000, scoped, tag = 'input window, operand 2']
    #allocation7 [shape = 's32[2]{0}', space=sflag, size = 0x8, scoped, tag = 'scoped memory for tpu_custom_call.1']
    #allocation8 [shape = 'u8[1024]{0}', space=vmem, size = 0x400, scoped, tag = 'input window, operand 4, single buffered']
    #allocation9 [shape = 'u8[1024]{0}', space=vmem, size = 0x400, scoped, tag = 'input window, operand 5, single buffered']
    #allocation10 [shape = 's32[1]{0}', space=sflag, size = 0x4, scoped, tag = 'scoped memory for tpu_custom_call.1']
    #allocation11 [shape = 'u8[1024]{0}', space=vmem, size = 0x400, scoped, tag = 'input window, operand 6, single buffered']
    #allocation12 [shape = 'u8[1024]{0}', space=vmem, size = 0x400, scoped, tag = 'input window, operand 7, single buffered']
    #allocation13 [shape = 's32[1]{0}', space=sflag, size = 0x4, scoped, tag = 'scoped memory for tpu_custom_call.1']
    #allocation14 [shape = 'u8[1024]{0}', space=vmem, size = 0x400, scoped, tag = 'input window, operand 9, single buffered']
    #allocation15 [shape = 'u8[131072]{0}', space=vmem, size = 0x20000, scoped, tag = 'input window, operand 11, single buffered']
    #allocation16 [shape = 's32[1]{0}', space=sflag, size = 0x4, scoped, tag = 'scoped memory for tpu_custom_call.1']
    #allocation17 [shape = 'u8[131072]{0}', space=vmem, size = 0x20000, scoped, tag = 'input window, operand 12, single buffered']
    #allocation18 [shape = 'u8[262144]{0}', space=vmem, size = 0x40000, scoped, tag = 'input window, operand 14, single buffered']
    #allocation19 [shape = 's32[1]{0}', space=sflag, size = 0x4, scoped, tag = 'scoped memory for tpu_custom_call.1']
    #allocation20 [shape = 'u8[262144]{0}', space=vmem, size = 0x40000, scoped, tag = 'input window, operand 15, single buffered']
    #allocation21 [shape = 'u8[262144]{0}', space=vmem, size = 0x40000, scoped, tag = 'input window, operand 17, single buffered']
    #allocation22 [shape = 's32[1]{0}', space=sflag, size = 0x4, scoped, tag = 'scoped memory for tpu_custom_call.1']
    #allocation23 [shape = 'u8[16384]{0}', space=vmem, size = 0x4000, scoped, tag = 'output window, operand 0']
    %25 = vsyncpa [#allocation4], 0
    %s26 = scalar_lea.sflag [#allocation4], 1
    %27 = vsyncpa %s26, 0
    %28 = vsyncpa [#allocation7], 0
    %s29 = scalar_lea.sflag [#allocation7], 1
    %30 = vsyncpa %s29, 0
    %31 = vsyncpa [#allocation10], 0
    %32 = vsyncpa [#allocation13], 0
    %33 = vsyncpa [#allocation16], 0
    %34 = vsyncpa [#allocation19], 0
    %35 = vsyncpa [#allocation22], 0
    %36 = vsyncpa [#allocation5], 0
    %s37 = scalar_lea.sflag [#allocation5], 1
    %38 = vsyncpa %s37, 0
    loop: start=0, step=1, limit=4
    $region2: #{tpu_custom_call.1} parent=1 // loop_pre_header
      _
    $region3: #{tpu_custom_call.1} parent=1 // loop_header
      %s40 = sphi 0, %s44
      %p41 = scmp.ge.s32.totalorder %s40, 4
      %s48 = sphi 0, %s48
      %s50 = sphi 0, %s48
      %s51 = sphi 0, %s50
      %s65 = sphi 0, %s51
      %s71 = sphi 0, %s73
      %s74 = sphi 0, %s71
      %s75 = sphi 0, %s74
      %s91 = sphi 0, %s75
      %s97 = sphi 0, %s99
      %s100 = sphi 0, %s97
      %s101 = sphi 0, %s100
      %s117 = sphi 0, %s101
      %s121 = sphi 0, %s121
      %s123 = sphi 0, %s121
      %s124 = sphi 0, %s123
      %s138 = sphi 0, %s124
      %s142 = sphi 0, %s142
      %s144 = sphi 0, %s142
      %s145 = sphi 0, %s144
      %s159 = sphi 0, %s145
      %s163 = sphi 0, %s163
      %s165 = sphi 0, %s163
      %s166 = sphi 0, %s165
      %s180 = sphi 0, %s166
      %s184 = sphi 0, %s184
      %s186 = sphi 0, %s184
      %s187 = sphi 0, %s186
      %s201 = sphi 0, %s187
      %s205 = sphi 0, %s205
      %s207 = sphi 0, %s205
      %s208 = sphi 0, %s207
      %s222 = sphi 0, %s208
      %s226 = sphi 0, %s226
      %s228 = sphi 0, %s226
      %s229 = sphi 0, %s228
      %s243 = sphi 0, %s229
      %s247 = sphi 0, %s247
      %s249 = sphi 0, %s247
      %s250 = sphi 0, %s249
      %s264 = sphi 0, %s250
      %s268 = sphi 0, %s268
      %s270 = sphi 0, %s268
      %s271 = sphi 0, %s270
      %s285 = sphi 0, %s271
      %s289 = sphi 0, %s289
      %s291 = sphi 0, %s289
      %s292 = sphi 0, %s291
      %s306 = sphi 0, %s292
      %s310 = sphi 0, %s310
      %s312 = sphi 0, %s310
      %s313 = sphi 0, %s312
      %s327 = sphi 0, %s313
      %s331 = sphi 0, %s331
      %s333 = sphi 0, %s331
      %s334 = sphi 0, %s333
      %s348 = sphi 0, %s334
      %s352 = sphi 0, %s352
      %s354 = sphi 0, %s352
      %s355 = sphi 0, %s354
      %s369 = sphi 0, %s355
      %s373 = sphi 0, %s373
      %s375 = sphi 0, %s373
      %s376 = sphi 0, %s375
      %s390 = sphi 0, %s376
      %s394 = sphi 0, %s394
      %s396 = sphi 0, %s394
      %s397 = sphi 0, %s396
      %s411 = sphi 0, %s397
      %s415 = sphi 0, %s415
      %s417 = sphi 0, %s415
      %s418 = sphi 0, %s417
      %s432 = sphi 0, %s418
      %s436 = sphi 0, %s436
      %s438 = sphi 0, %s436
      %s439 = sphi 0, %s438
      %s453 = sphi 0, %s439
      %s459 = sphi 0, %s461
      %s462 = sphi 0, %s459
      %s463 = sphi 0, %s462
      %s479 = sphi 0, %s463
    $region4: #{tpu_custom_call.1} parent=1 // loop_header_branch
      %43 = sbr.rel (%p41) target = $region8
    $region5: #{tpu_custom_call.1} parent=1 // loop_body
      %s45 = ssub.s32 %s40, 1
      %s46 = ssub.s32 %s40, 2
      %s47 = sadd.s32 %s40, 1
      %s49 = sadd.s32 %s48, 1
      %p52 = scmp.eq.s32.totalorder %s40, 1
      %p53 = scmp.ne.s32.totalorder %s48, %s50
      %p54 = scmp.eq.s32.totalorder %s40, 0
      %p55 = por %p53, %p54
      %p56 = scmp.ne.s32.totalorder %s48, %s50
      %p57 = scmp.eq.s32.totalorder %s45, 1
      %p58 = por %p56, %p57
      %p59 = scmp.ne.s32.totalorder %s50, %s51
      %p60 = scmp.eq.s32.totalorder %s45, 0
      %p61 = por %p59, %p60
      %p62 = scmp.ne.s32.totalorder %s50, %s51
      %p63 = scmp.eq.s32.totalorder %s46, 1
      %p64 = por %p62, %p63
      %p66 = scmp.ne.s32.totalorder %s51, %s65
      %p67 = scmp.eq.s32.totalorder %s46, 0
      %p68 = por %p66, %p67
      %s69 = ssub.s32 %s40, %s47
      %p70 = scmp.eq.s32.totalorder %s69, 0
      %s72 = sadd.s32 %s71, 1
      %s73 = scalar_select %p70, %s71, %s72
      %p76 = pneg %p70
      %p77 = scmp.eq.s32.totalorder %s40, 1
      %p78 = por %p76, %p77
      %p79 = scmp.ne.s32.totalorder %s71, %s74
      %p80 = scmp.eq.s32.totalorder %s40, 0
      %p81 = por %p79, %p80
      %p82 = scmp.ne.s32.totalorder %s71, %s74
      %p83 = scmp.eq.s32.totalorder %s45, 1
      %p84 = por %p82, %p83
      %p85 = scmp.ne.s32.totalorder %s74, %s75
      %p86 = scmp.eq.s32.totalorder %s45, 0
      %p87 = por %p85, %p86
      %p88 = scmp.ne.s32.totalorder %s74, %s75
      %p89 = scmp.eq.s32.totalorder %s46, 1
      %p90 = por %p88, %p89
      %p92 = scmp.ne.s32.totalorder %s75, %s91
      %p93 = scmp.eq.s32.totalorder %s46, 0
      %p94 = por %p92, %p93
      %s95 = ssub.s32 %s40, %s47
      %p96 = scmp.eq.s32.totalorder %s95, 0
      %s98 = sadd.s32 %s97, 1
      %s99 = scalar_select %p96, %s97, %s98
      %p102 = pneg %p96
      %p103 = scmp.eq.s32.totalorder %s40, 1
      %p104 = por %p102, %p103
      %p105 = scmp.ne.s32.totalorder %s97, %s100
      %p106 = scmp.eq.s32.totalorder %s40, 0
      %p107 = por %p105, %p106
      %p108 = scmp.ne.s32.totalorder %s97, %s100
      %p109 = scmp.eq.s32.totalorder %s45, 1
      %p110 = por %p108, %p109
      %p111 = scmp.ne.s32.totalorder %s100, %s101
      %p112 = scmp.eq.s32.totalorder %s45, 0
      %p113 = por %p111, %p112
      %p114 = scmp.ne.s32.totalorder %s100, %s101
      %p115 = scmp.eq.s32.totalorder %s46, 1
      %p116 = por %p114, %p115
      %p118 = scmp.ne.s32.totalorder %s101, %s117
      %p119 = scmp.eq.s32.totalorder %s46, 0
      %p120 = por %p118, %p119
      %s122 = sadd.s32 %s121, 1
      %p125 = scmp.eq.s32.totalorder %s40, 1
      %p126 = scmp.ne.s32.totalorder %s121, %s123
      %p127 = scmp.eq.s32.totalorder %s40, 0
      %p128 = por %p126, %p127
      %p129 = scmp.ne.s32.totalorder %s121, %s123
      %p130 = scmp.eq.s32.totalorder %s45, 1
      %p131 = por %p129, %p130
      %p132 = scmp.ne.s32.totalorder %s123, %s124
      %p133 = scmp.eq.s32.totalorder %s45, 0
      %p134 = por %p132, %p133
      %p135 = scmp.ne.s32.totalorder %s123, %s124
      %p136 = scmp.eq.s32.totalorder %s46, 1
      %p137 = por %p135, %p136
      %p139 = scmp.ne.s32.totalorder %s124, %s138
      %p140 = scmp.eq.s32.totalorder %s46, 0
      %p141 = por %p139, %p140
      %s143 = sadd.s32 %s142, 1
      %p146 = scmp.eq.s32.totalorder %s40, 1
      %p147 = scmp.ne.s32.totalorder %s142, %s144
      %p148 = scmp.eq.s32.totalorder %s40, 0
      %p149 = por %p147, %p148
      %p150 = scmp.ne.s32.totalorder %s142, %s144
      %p151 = scmp.eq.s32.totalorder %s45, 1
      %p152 = por %p150, %p151
      %p153 = scmp.ne.s32.totalorder %s144, %s145
      %p154 = scmp.eq.s32.totalorder %s45, 0
      %p155 = por %p153, %p154
      %p156 = scmp.ne.s32.totalorder %s144, %s145
      %p157 = scmp.eq.s32.totalorder %s46, 1
      %p158 = por %p156, %p157
      %p160 = scmp.ne.s32.totalorder %s145, %s159
      %p161 = scmp.eq.s32.totalorder %s46, 0
      %p162 = por %p160, %p161
      %s164 = sadd.s32 %s163, 1
      %p167 = scmp.eq.s32.totalorder %s40, 1
      %p168 = scmp.ne.s32.totalorder %s163, %s165
      %p169 = scmp.eq.s32.totalorder %s40, 0
      %p170 = por %p168, %p169
      %p171 = scmp.ne.s32.totalorder %s163, %s165
      %p172 = scmp.eq.s32.totalorder %s45, 1
      %p173 = por %p171, %p172
      %p174 = scmp.ne.s32.totalorder %s165, %s166
      %p175 = scmp.eq.s32.totalorder %s45, 0
      %p176 = por %p174, %p175
      %p177 = scmp.ne.s32.totalorder %s165, %s166
      %p178 = scmp.eq.s32.totalorder %s46, 1
      %p179 = por %p177, %p178
      %p181 = scmp.ne.s32.totalorder %s166, %s180
      %p182 = scmp.eq.s32.totalorder %s46, 0
      %p183 = por %p181, %p182
      %s185 = sadd.s32 %s184, 1
      %p188 = scmp.eq.s32.totalorder %s40, 1
      %p189 = scmp.ne.s32.totalorder %s184, %s186
      %p190 = scmp.eq.s32.totalorder %s40, 0
      %p191 = por %p189, %p190
      %p192 = scmp.ne.s32.totalorder %s184, %s186
      %p193 = scmp.eq.s32.totalorder %s45, 1
      %p194 = por %p192, %p193
      %p195 = scmp.ne.s32.totalorder %s186, %s187
      %p196 = scmp.eq.s32.totalorder %s45, 0
      %p197 = por %p195, %p196
      %p198 = scmp.ne.s32.totalorder %s186, %s187
      %p199 = scmp.eq.s32.totalorder %s46, 1
      %p200 = por %p198, %p199
      %p202 = scmp.ne.s32.totalorder %s187, %s201
      %p203 = scmp.eq.s32.totalorder %s46, 0
      %p204 = por %p202, %p203
      %s206 = sadd.s32 %s205, 1
      %p209 = scmp.eq.s32.totalorder %s40, 1
      %p210 = scmp.ne.s32.totalorder %s205, %s207
      %p211 = scmp.eq.s32.totalorder %s40, 0
      %p212 = por %p210, %p211
      %p213 = scmp.ne.s32.totalorder %s205, %s207
      %p214 = scmp.eq.s32.totalorder %s45, 1
      %p215 = por %p213, %p214
      %p216 = scmp.ne.s32.totalorder %s207, %s208
      %p217 = scmp.eq.s32.totalorder %s45, 0
      %p218 = por %p216, %p217
      %p219 = scmp.ne.s32.totalorder %s207, %s208
      %p220 = scmp.eq.s32.totalorder %s46, 1
      %p221 = por %p219, %p220
      %p223 = scmp.ne.s32.totalorder %s208, %s222
      %p224 = scmp.eq.s32.totalorder %s46, 0
      %p225 = por %p223, %p224
      %s227 = sadd.s32 %s226, 1
      %p230 = scmp.eq.s32.totalorder %s40, 1
      %p231 = scmp.ne.s32.totalorder %s226, %s228
      %p232 = scmp.eq.s32.totalorder %s40, 0
      %p233 = por %p231, %p232
      %p234 = scmp.ne.s32.totalorder %s226, %s228
      %p235 = scmp.eq.s32.totalorder %s45, 1
      %p236 = por %p234, %p235
      %p237 = scmp.ne.s32.totalorder %s228, %s229
      %p238 = scmp.eq.s32.totalorder %s45, 0
      %p239 = por %p237, %p238
      %p240 = scmp.ne.s32.totalorder %s228, %s229
      %p241 = scmp.eq.s32.totalorder %s46, 1
      %p242 = por %p240, %p241
      %p244 = scmp.ne.s32.totalorder %s229, %s243
      %p245 = scmp.eq.s32.totalorder %s46, 0
      %p246 = por %p244, %p245
      %s248 = sadd.s32 %s247, 1
      %p251 = scmp.eq.s32.totalorder %s40, 1
      %p252 = scmp.ne.s32.totalorder %s247, %s249
      %p253 = scmp.eq.s32.totalorder %s40, 0
      %p254 = por %p252, %p253
      %p255 = scmp.ne.s32.totalorder %s247, %s249
      %p256 = scmp.eq.s32.totalorder %s45, 1
      %p257 = por %p255, %p256
      %p258 = scmp.ne.s32.totalorder %s249, %s250
      %p259 = scmp.eq.s32.totalorder %s45, 0
      %p260 = por %p258, %p259
      %p261 = scmp.ne.s32.totalorder %s249, %s250
      %p262 = scmp.eq.s32.totalorder %s46, 1
      %p263 = por %p261, %p262
      %p265 = scmp.ne.s32.totalorder %s250, %s264
      %p266 = scmp.eq.s32.totalorder %s46, 0
      %p267 = por %p265, %p266
      %s269 = sadd.s32 %s268, 1
      %p272 = scmp.eq.s32.totalorder %s40, 1
      %p273 = scmp.ne.s32.totalorder %s268, %s270
      %p274 = scmp.eq.s32.totalorder %s40, 0
      %p275 = por %p273, %p274
      %p276 = scmp.ne.s32.totalorder %s268, %s270
      %p277 = scmp.eq.s32.totalorder %s45, 1
      %p278 = por %p276, %p277
      %p279 = scmp.ne.s32.totalorder %s270, %s271
      %p280 = scmp.eq.s32.totalorder %s45, 0
      %p281 = por %p279, %p280
      %p282 = scmp.ne.s32.totalorder %s270, %s271
      %p283 = scmp.eq.s32.totalorder %s46, 1
      %p284 = por %p282, %p283
      %p286 = scmp.ne.s32.totalorder %s271, %s285
      %p287 = scmp.eq.s32.totalorder %s46, 0
      %p288 = por %p286, %p287
      %s290 = sadd.s32 %s289, 1
      %p293 = scmp.eq.s32.totalorder %s40, 1
      %p294 = scmp.ne.s32.totalorder %s289, %s291
      %p295 = scmp.eq.s32.totalorder %s40, 0
      %p296 = por %p294, %p295
      %p297 = scmp.ne.s32.totalorder %s289, %s291
      %p298 = scmp.eq.s32.totalorder %s45, 1
      %p299 = por %p297, %p298
      %p300 = scmp.ne.s32.totalorder %s291, %s292
      %p301 = scmp.eq.s32.totalorder %s45, 0
      %p302 = por %p300, %p301
      %p303 = scmp.ne.s32.totalorder %s291, %s292
      %p304 = scmp.eq.s32.totalorder %s46, 1
      %p305 = por %p303, %p304
      %p307 = scmp.ne.s32.totalorder %s292, %s306
      %p308 = scmp.eq.s32.totalorder %s46, 0
      %p309 = por %p307, %p308
      %s311 = sadd.s32 %s310, 1
      %p314 = scmp.eq.s32.totalorder %s40, 1
      %p315 = scmp.ne.s32.totalorder %s310, %s312
      %p316 = scmp.eq.s32.totalorder %s40, 0
      %p317 = por %p315, %p316
      %p318 = scmp.ne.s32.totalorder %s310, %s312
      %p319 = scmp.eq.s32.totalorder %s45, 1
      %p320 = por %p318, %p319
      %p321 = scmp.ne.s32.totalorder %s312, %s313
      %p322 = scmp.eq.s32.totalorder %s45, 0
      %p323 = por %p321, %p322
      %p324 = scmp.ne.s32.totalorder %s312, %s313
      %p325 = scmp.eq.s32.totalorder %s46, 1
      %p326 = por %p324, %p325
      %p328 = scmp.ne.s32.totalorder %s313, %s327
      %p329 = scmp.eq.s32.totalorder %s46, 0
      %p330 = por %p328, %p329
      %s332 = sadd.s32 %s331, 1
      %p335 = scmp.eq.s32.totalorder %s40, 1
      %p336 = scmp.ne.s32.totalorder %s331, %s333
      %p337 = scmp.eq.s32.totalorder %s40, 0
      %p338 = por %p336, %p337
      %p339 = scmp.ne.s32.totalorder %s331, %s333
      %p340 = scmp.eq.s32.totalorder %s45, 1
      %p341 = por %p339, %p340
      %p342 = scmp.ne.s32.totalorder %s333, %s334
      %p343 = scmp.eq.s32.totalorder %s45, 0
      %p344 = por %p342, %p343
      %p345 = scmp.ne.s32.totalorder %s333, %s334
      %p346 = scmp.eq.s32.totalorder %s46, 1
      %p347 = por %p345, %p346
      %p349 = scmp.ne.s32.totalorder %s334, %s348
      %p350 = scmp.eq.s32.totalorder %s46, 0
      %p351 = por %p349, %p350
      %s353 = sadd.s32 %s352, 1
      %p356 = scmp.eq.s32.totalorder %s40, 1
      %p357 = scmp.ne.s32.totalorder %s352, %s354
      %p358 = scmp.eq.s32.totalorder %s40, 0
      %p359 = por %p357, %p358
      %p360 = scmp.ne.s32.totalorder %s352, %s354
      %p361 = scmp.eq.s32.totalorder %s45, 1
      %p362 = por %p360, %p361
      %p363 = scmp.ne.s32.totalorder %s354, %s355
      %p364 = scmp.eq.s32.totalorder %s45, 0
      %p365 = por %p363, %p364
      %p366 = scmp.ne.s32.totalorder %s354, %s355
      %p367 = scmp.eq.s32.totalorder %s46, 1
      %p368 = por %p366, %p367
      %p370 = scmp.ne.s32.totalorder %s355, %s369
      %p371 = scmp.eq.s32.totalorder %s46, 0
      %p372 = por %p370, %p371
      %s374 = sadd.s32 %s373, 1
      %p377 = scmp.eq.s32.totalorder %s40, 1
      %p378 = scmp.ne.s32.totalorder %s373, %s375
      %p379 = scmp.eq.s32.totalorder %s40, 0
      %p380 = por %p378, %p379
      %p381 = scmp.ne.s32.totalorder %s373, %s375
      %p382 = scmp.eq.s32.totalorder %s45, 1
      %p383 = por %p381, %p382
      %p384 = scmp.ne.s32.totalorder %s375, %s376
      %p385 = scmp.eq.s32.totalorder %s45, 0
      %p386 = por %p384, %p385
      %p387 = scmp.ne.s32.totalorder %s375, %s376
      %p388 = scmp.eq.s32.totalorder %s46, 1
      %p389 = por %p387, %p388
      %p391 = scmp.ne.s32.totalorder %s376, %s390
      %p392 = scmp.eq.s32.totalorder %s46, 0
      %p393 = por %p391, %p392
      %s395 = sadd.s32 %s394, 1
      %p398 = scmp.eq.s32.totalorder %s40, 1
      %p399 = scmp.ne.s32.totalorder %s394, %s396
      %p400 = scmp.eq.s32.totalorder %s40, 0
      %p401 = por %p399, %p400
      %p402 = scmp.ne.s32.totalorder %s394, %s396
      %p403 = scmp.eq.s32.totalorder %s45, 1
      %p404 = por %p402, %p403
      %p405 = scmp.ne.s32.totalorder %s396, %s397
      %p406 = scmp.eq.s32.totalorder %s45, 0
      %p407 = por %p405, %p406
      %p408 = scmp.ne.s32.totalorder %s396, %s397
      %p409 = scmp.eq.s32.totalorder %s46, 1
      %p410 = por %p408, %p409
      %p412 = scmp.ne.s32.totalorder %s397, %s411
      %p413 = scmp.eq.s32.totalorder %s46, 0
      %p414 = por %p412, %p413
      %s416 = sadd.s32 %s415, 1
      %p419 = scmp.eq.s32.totalorder %s40, 1
      %p420 = scmp.ne.s32.totalorder %s415, %s417
      %p421 = scmp.eq.s32.totalorder %s40, 0
      %p422 = por %p420, %p421
      %p423 = scmp.ne.s32.totalorder %s415, %s417
      %p424 = scmp.eq.s32.totalorder %s45, 1
      %p425 = por %p423, %p424
      %p426 = scmp.ne.s32.totalorder %s417, %s418
      %p427 = scmp.eq.s32.totalorder %s45, 0
      %p428 = por %p426, %p427
      %p429 = scmp.ne.s32.totalorder %s417, %s418
      %p430 = scmp.eq.s32.totalorder %s46, 1
      %p431 = por %p429, %p430
      %p433 = scmp.ne.s32.totalorder %s418, %s432
      %p434 = scmp.eq.s32.totalorder %s46, 0
      %p435 = por %p433, %p434
      %s437 = sadd.s32 %s436, 1
      %p440 = scmp.eq.s32.totalorder %s40, 1
      %p441 = scmp.ne.s32.totalorder %s436, %s438
      %p442 = scmp.eq.s32.totalorder %s40, 0
      %p443 = por %p441, %p442
      %p444 = scmp.ne.s32.totalorder %s436, %s438
      %p445 = scmp.eq.s32.totalorder %s45, 1
      %p446 = por %p444, %p445
      %p447 = scmp.ne.s32.totalorder %s438, %s439
      %p448 = scmp.eq.s32.totalorder %s45, 0
      %p449 = por %p447, %p448
      %p450 = scmp.ne.s32.totalorder %s438, %s439
      %p451 = scmp.eq.s32.totalorder %s46, 1
      %p452 = por %p450, %p451
      %p454 = scmp.ne.s32.totalorder %s439, %s453
      %p455 = scmp.eq.s32.totalorder %s46, 0
      %p456 = por %p454, %p455
      %s457 = ssub.s32 %s40, %s47
      %p458 = scmp.eq.s32.totalorder %s457, 0
      %s460 = sadd.s32 %s459, 1
      %s461 = scalar_select %p458, %s459, %s460
      %p464 = pneg %p458
      %p465 = scmp.eq.s32.totalorder %s40, 1
      %p466 = por %p464, %p465
      %p467 = scmp.ne.s32.totalorder %s459, %s462
      %p468 = scmp.eq.s32.totalorder %s40, 0
      %p469 = por %p467, %p468
      %p470 = scmp.ne.s32.totalorder %s459, %s462
      %p471 = scmp.eq.s32.totalorder %s45, 1
      %p472 = por %p470, %p471
      %p473 = scmp.ne.s32.totalorder %s462, %s463
      %p474 = scmp.eq.s32.totalorder %s45, 0
      %p475 = por %p473, %p474
      %p476 = scmp.ne.s32.totalorder %s462, %s463
      %p477 = scmp.eq.s32.totalorder %s46, 1
      %p478 = por %p476, %p477
      %p480 = scmp.ne.s32.totalorder %s463, %s479
      %p481 = scmp.eq.s32.totalorder %s46, 0
      %p482 = por %p480, %p481
      %p483 = scmp.le.s32.totalorder 1, %s40
      %p484 = scmp.lt.s32.totalorder %s40, 3
      %p485 = pnand %p483, %p484
      %p486 = pneg %p485
      // Predicated region
      $region9: #{tpu_custom_call.1} parent=5 // pred_check
        _
      $region10: #{tpu_custom_call.1} parent=5 // pred_check_branch
        %488 = sbr.rel (%p485) target = $region12
      $region11: #{tpu_custom_call.1} parent=5 // pred_region
        %s489 = ssub.s32 %s40, 1
        // Predicated region
        $region13: #{tpu_custom_call.1} parent=11 // pred_check
          %p490 = pneg %p61
        $region14: #{tpu_custom_call.1} parent=11 // pred_check_branch
          %492 = sbr.rel (%p490) target = $region16
        $region15: #{tpu_custom_call.1} parent=11 // pred_region
          _
        $region16: #{tpu_custom_call.1} parent=11 // pred_fallthru
          _
        // Predicated region
        $region17: #{tpu_custom_call.1} parent=11 // pred_check
          %p493 = pneg %p134
        $region18: #{tpu_custom_call.1} parent=11 // pred_check_branch
          %495 = sbr.rel (%p493) target = $region20
        $region19: #{tpu_custom_call.1} parent=11 // pred_region
          _
        $region20: #{tpu_custom_call.1} parent=11 // pred_fallthru
          _
        // Predicated region
        $region21: #{tpu_custom_call.1} parent=11 // pred_check
          %p496 = pneg %p155
        $region22: #{tpu_custom_call.1} parent=11 // pred_check_branch
          %498 = sbr.rel (%p496) target = $region24
        $region23: #{tpu_custom_call.1} parent=11 // pred_region
          %500 = vsyncadd [#allocation7], 0
          %s502 = sshll.u32 %s4, 4
          %s503 = int_to_ptr.hbm [resolvable:$true] %s502
          %s504 = sshll.u32 [#allocation8], 4
          %s505 = int_to_ptr.vmem [resolvable:$true] %s504
          %507 = dma.hbm_to_vmem [thread:$0]  %s503, 32, %s505, [#allocation7]
        $region24: #{tpu_custom_call.1} parent=11 // pred_fallthru
          _
        // Predicated region
        $region25: #{tpu_custom_call.1} parent=11 // pred_check
          %p508 = pneg %p176
        $region26: #{tpu_custom_call.1} parent=11 // pred_check_branch
          %510 = sbr.rel (%p508) target = $region28
        $region27: #{tpu_custom_call.1} parent=11 // pred_region
          %512 = vsyncadd [#allocation10], 0
          %s514 = sshll.u32 %s5, 4
          %s515 = int_to_ptr.hbm [resolvable:$true] %s514
          %s516 = sshll.u32 [#allocation9], 4
          %s517 = int_to_ptr.vmem [resolvable:$true] %s516
          %519 = dma.hbm_to_vmem [thread:$0]  %s515, 32, %s517, [#allocation10]
        $region28: #{tpu_custom_call.1} parent=11 // pred_fallthru
          _
        // Predicated region
        $region29: #{tpu_custom_call.1} parent=11 // pred_check
          %p520 = pneg %p197
        $region30: #{tpu_custom_call.1} parent=11 // pred_check_branch
          %522 = sbr.rel (%p520) target = $region32
        $region31: #{tpu_custom_call.1} parent=11 // pred_region
          %524 = vsyncadd [#allocation10], 0
          %s526 = sshll.u32 %s6, 4
          %s527 = int_to_ptr.hbm [resolvable:$true] %s526
          %s528 = sshll.u32 [#allocation11], 4
          %s529 = int_to_ptr.vmem [resolvable:$true] %s528
          %531 = dma.hbm_to_vmem [thread:$0]  %s527, 32, %s529, [#allocation10]
        $region32: #{tpu_custom_call.1} parent=11 // pred_fallthru
          _
        // Predicated region
        $region33: #{tpu_custom_call.1} parent=11 // pred_check
          %p532 = pneg %p218
        $region34: #{tpu_custom_call.1} parent=11 // pred_check_branch
          %534 = sbr.rel (%p532) target = $region36
        $region35: #{tpu_custom_call.1} parent=11 // pred_region
          %536 = vsyncadd [#allocation13], 0
          %s538 = sshll.u32 %s7, 4
          %s539 = int_to_ptr.hbm [resolvable:$true] %s538
          %s540 = sshll.u32 [#allocation12], 4
          %s541 = int_to_ptr.vmem [resolvable:$true] %s540
          %543 = dma.hbm_to_vmem [thread:$0]  %s539, 32, %s541, [#allocation13]
        $region36: #{tpu_custom_call.1} parent=11 // pred_fallthru
          _
        // Predicated region
        $region37: #{tpu_custom_call.1} parent=11 // pred_check
          %p544 = pneg %p239
        $region38: #{tpu_custom_call.1} parent=11 // pred_check_branch
          %546 = sbr.rel (%p544) target = $region40
        $region39: #{tpu_custom_call.1} parent=11 // pred_region
          _
        $region40: #{tpu_custom_call.1} parent=11 // pred_fallthru
          _
        // Predicated region
        $region41: #{tpu_custom_call.1} parent=11 // pred_check
          %p547 = pneg %p260
        $region42: #{tpu_custom_call.1} parent=11 // pred_check_branch
          %549 = sbr.rel (%p547) target = $region44
        $region43: #{tpu_custom_call.1} parent=11 // pred_region
          %551 = vsyncadd [#allocation13], 0
          %s553 = sshll.u32 %s9, 4
          %s554 = int_to_ptr.hbm [resolvable:$true] %s553
          %s555 = sshll.u32 [#allocation14], 4
          %s556 = int_to_ptr.vmem [resolvable:$true] %s555
          %558 = dma.hbm_to_vmem [thread:$0]  %s554, 32, %s556, [#allocation13]
        $region44: #{tpu_custom_call.1} parent=11 // pred_fallthru
          _
        // Predicated region
        $region45: #{tpu_custom_call.1} parent=11 // pred_check
          %p559 = pneg %p281
        $region46: #{tpu_custom_call.1} parent=11 // pred_check_branch
          %561 = sbr.rel (%p559) target = $region48
        $region47: #{tpu_custom_call.1} parent=11 // pred_region
          _
        $region48: #{tpu_custom_call.1} parent=11 // pred_fallthru
          _
        // Predicated region
        $region49: #{tpu_custom_call.1} parent=11 // pred_check
          %p562 = pneg %p302
        $region50: #{tpu_custom_call.1} parent=11 // pred_check_branch
          %564 = sbr.rel (%p562) target = $region52
        $region51: #{tpu_custom_call.1} parent=11 // pred_region
          %566 = vsyncadd [#allocation16], 0
          %s567 = sshll.u32 %s11, 4
          %s568 = int_to_ptr.hbm [resolvable:$true] %s567
          %s569 = sshll.u32 [#allocation15], 4
          %s570 = int_to_ptr.vmem [resolvable:$true] %s569
          %575 = dma.hbm_to_vmem [thread:$0]  %s568, 4096, %s570, [#allocation16], 128, 128, 8
        $region52: #{tpu_custom_call.1} parent=11 // pred_fallthru
          _
        // Predicated region
        $region53: #{tpu_custom_call.1} parent=11 // pred_check
          %p576 = pneg %p323
        $region54: #{tpu_custom_call.1} parent=11 // pred_check_branch
          %578 = sbr.rel (%p576) target = $region56
        $region55: #{tpu_custom_call.1} parent=11 // pred_region
          %580 = vsyncadd [#allocation16], 0
          %s581 = sshll.u32 %s12, 4
          %s582 = int_to_ptr.hbm [resolvable:$true] %s581
          %s583 = sshll.u32 [#allocation17], 4
          %s584 = int_to_ptr.vmem [resolvable:$true] %s583
          %589 = dma.hbm_to_vmem [thread:$0]  %s582, 4096, %s584, [#allocation16], 128, 128, 8
        $region56: #{tpu_custom_call.1} parent=11 // pred_fallthru
          _
        // Predicated region
        $region57: #{tpu_custom_call.1} parent=11 // pred_check
          %p590 = pneg %p344
        $region58: #{tpu_custom_call.1} parent=11 // pred_check_branch
          %592 = sbr.rel (%p590) target = $region60
        $region59: #{tpu_custom_call.1} parent=11 // pred_region
          _
        $region60: #{tpu_custom_call.1} parent=11 // pred_fallthru
          _
        // Predicated region
        $region61: #{tpu_custom_call.1} parent=11 // pred_check
          %p593 = pneg %p365
        $region62: #{tpu_custom_call.1} parent=11 // pred_check_branch
          %595 = sbr.rel (%p593) target = $region64
        $region63: #{tpu_custom_call.1} parent=11 // pred_region
          %597 = vsyncadd [#allocation19], 0
          %s598 = sshll.u32 %s14, 4
          %s599 = int_to_ptr.hbm [resolvable:$true] %s598
          %s600 = sshll.u32 [#allocation18], 4
          %s601 = int_to_ptr.vmem [resolvable:$true] %s600
          %606 = dma.hbm_to_vmem [thread:$0]  %s599, 8192, %s601, [#allocation19], 256, 256, 16
        $region64: #{tpu_custom_call.1} parent=11 // pred_fallthru
          _
        // Predicated region
        $region65: #{tpu_custom_call.1} parent=11 // pred_check
          %p607 = pneg %p386
        $region66: #{tpu_custom_call.1} parent=11 // pred_check_branch
          %609 = sbr.rel (%p607) target = $region68
        $region67: #{tpu_custom_call.1} parent=11 // pred_region
          %611 = vsyncadd [#allocation19], 0
          %s612 = sshll.u32 %s15, 4
          %s613 = int_to_ptr.hbm [resolvable:$true] %s612
          %s614 = sshll.u32 [#allocation20], 4
          %s615 = int_to_ptr.vmem [resolvable:$true] %s614
          %620 = dma.hbm_to_vmem [thread:$0]  %s613, 8192, %s615, [#allocation19], 256, 256, 16
        $region68: #{tpu_custom_call.1} parent=11 // pred_fallthru
          _
        // Predicated region
        $region69: #{tpu_custom_call.1} parent=11 // pred_check
          %p621 = pneg %p407
        $region70: #{tpu_custom_call.1} parent=11 // pred_check_branch
          %623 = sbr.rel (%p621) target = $region72
        $region71: #{tpu_custom_call.1} parent=11 // pred_region
          _
        $region72: #{tpu_custom_call.1} parent=11 // pred_fallthru
          _
        // Predicated region
        $region73: #{tpu_custom_call.1} parent=11 // pred_check
          %p624 = pneg %p428
        $region74: #{tpu_custom_call.1} parent=11 // pred_check_branch
          %626 = sbr.rel (%p624) target = $region76
        $region75: #{tpu_custom_call.1} parent=11 // pred_region
          %628 = vsyncadd [#allocation22], 0
          %s629 = sshll.u32 %s17, 4
          %s630 = int_to_ptr.hbm [resolvable:$true] %s629
          %s631 = sshll.u32 [#allocation21], 4
          %s632 = int_to_ptr.vmem [resolvable:$true] %s631
          %637 = dma.hbm_to_vmem [thread:$0]  %s630, 8192, %s632, [#allocation22], 128, 128, 8
        $region76: #{tpu_custom_call.1} parent=11 // pred_fallthru
          _
        // Predicated region
        $region77: #{tpu_custom_call.1} parent=11 // pred_check
          %p638 = pneg %p449
        $region78: #{tpu_custom_call.1} parent=11 // pred_check_branch
          %640 = sbr.rel (%p638) target = $region80
        $region79: #{tpu_custom_call.1} parent=11 // pred_region
          _
        $region80: #{tpu_custom_call.1} parent=11 // pred_fallthru
          _
      $region12: #{tpu_custom_call.1} parent=5 // pred_fallthru
        _
      %p641 = scmp.lt.s32.totalorder %s40, 2
      // Predicated region
      $region81: #{tpu_custom_call.1} parent=5 // pred_check
        %p642 = pneg %p641
      $region82: #{tpu_custom_call.1} parent=5 // pred_check_branch
        %644 = sbr.rel (%p642) target = $region84
      $region83: #{tpu_custom_call.1} parent=5 // pred_region
        // Predicated region
        $region85: #{tpu_custom_call.1} parent=83 // pred_check
          %p645 = pneg %p81
        $region86: #{tpu_custom_call.1} parent=83 // pred_check_branch
          %647 = sbr.rel (%p645) target = $region88
        $region87: #{tpu_custom_call.1} parent=83 // pred_region
          %s648 = sand.u32 %s71, 1
          %s649 = scalar_lea.sflag [#allocation4], %s648
          %s650 = sand.u32 %s71, 1
          %s651 = smul.addr %s650, 16
          %s652 = scalar_lea.vmem [#allocation3], %s651
          %654 = vsyncadd %s649, 0
          %s655 = smul.addr %s40, 2
          %s656 = smul.addr %s655, 8
          %s657 = scalar_lea.hbm %s1, %s656
          %s659 = sshll.u32 %s657, 4
          %s660 = int_to_ptr.hbm [resolvable:$true] %s659
          %s661 = sshll.u32 %s652, 4
          %s662 = int_to_ptr.vmem [resolvable:$true] %s661
          %664 = dma.hbm_to_vmem [thread:$0]  %s660, 256, %s662, %s649
        $region88: #{tpu_custom_call.1} parent=83 // pred_fallthru
          _
        // Predicated region
        $region89: #{tpu_custom_call.1} parent=83 // pred_check
          %p665 = pneg %p107
        $region90: #{tpu_custom_call.1} parent=83 // pred_check_branch
          %667 = sbr.rel (%p665) target = $region92
        $region91: #{tpu_custom_call.1} parent=83 // pred_region
          %s668 = sand.u32 %s40, 1
          %s669 = scalar_lea.sflag [#allocation7], %s668
          %s670 = sand.u32 %s97, 1
          %s671 = smul.addr %s670, 16
          %s672 = scalar_lea.vmem [#allocation6], %s671
          %674 = vsyncadd %s669, 0
          %s675 = smul.addr %s40, 2
          %s676 = smul.addr %s675, 8
          %s677 = scalar_lea.hbm %s2, %s676
          %s679 = sshll.u32 %s677, 4
          %s680 = int_to_ptr.hbm [resolvable:$true] %s679
          %s681 = sshll.u32 %s672, 4
          %s682 = int_to_ptr.vmem [resolvable:$true] %s681
          %684 = dma.hbm_to_vmem [thread:$0]  %s680, 256, %s682, %s669
        $region92: #{tpu_custom_call.1} parent=83 // pred_fallthru
          _
      $region84: #{tpu_custom_call.1} parent=5 // pred_fallthru
        _
      %p685 = scmp.le.s32.totalorder 1, %s40
      %p686 = scmp.lt.s32.totalorder %s40, 3
      %p687 = pnand %p685, %p686
      %p688 = pneg %p687
      // Predicated region
      $region93: #{tpu_custom_call.1} parent=5 // pred_check
        _
      $region94: #{tpu_custom_call.1} parent=5 // pred_check_branch
        %690 = sbr.rel (%p687) target = $region96
      $region95: #{tpu_custom_call.1} parent=5 // pred_region
        %s691 = ssub.s32 %s40, 1
        %s692 = sand.u32 %s74, 1
        %s693 = scalar_lea.sflag [#allocation4], %s692
        %s694 = sand.u32 %s74, 1
        %s695 = smul.addr %s694, 16
        %s696 = scalar_lea.vmem [#allocation3], %s695
        // Predicated region
        $region97: #{tpu_custom_call.1} parent=95 // pred_check
          %p697 = pneg %p87
        $region98: #{tpu_custom_call.1} parent=95 // pred_check_branch
          %699 = sbr.rel (%p697) target = $region100
        $region99: #{tpu_custom_call.1} parent=95 // pred_region
          %701 = dma.done %s693, 256
        $region100: #{tpu_custom_call.1} parent=95 // pred_fallthru
          _
        %s702 = sand.u32 %s45, 1
        %s703 = scalar_lea.sflag [#allocation7], %s702
        %s704 = sand.u32 %s100, 1
        %s705 = smul.addr %s704, 16
        %s706 = scalar_lea.vmem [#allocation6], %s705
        // Predicated region
        $region101: #{tpu_custom_call.1} parent=95 // pred_check
          %p707 = pneg %p113
        $region102: #{tpu_custom_call.1} parent=95 // pred_check_branch
          %709 = sbr.rel (%p707) target = $region104
        $region103: #{tpu_custom_call.1} parent=95 // pred_region
          %711 = dma.done %s703, 256
        $region104: #{tpu_custom_call.1} parent=95 // pred_fallthru
          _
        // Predicated region
        $region105: #{tpu_custom_call.1} parent=95 // pred_check
          %p712 = pneg %p155
        $region106: #{tpu_custom_call.1} parent=95 // pred_check_branch
          %714 = sbr.rel (%p712) target = $region108
        $region107: #{tpu_custom_call.1} parent=95 // pred_region
          %716 = dma.done [#allocation7], 32
        $region108: #{tpu_custom_call.1} parent=95 // pred_fallthru
          _
        // Predicated region
        $region109: #{tpu_custom_call.1} parent=95 // pred_check
          %p717 = pneg %p176
        $region110: #{tpu_custom_call.1} parent=95 // pred_check_branch
          %719 = sbr.rel (%p717) target = $region112
        $region111: #{tpu_custom_call.1} parent=95 // pred_region
          %721 = dma.done [#allocation10], 32
        $region112: #{tpu_custom_call.1} parent=95 // pred_fallthru
          _
        // Predicated region
        $region113: #{tpu_custom_call.1} parent=95 // pred_check
          %p722 = pneg %p197
        $region114: #{tpu_custom_call.1} parent=95 // pred_check_branch
          %724 = sbr.rel (%p722) target = $region116
        $region115: #{tpu_custom_call.1} parent=95 // pred_region
          %726 = dma.done [#allocation10], 32
        $region116: #{tpu_custom_call.1} parent=95 // pred_fallthru
          _
        // Predicated region
        $region117: #{tpu_custom_call.1} parent=95 // pred_check
          %p727 = pneg %p218
        $region118: #{tpu_custom_call.1} parent=95 // pred_check_branch
          %729 = sbr.rel (%p727) target = $region120
        $region119: #{tpu_custom_call.1} parent=95 // pred_region
          %731 = dma.done [#allocation13], 32
        $region120: #{tpu_custom_call.1} parent=95 // pred_fallthru
          _
        // Predicated region
        $region121: #{tpu_custom_call.1} parent=95 // pred_check
          %p732 = pneg %p260
        $region122: #{tpu_custom_call.1} parent=95 // pred_check_branch
          %734 = sbr.rel (%p732) target = $region124
        $region123: #{tpu_custom_call.1} parent=95 // pred_region
          %736 = dma.done [#allocation13], 32
        $region124: #{tpu_custom_call.1} parent=95 // pred_fallthru
          _
        // Predicated region
        $region125: #{tpu_custom_call.1} parent=95 // pred_check
          %p737 = pneg %p302
        $region126: #{tpu_custom_call.1} parent=95 // pred_check_branch
          %739 = sbr.rel (%p737) target = $region128
        $region127: #{tpu_custom_call.1} parent=95 // pred_region
          %741 = dma.done [#allocation16], 4096
        $region128: #{tpu_custom_call.1} parent=95 // pred_fallthru
          _
        // Predicated region
        $region129: #{tpu_custom_call.1} parent=95 // pred_check
          %p742 = pneg %p323
        $region130: #{tpu_custom_call.1} parent=95 // pred_check_branch
          %744 = sbr.rel (%p742) target = $region132
        $region131: #{tpu_custom_call.1} parent=95 // pred_region
          %746 = dma.done [#allocation16], 4096
        $region132: #{tpu_custom_call.1} parent=95 // pred_fallthru
          _
        // Predicated region
        $region133: #{tpu_custom_call.1} parent=95 // pred_check
          %p747 = pneg %p365
        $region134: #{tpu_custom_call.1} parent=95 // pred_check_branch
          %749 = sbr.rel (%p747) target = $region136
        $region135: #{tpu_custom_call.1} parent=95 // pred_region
          %751 = dma.done [#allocation19], 8192
        $region136: #{tpu_custom_call.1} parent=95 // pred_fallthru
          _
        // Predicated region
        $region137: #{tpu_custom_call.1} parent=95 // pred_check
          %p752 = pneg %p386
        $region138: #{tpu_custom_call.1} parent=95 // pred_check_branch
          %754 = sbr.rel (%p752) target = $region140
        $region139: #{tpu_custom_call.1} parent=95 // pred_region
          %756 = dma.done [#allocation19], 8192
        $region140: #{tpu_custom_call.1} parent=95 // pred_fallthru
          _
        // Predicated region
        $region141: #{tpu_custom_call.1} parent=95 // pred_check
          %p757 = pneg %p428
        $region142: #{tpu_custom_call.1} parent=95 // pred_check_branch
          %759 = sbr.rel (%p757) target = $region144
        $region143: #{tpu_custom_call.1} parent=95 // pred_region
          %761 = dma.done [#allocation22], 8192
        $region144: #{tpu_custom_call.1} parent=95 // pred_fallthru
          _
        %p762 = pneg %p61
        %p763 = pneg %p58
        %s764 = sand.u32 %s74, 1
        %s765 = scalar_lea.sflag [#allocation4], %s764
        %s766 = sand.u32 %s74, 1
        %s767 = smul.addr %s766, 16
        %s768 = scalar_lea.vmem [#allocation3], %s767
        %p769 = pneg %p87
        %p770 = pneg %p84
        %s771 = sand.u32 %s45, 1
        %s772 = scalar_lea.sflag [#allocation7], %s771
        %s773 = sand.u32 %s100, 1
        %s774 = smul.addr %s773, 16
        %s775 = scalar_lea.vmem [#allocation6], %s774
        %p776 = pneg %p113
        %p777 = pneg %p110
        %p778 = pneg %p134
        %p779 = pneg %p131
        %p780 = pneg %p155
        %p781 = pneg %p152
        %p782 = pneg %p176
        %p783 = pneg %p173
        %p784 = pneg %p197
        %p785 = pneg %p194
        %p786 = pneg %p218
        %p787 = pneg %p215
        %p788 = pneg %p239
        %p789 = pneg %p236
        %p790 = pneg %p260
        %p791 = pneg %p257
        %p792 = pneg %p281
        %p793 = pneg %p278
        %p794 = pneg %p302
        %p795 = pneg %p299
        %p796 = pneg %p323
        %p797 = pneg %p320
        %p798 = pneg %p344
        %p799 = pneg %p341
        %p800 = pneg %p365
        %p801 = pneg %p362
        %p802 = pneg %p386
        %p803 = pneg %p383
        %p804 = pneg %p407
        %p805 = pneg %p404
        %p806 = pneg %p428
        %p807 = pneg %p425
        %p808 = pneg %p449
        %p809 = pneg %p446
        %p810 = pneg %p475
        %p811 = pneg %p472
        %s812 = sand.u32 %s462, 1
        %s813 = scalar_lea.sflag [#allocation5], %s812
        %s814 = sand.u32 %s462, 1
        %s815 = smul.addr %s814, 16
        %s816 = scalar_lea.vmem [#allocation23], %s815
        %v817 = vld [vmem:[%s706] sm:$0xff]
        %v818 = vld [vmem:[%s706 + $0x8] sm:$0xff]
        %v819 = vld [vmem:[%s696] sm:$0xff]
        %v820 = vld [vmem:[%s696 + $0x8] sm:$0xff]
        %v821 = vld [vmem:[%s3] sm:$0x3]
        %v823 = vperm.slane %v821, 0
        %v824 = vperm.slane %v821, 1
        %v827 = vmul.f32 %v817, %v823
        %v828 = vmul.f32 %v818, %v824
        %v829 = vld [vmem:[#allocation8] sm:$0x3]
        %v831 = vperm.slane %v829, 0
        %v832 = vperm.slane %v829, 1
        %v835 = vadd.f32 %v827, %v831
        %v836 = vadd.f32 %v828, %v832
        %v837 = vmax.f32 %v835, 0.0
        %v838 = vmax.f32 %v836, 0.0
        %v839 = vpack.c.bf16 %v837, %v837
        %v840 = vpack.c.bf16 %v838, %v838
        %v841 = vld [vmem:[#allocation9] sm:$0x3]
        %v843 = vperm.slane %v841, 0
        %v844 = vperm.slane %v841, 1
        %v847 = vmul.f32 %v819, %v843
        %v848 = vmul.f32 %v820, %v844
        %v849 = vld [vmem:[#allocation11] sm:$0x3]
        %v851 = vperm.slane %v849, 0
        %v852 = vperm.slane %v849, 1
        %v855 = vadd.f32 %v847, %v851
        %v856 = vadd.f32 %v848, %v852
        %v857 = vmax.f32 %v855, 0.0
        %v858 = vmax.f32 %v856, 0.0
        %v859 = vpack.c.bf16 %v857, %v857
        %v860 = vpack.c.bf16 %v858, %v858
        %v861 = vld [vmem:[#allocation12] sm:$0x3]
        %v863 = vperm.slane %v861, 0
        %v864 = vperm.slane %v861, 1
        %v867 = vmul.f32 %v817, %v863
        %v868 = vmul.f32 %v818, %v864
        %v869 = vld [vmem:[%s8] sm:$0x3]
        %v871 = vperm.slane %v869, 0
        %v872 = vperm.slane %v869, 1
        %v875 = vadd.f32 %v867, %v871
        %v876 = vadd.f32 %v868, %v872
        %v877 = vmax.f32 %v875, 0.0
        %v878 = vmax.f32 %v876, 0.0
        %v879 = vpack.c.bf16 %v877, %v877
        %v880 = vpack.c.bf16 %v878, %v878
        %v881 = vld [vmem:[#allocation14] sm:$0x3]
        %v883 = vperm.slane %v881, 0
        %v884 = vperm.slane %v881, 1
        %v887 = vmul.f32 %v819, %v883
        %v888 = vmul.f32 %v820, %v884
        %v889 = vld [vmem:[%s10] sm:$0x3]
        %v891 = vperm.slane %v889, 0
        %v892 = vperm.slane %v889, 1
        %v895 = vadd.f32 %v887, %v891
        %v896 = vadd.f32 %v888, %v892
        %v897 = vmax.f32 %v895, 0.0
        %v898 = vmax.f32 %v896, 0.0
        %v899 = vpack.c.bf16 %v897, %v897
        %v900 = vpack.c.bf16 %v898, %v898
        %v901 = vld [vmem:[#allocation15] sm:$0xff]
        %v902 = vld [vmem:[#allocation15 + $0x8] sm:$0xff]
        %v903 = vld [vmem:[#allocation15 + $0x10] sm:$0xff]
        %v904 = vld [vmem:[#allocation15 + $0x18] sm:$0xff]
        %v905 = vld [vmem:[#allocation15 + $0x20] sm:$0xff]
        %v906 = vld [vmem:[#allocation15 + $0x28] sm:$0xff]
        %v907 = vld [vmem:[#allocation15 + $0x30] sm:$0xff]
        %v908 = vld [vmem:[#allocation15 + $0x38] sm:$0xff]
        %v909 = vld [vmem:[#allocation15 + $0x40] sm:$0xff]
        %v910 = vld [vmem:[#allocation15 + $0x48] sm:$0xff]
        %v911 = vld [vmem:[#allocation15 + $0x50] sm:$0xff]
        %v912 = vld [vmem:[#allocation15 + $0x58] sm:$0xff]
        %v913 = vld [vmem:[#allocation15 + $0x60] sm:$0xff]
        %v914 = vld [vmem:[#allocation15 + $0x68] sm:$0xff]
        %v915 = vld [vmem:[#allocation15 + $0x70] sm:$0xff]
        %v916 = vld [vmem:[#allocation15 + $0x78] sm:$0xff]
        %v917 = vld [vmem:[#allocation15 + $0x80] sm:$0xff]
        %v918 = vld [vmem:[#allocation15 + $0x88] sm:$0xff]
        %v919 = vld [vmem:[#allocation15 + $0x90] sm:$0xff]
        %v920 = vld [vmem:[#allocation15 + $0x98] sm:$0xff]
        %v921 = vld [vmem:[#allocation15 + $0xa0] sm:$0xff]
        %v922 = vld [vmem:[#allocation15 + $0xa8] sm:$0xff]
        %v923 = vld [vmem:[#allocation15 + $0xb0] sm:$0xff]
        %v924 = vld [vmem:[#allocation15 + $0xb8] sm:$0xff]
        %v925 = vld [vmem:[#allocation15 + $0xc0] sm:$0xff]
        %v926 = vld [vmem:[#allocation15 + $0xc8] sm:$0xff]
        %v927 = vld [vmem:[#allocation15 + $0xd0] sm:$0xff]
        %v928 = vld [vmem:[#allocation15 + $0xd8] sm:$0xff]
        %v929 = vld [vmem:[#allocation15 + $0xe0] sm:$0xff]
        %v930 = vld [vmem:[#allocation15 + $0xe8] sm:$0xff]
        %v931 = vld [vmem:[#allocation15 + $0xf0] sm:$0xff]
        %v932 = vld [vmem:[#allocation15 + $0xf8] sm:$0xff]
        %v933 = vld [vmem:[#allocation17] sm:$0xff]
        %v934 = vld [vmem:[#allocation17 + $0x8] sm:$0xff]
        %v935 = vld [vmem:[#allocation17 + $0x10] sm:$0xff]
        %v936 = vld [vmem:[#allocation17 + $0x18] sm:$0xff]
        %v937 = vld [vmem:[#allocation17 + $0x20] sm:$0xff]
        %v938 = vld [vmem:[#allocation17 + $0x28] sm:$0xff]
        %v939 = vld [vmem:[#allocation17 + $0x30] sm:$0xff]
        %v940 = vld [vmem:[#allocation17 + $0x38] sm:$0xff]
        %v941 = vld [vmem:[#allocation17 + $0x40] sm:$0xff]
        %v942 = vld [vmem:[#allocation17 + $0x48] sm:$0xff]
        %v943 = vld [vmem:[#allocation17 + $0x50] sm:$0xff]
        %v944 = vld [vmem:[#allocation17 + $0x58] sm:$0xff]
        %v945 = vld [vmem:[#allocation17 + $0x60] sm:$0xff]
        %v946 = vld [vmem:[#allocation17 + $0x68] sm:$0xff]
        %v947 = vld [vmem:[#allocation17 + $0x70] sm:$0xff]
        %v948 = vld [vmem:[#allocation17 + $0x78] sm:$0xff]
        %v949 = vld [vmem:[#allocation17 + $0x80] sm:$0xff]
        %v950 = vld [vmem:[#allocation17 + $0x88] sm:$0xff]
        %v951 = vld [vmem:[#allocation17 + $0x90] sm:$0xff]
        %v952 = vld [vmem:[#allocation17 + $0x98] sm:$0xff]
        %v953 = vld [vmem:[#allocation17 + $0xa0] sm:$0xff]
        %v954 = vld [vmem:[#allocation17 + $0xa8] sm:$0xff]
        %v955 = vld [vmem:[#allocation17 + $0xb0] sm:$0xff]
        %v956 = vld [vmem:[#allocation17 + $0xb8] sm:$0xff]
        %v957 = vld [vmem:[#allocation17 + $0xc0] sm:$0xff]
        %v958 = vld [vmem:[#allocation17 + $0xc8] sm:$0xff]
        %v959 = vld [vmem:[#allocation17 + $0xd0] sm:$0xff]
        %v960 = vld [vmem:[#allocation17 + $0xd8] sm:$0xff]
        %v961 = vld [vmem:[#allocation17 + $0xe0] sm:$0xff]
        %v962 = vld [vmem:[#allocation17 + $0xe8] sm:$0xff]
        %v963 = vld [vmem:[#allocation17 + $0xf0] sm:$0xff]
        %v964 = vld [vmem:[#allocation17 + $0xf8] sm:$0xff]
        %v997 = vunpack.c.l.b16 %v933
        %v998 = vunpack.c.h.b16 %v933
        %v999 = vunpack.c.l.b16 %v934
        %v1000 = vunpack.c.h.b16 %v934
        %v1001 = vunpack.c.l.b16 %v935
        %v1002 = vunpack.c.h.b16 %v935
        %v1003 = vunpack.c.l.b16 %v936
        %v1004 = vunpack.c.h.b16 %v936
        %v1005 = vunpack.c.l.b16 %v937
        %v1006 = vunpack.c.h.b16 %v937
        %v1007 = vunpack.c.l.b16 %v938
        %v1008 = vunpack.c.h.b16 %v938
        %v1009 = vunpack.c.l.b16 %v939
        %v1010 = vunpack.c.h.b16 %v939
        %v1011 = vunpack.c.l.b16 %v940
        %v1012 = vunpack.c.h.b16 %v940
        %v1013 = vunpack.c.l.b16 %v941
        %v1014 = vunpack.c.h.b16 %v941
        %v1015 = vunpack.c.l.b16 %v942
        %v1016 = vunpack.c.h.b16 %v942
        %v1017 = vunpack.c.l.b16 %v943
        %v1018 = vunpack.c.h.b16 %v943
        %v1019 = vunpack.c.l.b16 %v944
        %v1020 = vunpack.c.h.b16 %v944
        %v1021 = vunpack.c.l.b16 %v945
        %v1022 = vunpack.c.h.b16 %v945
        %v1023 = vunpack.c.l.b16 %v946
        %v1024 = vunpack.c.h.b16 %v946
        %v1025 = vunpack.c.l.b16 %v947
        %v1026 = vunpack.c.h.b16 %v947
        %v1027 = vunpack.c.l.b16 %v948
        %v1028 = vunpack.c.h.b16 %v948
        %v1029 = vunpack.c.l.b16 %v949
        %v1030 = vunpack.c.h.b16 %v949
        %v1031 = vunpack.c.l.b16 %v950
        %v1032 = vunpack.c.h.b16 %v950
        %v1033 = vunpack.c.l.b16 %v951
        %v1034 = vunpack.c.h.b16 %v951
        %v1035 = vunpack.c.l.b16 %v952
        %v1036 = vunpack.c.h.b16 %v952
        %v1037 = vunpack.c.l.b16 %v953
        %v1038 = vunpack.c.h.b16 %v953
        %v1039 = vunpack.c.l.b16 %v954
        %v1040 = vunpack.c.h.b16 %v954
        %v1041 = vunpack.c.l.b16 %v955
        %v1042 = vunpack.c.h.b16 %v955
        %v1043 = vunpack.c.l.b16 %v956
        %v1044 = vunpack.c.h.b16 %v956
        %v1045 = vunpack.c.l.b16 %v957
        %v1046 = vunpack.c.h.b16 %v957
        %v1047 = vunpack.c.l.b16 %v958
        %v1048 = vunpack.c.h.b16 %v958
        %v1049 = vunpack.c.l.b16 %v959
        %v1050 = vunpack.c.h.b16 %v959
        %v1051 = vunpack.c.l.b16 %v960
        %v1052 = vunpack.c.h.b16 %v960
        %v1053 = vunpack.c.l.b16 %v961
        %v1054 = vunpack.c.h.b16 %v961
        %v1055 = vunpack.c.l.b16 %v962
        %v1056 = vunpack.c.h.b16 %v962
        %v1057 = vunpack.c.l.b16 %v963
        %v1058 = vunpack.c.h.b16 %v963
        %v1059 = vunpack.c.l.b16 %v964
        %v1060 = vunpack.c.h.b16 %v964
        %v1061 = vpack.c.b16 %v999, %v997
        %v1062 = vpack.c.b16 %v1000, %v998
        %v1063 = vpack.c.b16 %v1003, %v1001
        %v1064 = vpack.c.b16 %v1004, %v1002
        %v1065 = vpack.c.b16 %v1007, %v1005
        %v1066 = vpack.c.b16 %v1008, %v1006
        %v1067 = vpack.c.b16 %v1011, %v1009
        %v1068 = vpack.c.b16 %v1012, %v1010
        %v1069 = vpack.c.b16 %v1015, %v1013
        %v1070 = vpack.c.b16 %v1016, %v1014
        %v1071 = vpack.c.b16 %v1019, %v1017
        %v1072 = vpack.c.b16 %v1020, %v1018
        %v1073 = vpack.c.b16 %v1023, %v1021
        %v1074 = vpack.c.b16 %v1024, %v1022
        %v1075 = vpack.c.b16 %v1027, %v1025
        %v1076 = vpack.c.b16 %v1028, %v1026
        %v1077 = vpack.c.b16 %v1031, %v1029
        %v1078 = vpack.c.b16 %v1032, %v1030
        %v1079 = vpack.c.b16 %v1035, %v1033
        %v1080 = vpack.c.b16 %v1036, %v1034
        %v1081 = vpack.c.b16 %v1039, %v1037
        %v1082 = vpack.c.b16 %v1040, %v1038
        %v1083 = vpack.c.b16 %v1043, %v1041
        %v1084 = vpack.c.b16 %v1044, %v1042
        %v1085 = vpack.c.b16 %v1047, %v1045
        %v1086 = vpack.c.b16 %v1048, %v1046
        %v1087 = vpack.c.b16 %v1051, %v1049
        %v1088 = vpack.c.b16 %v1052, %v1050
        %v1089 = vpack.c.b16 %v1055, %v1053
        %v1090 = vpack.c.b16 %v1056, %v1054
        %v1091 = vpack.c.b16 %v1059, %v1057
        %v1092 = vpack.c.b16 %v1060, %v1058
        %1125 = vmatpush.bf16.msra.mxu0 %v1075
        %1126 = vmatpush.bf16.msra.mxu0 %v1073
        %1127 = vmatpush.bf16.msra.mxu0 %v1071
        %1128 = vmatpush.bf16.msra.mxu0 %v1069
        %1129 = vmatpush.bf16.msra.mxu0 %v1067
        %1130 = vmatpush.bf16.msra.mxu0 %v1065
        %1131 = vmatpush.bf16.msra.mxu0 %v1063
        %1132 = vmatpush.bf16.msra.mxu0 %v1061
        %1133 = vmatmul.bf16.gmra.mxu0 %v859
        %v1134 = vpop.f32.mrf.mxu0
        %v1135 = vadd.f32 0.0, %v1134
        %v1136 = vpop.f32.mrf.mxu0
        %1137 = vdwg.mxu0
        %1138 = vmatpush.bf16.msra.mxu0 %v1091
        %1139 = vmatpush.bf16.msra.mxu0 %v1089
        %1140 = vmatpush.bf16.msra.mxu0 %v1087
        %1141 = vmatpush.bf16.msra.mxu0 %v1085
        %1142 = vmatpush.bf16.msra.mxu0 %v1083
        %1143 = vmatpush.bf16.msra.mxu0 %v1081
        %1144 = vmatpush.bf16.msra.mxu0 %v1079
        %1145 = vmatpush.bf16.msra.mxu0 %v1077
        %1146 = vmatmul.bf16.gmra.mxu0 %v860
        %v1147 = vpop.f32.mrf.mxu0
        %v1148 = vadd.f32 %v1135, %v1147
        %v1149 = vpop.f32.mrf.mxu0
        %1150 = vdwg.mxu0
        %1151 = vmatpush.bf16.msra.mxu0 %v1076
        %1152 = vmatpush.bf16.msra.mxu0 %v1074
        %1153 = vmatpush.bf16.msra.mxu0 %v1072
        %1154 = vmatpush.bf16.msra.mxu0 %v1070
        %1155 = vmatpush.bf16.msra.mxu0 %v1068
        %1156 = vmatpush.bf16.msra.mxu0 %v1066
        %1157 = vmatpush.bf16.msra.mxu0 %v1064
        %1158 = vmatpush.bf16.msra.mxu0 %v1062
        %1159 = vmatmul.bf16.gmra.mxu0 %v859
        %v1160 = vpop.f32.mrf.mxu0
        %v1161 = vadd.f32 0.0, %v1160
        %v1162 = vpop.f32.mrf.mxu0
        %1163 = vdwg.mxu0
        %1164 = vmatpush.bf16.msra.mxu0 %v1092
        %1165 = vmatpush.bf16.msra.mxu0 %v1090
        %1166 = vmatpush.bf16.msra.mxu0 %v1088
        %1167 = vmatpush.bf16.msra.mxu0 %v1086
        %1168 = vmatpush.bf16.msra.mxu0 %v1084
        %1169 = vmatpush.bf16.msra.mxu0 %v1082
        %1170 = vmatpush.bf16.msra.mxu0 %v1080
        %1171 = vmatpush.bf16.msra.mxu0 %v1078
        %1172 = vmatmul.bf16.gmra.mxu0 %v860
        %v1173 = vpop.f32.mrf.mxu0
        %v1174 = vadd.f32 %v1161, %v1173
        %v1175 = vpop.f32.mrf.mxu0
        %1176 = vdwg.mxu0
        %v1209 = vunpack.c.l.b16 %v901
        %v1210 = vunpack.c.h.b16 %v901
        %v1211 = vunpack.c.l.b16 %v902
        %v1212 = vunpack.c.h.b16 %v902
        %v1213 = vunpack.c.l.b16 %v903
        %v1214 = vunpack.c.h.b16 %v903
        %v1215 = vunpack.c.l.b16 %v904
        %v1216 = vunpack.c.h.b16 %v904
        %v1217 = vunpack.c.l.b16 %v905
        %v1218 = vunpack.c.h.b16 %v905
        %v1219 = vunpack.c.l.b16 %v906
        %v1220 = vunpack.c.h.b16 %v906
        %v1221 = vunpack.c.l.b16 %v907
        %v1222 = vunpack.c.h.b16 %v907
        %v1223 = vunpack.c.l.b16 %v908
        %v1224 = vunpack.c.h.b16 %v908
        %v1225 = vunpack.c.l.b16 %v909
        %v1226 = vunpack.c.h.b16 %v909
        %v1227 = vunpack.c.l.b16 %v910
        %v1228 = vunpack.c.h.b16 %v910
        %v1229 = vunpack.c.l.b16 %v911
        %v1230 = vunpack.c.h.b16 %v911
        %v1231 = vunpack.c.l.b16 %v912
        %v1232 = vunpack.c.h.b16 %v912
        %v1233 = vunpack.c.l.b16 %v913
        %v1234 = vunpack.c.h.b16 %v913
        %v1235 = vunpack.c.l.b16 %v914
        %v1236 = vunpack.c.h.b16 %v914
        %v1237 = vunpack.c.l.b16 %v915
        %v1238 = vunpack.c.h.b16 %v915
        %v1239 = vunpack.c.l.b16 %v916
        %v1240 = vunpack.c.h.b16 %v916
        %v1241 = vunpack.c.l.b16 %v917
        %v1242 = vunpack.c.h.b16 %v917
        %v1243 = vunpack.c.l.b16 %v918
        %v1244 = vunpack.c.h.b16 %v918
        %v1245 = vunpack.c.l.b16 %v919
        %v1246 = vunpack.c.h.b16 %v919
        %v1247 = vunpack.c.l.b16 %v920
        %v1248 = vunpack.c.h.b16 %v920
        %v1249 = vunpack.c.l.b16 %v921
        %v1250 = vunpack.c.h.b16 %v921
        %v1251 = vunpack.c.l.b16 %v922
        %v1252 = vunpack.c.h.b16 %v922
        %v1253 = vunpack.c.l.b16 %v923
        %v1254 = vunpack.c.h.b16 %v923
        %v1255 = vunpack.c.l.b16 %v924
        %v1256 = vunpack.c.h.b16 %v924
        %v1257 = vunpack.c.l.b16 %v925
        %v1258 = vunpack.c.h.b16 %v925
        %v1259 = vunpack.c.l.b16 %v926
        %v1260 = vunpack.c.h.b16 %v926
        %v1261 = vunpack.c.l.b16 %v927
        %v1262 = vunpack.c.h.b16 %v927
        %v1263 = vunpack.c.l.b16 %v928
        %v1264 = vunpack.c.h.b16 %v928
        %v1265 = vunpack.c.l.b16 %v929
        %v1266 = vunpack.c.h.b16 %v929
        %v1267 = vunpack.c.l.b16 %v930
        %v1268 = vunpack.c.h.b16 %v930
        %v1269 = vunpack.c.l.b16 %v931
        %v1270 = vunpack.c.h.b16 %v931
        %v1271 = vunpack.c.l.b16 %v932
        %v1272 = vunpack.c.h.b16 %v932
        %v1273 = vpack.c.b16 %v1211, %v1209
        %v1274 = vpack.c.b16 %v1212, %v1210
        %v1275 = vpack.c.b16 %v1215, %v1213
        %v1276 = vpack.c.b16 %v1216, %v1214
        %v1277 = vpack.c.b16 %v1219, %v1217
        %v1278 = vpack.c.b16 %v1220, %v1218
        %v1279 = vpack.c.b16 %v1223, %v1221
        %v1280 = vpack.c.b16 %v1224, %v1222
        %v1281 = vpack.c.b16 %v1227, %v1225
        %v1282 = vpack.c.b16 %v1228, %v1226
        %v1283 = vpack.c.b16 %v1231, %v1229
        %v1284 = vpack.c.b16 %v1232, %v1230
        %v1285 = vpack.c.b16 %v1235, %v1233
        %v1286 = vpack.c.b16 %v1236, %v1234
        %v1287 = vpack.c.b16 %v1239, %v1237
        %v1288 = vpack.c.b16 %v1240, %v1238
        %v1289 = vpack.c.b16 %v1243, %v1241
        %v1290 = vpack.c.b16 %v1244, %v1242
        %v1291 = vpack.c.b16 %v1247, %v1245
        %v1292 = vpack.c.b16 %v1248, %v1246
        %v1293 = vpack.c.b16 %v1251, %v1249
        %v1294 = vpack.c.b16 %v1252, %v1250
        %v1295 = vpack.c.b16 %v1255, %v1253
        %v1296 = vpack.c.b16 %v1256, %v1254
        %v1297 = vpack.c.b16 %v1259, %v1257
        %v1298 = vpack.c.b16 %v1260, %v1258
        %v1299 = vpack.c.b16 %v1263, %v1261
        %v1300 = vpack.c.b16 %v1264, %v1262
        %v1301 = vpack.c.b16 %v1267, %v1265
        %v1302 = vpack.c.b16 %v1268, %v1266
        %v1303 = vpack.c.b16 %v1271, %v1269
        %v1304 = vpack.c.b16 %v1272, %v1270
        %1337 = vmatpush.bf16.msra.mxu0 %v1287
        %1338 = vmatpush.bf16.msra.mxu0 %v1285
        %1339 = vmatpush.bf16.msra.mxu0 %v1283
        %1340 = vmatpush.bf16.msra.mxu0 %v1281
        %1341 = vmatpush.bf16.msra.mxu0 %v1279
        %1342 = vmatpush.bf16.msra.mxu0 %v1277
        %1343 = vmatpush.bf16.msra.mxu0 %v1275
        %1344 = vmatpush.bf16.msra.mxu0 %v1273
        %1345 = vmatmul.bf16.gmra.mxu0 %v839
        %v1346 = vpop.f32.mrf.mxu0
        %v1347 = vadd.f32 %v1148, %v1346
        %v1348 = vpop.f32.mrf.mxu0
        %1349 = vdwg.mxu0
        %1350 = vmatpush.bf16.msra.mxu0 %v1303
        %1351 = vmatpush.bf16.msra.mxu0 %v1301
        %1352 = vmatpush.bf16.msra.mxu0 %v1299
        %1353 = vmatpush.bf16.msra.mxu0 %v1297
        %1354 = vmatpush.bf16.msra.mxu0 %v1295
        %1355 = vmatpush.bf16.msra.mxu0 %v1293
        %1356 = vmatpush.bf16.msra.mxu0 %v1291
        %1357 = vmatpush.bf16.msra.mxu0 %v1289
        %1358 = vmatmul.bf16.gmra.mxu0 %v840
        %v1359 = vpop.f32.mrf.mxu0
        %v1360 = vadd.f32 %v1347, %v1359
        %v1361 = vpop.f32.mrf.mxu0
        %1362 = vdwg.mxu0
        %1363 = vmatpush.bf16.msra.mxu0 %v1288
        %1364 = vmatpush.bf16.msra.mxu0 %v1286
        %1365 = vmatpush.bf16.msra.mxu0 %v1284
        %1366 = vmatpush.bf16.msra.mxu0 %v1282
        %1367 = vmatpush.bf16.msra.mxu0 %v1280
        %1368 = vmatpush.bf16.msra.mxu0 %v1278
        %1369 = vmatpush.bf16.msra.mxu0 %v1276
        %1370 = vmatpush.bf16.msra.mxu0 %v1274
        %1371 = vmatmul.bf16.gmra.mxu0 %v839
        %v1372 = vpop.f32.mrf.mxu0
        %v1373 = vadd.f32 %v1174, %v1372
        %v1374 = vpop.f32.mrf.mxu0
        %1375 = vdwg.mxu0
        %1376 = vmatpush.bf16.msra.mxu0 %v1304
        %1377 = vmatpush.bf16.msra.mxu0 %v1302
        %1378 = vmatpush.bf16.msra.mxu0 %v1300
        %1379 = vmatpush.bf16.msra.mxu0 %v1298
        %1380 = vmatpush.bf16.msra.mxu0 %v1296
        %1381 = vmatpush.bf16.msra.mxu0 %v1294
        %1382 = vmatpush.bf16.msra.mxu0 %v1292
        %1383 = vmatpush.bf16.msra.mxu0 %v1290
        %1384 = vmatmul.bf16.gmra.mxu0 %v840
        %v1385 = vpop.f32.mrf.mxu0
        %v1386 = vadd.f32 %v1373, %v1385
        %v1387 = vpop.f32.mrf.mxu0
        %1388 = vdwg.mxu0
        %v1389 = vld [vmem:[%s13] sm:$0x3]
        %v1391 = vperm.slane %v1389, 0
        %v1392 = vperm.slane %v1389, 1
        %v1395 = vadd.f32 %v1360, %v1391
        %v1396 = vadd.f32 %v1386, %v1392
        %v1397 = vld [vmem:[#allocation18] sm:$0xff]
        %v1398 = vld [vmem:[#allocation18 + $0x8] sm:$0xff]
        %v1399 = vld [vmem:[#allocation18 + $0x10] sm:$0xff]
        %v1400 = vld [vmem:[#allocation18 + $0x18] sm:$0xff]
        %v1401 = vld [vmem:[#allocation18 + $0x20] sm:$0xff]
        %v1402 = vld [vmem:[#allocation18 + $0x28] sm:$0xff]
        %v1403 = vld [vmem:[#allocation18 + $0x30] sm:$0xff]
        %v1404 = vld [vmem:[#allocation18 + $0x38] sm:$0xff]
        %v1405 = vld [vmem:[#allocation18 + $0x40] sm:$0xff]
        %v1406 = vld [vmem:[#allocation18 + $0x48] sm:$0xff]
        %v1407 = vld [vmem:[#allocation18 + $0x50] sm:$0xff]
        %v1408 = vld [vmem:[#allocation18 + $0x58] sm:$0xff]
        %v1409 = vld [vmem:[#allocation18 + $0x60] sm:$0xff]
        %v1410 = vld [vmem:[#allocation18 + $0x68] sm:$0xff]
        %v1411 = vld [vmem:[#allocation18 + $0x70] sm:$0xff]
        %v1412 = vld [vmem:[#allocation18 + $0x78] sm:$0xff]
        %v1413 = vld [vmem:[#allocation18 + $0x80] sm:$0xff]
        %v1414 = vld [vmem:[#allocation18 + $0x88] sm:$0xff]
        %v1415 = vld [vmem:[#allocation18 + $0x90] sm:$0xff]
        %v1416 = vld [vmem:[#allocation18 + $0x98] sm:$0xff]
        %v1417 = vld [vmem:[#allocation18 + $0xa0] sm:$0xff]
        %v1418 = vld [vmem:[#allocation18 + $0xa8] sm:$0xff]
        %v1419 = vld [vmem:[#allocation18 + $0xb0] sm:$0xff]
        %v1420 = vld [vmem:[#allocation18 + $0xb8] sm:$0xff]
        %v1421 = vld [vmem:[#allocation18 + $0xc0] sm:$0xff]
        %v1422 = vld [vmem:[#allocation18 + $0xc8] sm:$0xff]
        %v1423 = vld [vmem:[#allocation18 + $0xd0] sm:$0xff]
        %v1424 = vld [vmem:[#allocation18 + $0xd8] sm:$0xff]
        %v1425 = vld [vmem:[#allocation18 + $0xe0] sm:$0xff]
        %v1426 = vld [vmem:[#allocation18 + $0xe8] sm:$0xff]
        %v1427 = vld [vmem:[#allocation18 + $0xf0] sm:$0xff]
        %v1428 = vld [vmem:[#allocation18 + $0xf8] sm:$0xff]
        %v1429 = vld [vmem:[#allocation18 + $0x100] sm:$0xff]
        %v1430 = vld [vmem:[#allocation18 + $0x108] sm:$0xff]
        %v1431 = vld [vmem:[#allocation18 + $0x110] sm:$0xff]
        %v1432 = vld [vmem:[#allocation18 + $0x118] sm:$0xff]
        %v1433 = vld [vmem:[#allocation18 + $0x120] sm:$0xff]
        %v1434 = vld [vmem:[#allocation18 + $0x128] sm:$0xff]
        %v1435 = vld [vmem:[#allocation18 + $0x130] sm:$0xff]
        %v1436 = vld [vmem:[#allocation18 + $0x138] sm:$0xff]
        %v1437 = vld [vmem:[#allocation18 + $0x140] sm:$0xff]
        %v1438 = vld [vmem:[#allocation18 + $0x148] sm:$0xff]
        %v1439 = vld [vmem:[#allocation18 + $0x150] sm:$0xff]
        %v1440 = vld [vmem:[#allocation18 + $0x158] sm:$0xff]
        %v1441 = vld [vmem:[#allocation18 + $0x160] sm:$0xff]
        %v1442 = vld [vmem:[#allocation18 + $0x168] sm:$0xff]
        %v1443 = vld [vmem:[#allocation18 + $0x170] sm:$0xff]
        %v1444 = vld [vmem:[#allocation18 + $0x178] sm:$0xff]
        %v1445 = vld [vmem:[#allocation18 + $0x180] sm:$0xff]
        %v1446 = vld [vmem:[#allocation18 + $0x188] sm:$0xff]
        %v1447 = vld [vmem:[#allocation18 + $0x190] sm:$0xff]
        %v1448 = vld [vmem:[#allocation18 + $0x198] sm:$0xff]
        %v1449 = vld [vmem:[#allocation18 + $0x1a0] sm:$0xff]
        %v1450 = vld [vmem:[#allocation18 + $0x1a8] sm:$0xff]
        %v1451 = vld [vmem:[#allocation18 + $0x1b0] sm:$0xff]
        %v1452 = vld [vmem:[#allocation18 + $0x1b8] sm:$0xff]
        %v1453 = vld [vmem:[#allocation18 + $0x1c0] sm:$0xff]
        %v1454 = vld [vmem:[#allocation18 + $0x1c8] sm:$0xff]
        %v1455 = vld [vmem:[#allocation18 + $0x1d0] sm:$0xff]
        %v1456 = vld [vmem:[#allocation18 + $0x1d8] sm:$0xff]
        %v1457 = vld [vmem:[#allocation18 + $0x1e0] sm:$0xff]
        %v1458 = vld [vmem:[#allocation18 + $0x1e8] sm:$0xff]
        %v1459 = vld [vmem:[#allocation18 + $0x1f0] sm:$0xff]
        %v1460 = vld [vmem:[#allocation18 + $0x1f8] sm:$0xff]
        %v1461 = vld [vmem:[#allocation20] sm:$0xff]
        %v1462 = vld [vmem:[#allocation20 + $0x8] sm:$0xff]
        %v1463 = vld [vmem:[#allocation20 + $0x10] sm:$0xff]
        %v1464 = vld [vmem:[#allocation20 + $0x18] sm:$0xff]
        %v1465 = vld [vmem:[#allocation20 + $0x20] sm:$0xff]
        %v1466 = vld [vmem:[#allocation20 + $0x28] sm:$0xff]
        %v1467 = vld [vmem:[#allocation20 + $0x30] sm:$0xff]
        %v1468 = vld [vmem:[#allocation20 + $0x38] sm:$0xff]
        %v1469 = vld [vmem:[#allocation20 + $0x40] sm:$0xff]
        %v1470 = vld [vmem:[#allocation20 + $0x48] sm:$0xff]
        %v1471 = vld [vmem:[#allocation20 + $0x50] sm:$0xff]
        %v1472 = vld [vmem:[#allocation20 + $0x58] sm:$0xff]
        %v1473 = vld [vmem:[#allocation20 + $0x60] sm:$0xff]
        %v1474 = vld [vmem:[#allocation20 + $0x68] sm:$0xff]
        %v1475 = vld [vmem:[#allocation20 + $0x70] sm:$0xff]
        %v1476 = vld [vmem:[#allocation20 + $0x78] sm:$0xff]
        %v1477 = vld [vmem:[#allocation20 + $0x80] sm:$0xff]
        %v1478 = vld [vmem:[#allocation20 + $0x88] sm:$0xff]
        %v1479 = vld [vmem:[#allocation20 + $0x90] sm:$0xff]
        %v1480 = vld [vmem:[#allocation20 + $0x98] sm:$0xff]
        %v1481 = vld [vmem:[#allocation20 + $0xa0] sm:$0xff]
        %v1482 = vld [vmem:[#allocation20 + $0xa8] sm:$0xff]
        %v1483 = vld [vmem:[#allocation20 + $0xb0] sm:$0xff]
        %v1484 = vld [vmem:[#allocation20 + $0xb8] sm:$0xff]
        %v1485 = vld [vmem:[#allocation20 + $0xc0] sm:$0xff]
        %v1486 = vld [vmem:[#allocation20 + $0xc8] sm:$0xff]
        %v1487 = vld [vmem:[#allocation20 + $0xd0] sm:$0xff]
        %v1488 = vld [vmem:[#allocation20 + $0xd8] sm:$0xff]
        %v1489 = vld [vmem:[#allocation20 + $0xe0] sm:$0xff]
        %v1490 = vld [vmem:[#allocation20 + $0xe8] sm:$0xff]
        %v1491 = vld [vmem:[#allocation20 + $0xf0] sm:$0xff]
        %v1492 = vld [vmem:[#allocation20 + $0xf8] sm:$0xff]
        %v1493 = vld [vmem:[#allocation20 + $0x100] sm:$0xff]
        %v1494 = vld [vmem:[#allocation20 + $0x108] sm:$0xff]
        %v1495 = vld [vmem:[#allocation20 + $0x110] sm:$0xff]
        %v1496 = vld [vmem:[#allocation20 + $0x118] sm:$0xff]
        %v1497 = vld [vmem:[#allocation20 + $0x120] sm:$0xff]
        %v1498 = vld [vmem:[#allocation20 + $0x128] sm:$0xff]
        %v1499 = vld [vmem:[#allocation20 + $0x130] sm:$0xff]
        %v1500 = vld [vmem:[#allocation20 + $0x138] sm:$0xff]
        %v1501 = vld [vmem:[#allocation20 + $0x140] sm:$0xff]
        %v1502 = vld [vmem:[#allocation20 + $0x148] sm:$0xff]
        %v1503 = vld [vmem:[#allocation20 + $0x150] sm:$0xff]
        %v1504 = vld [vmem:[#allocation20 + $0x158] sm:$0xff]
        %v1505 = vld [vmem:[#allocation20 + $0x160] sm:$0xff]
        %v1506 = vld [vmem:[#allocation20 + $0x168] sm:$0xff]
        %v1507 = vld [vmem:[#allocation20 + $0x170] sm:$0xff]
        %v1508 = vld [vmem:[#allocation20 + $0x178] sm:$0xff]
        %v1509 = vld [vmem:[#allocation20 + $0x180] sm:$0xff]
        %v1510 = vld [vmem:[#allocation20 + $0x188] sm:$0xff]
        %v1511 = vld [vmem:[#allocation20 + $0x190] sm:$0xff]
        %v1512 = vld [vmem:[#allocation20 + $0x198] sm:$0xff]
        %v1513 = vld [vmem:[#allocation20 + $0x1a0] sm:$0xff]
        %v1514 = vld [vmem:[#allocation20 + $0x1a8] sm:$0xff]
        %v1515 = vld [vmem:[#allocation20 + $0x1b0] sm:$0xff]
        %v1516 = vld [vmem:[#allocation20 + $0x1b8] sm:$0xff]
        %v1517 = vld [vmem:[#allocation20 + $0x1c0] sm:$0xff]
        %v1518 = vld [vmem:[#allocation20 + $0x1c8] sm:$0xff]
        %v1519 = vld [vmem:[#allocation20 + $0x1d0] sm:$0xff]
        %v1520 = vld [vmem:[#allocation20 + $0x1d8] sm:$0xff]
        %v1521 = vld [vmem:[#allocation20 + $0x1e0] sm:$0xff]
        %v1522 = vld [vmem:[#allocation20 + $0x1e8] sm:$0xff]
        %v1523 = vld [vmem:[#allocation20 + $0x1f0] sm:$0xff]
        %v1524 = vld [vmem:[#allocation20 + $0x1f8] sm:$0xff]
        %v1589 = vunpack.c.l.b16 %v1461
        %v1590 = vunpack.c.h.b16 %v1461
        %v1591 = vunpack.c.l.b16 %v1462
        %v1592 = vunpack.c.h.b16 %v1462
        %v1593 = vunpack.c.l.b16 %v1463
        %v1594 = vunpack.c.h.b16 %v1463
        %v1595 = vunpack.c.l.b16 %v1464
        %v1596 = vunpack.c.h.b16 %v1464
        %v1597 = vunpack.c.l.b16 %v1465
        %v1598 = vunpack.c.h.b16 %v1465
        %v1599 = vunpack.c.l.b16 %v1466
        %v1600 = vunpack.c.h.b16 %v1466
        %v1601 = vunpack.c.l.b16 %v1467
        %v1602 = vunpack.c.h.b16 %v1467
        %v1603 = vunpack.c.l.b16 %v1468
        %v1604 = vunpack.c.h.b16 %v1468
        %v1605 = vunpack.c.l.b16 %v1469
        %v1606 = vunpack.c.h.b16 %v1469
        %v1607 = vunpack.c.l.b16 %v1470
        %v1608 = vunpack.c.h.b16 %v1470
        %v1609 = vunpack.c.l.b16 %v1471
        %v1610 = vunpack.c.h.b16 %v1471
        %v1611 = vunpack.c.l.b16 %v1472
        %v1612 = vunpack.c.h.b16 %v1472
        %v1613 = vunpack.c.l.b16 %v1473
        %v1614 = vunpack.c.h.b16 %v1473
        %v1615 = vunpack.c.l.b16 %v1474
        %v1616 = vunpack.c.h.b16 %v1474
        %v1617 = vunpack.c.l.b16 %v1475
        %v1618 = vunpack.c.h.b16 %v1475
        %v1619 = vunpack.c.l.b16 %v1476
        %v1620 = vunpack.c.h.b16 %v1476
        %v1621 = vunpack.c.l.b16 %v1477
        %v1622 = vunpack.c.h.b16 %v1477
        %v1623 = vunpack.c.l.b16 %v1478
        %v1624 = vunpack.c.h.b16 %v1478
        %v1625 = vunpack.c.l.b16 %v1479
        %v1626 = vunpack.c.h.b16 %v1479
        %v1627 = vunpack.c.l.b16 %v1480
        %v1628 = vunpack.c.h.b16 %v1480
        %v1629 = vunpack.c.l.b16 %v1481
        %v1630 = vunpack.c.h.b16 %v1481
        %v1631 = vunpack.c.l.b16 %v1482
        %v1632 = vunpack.c.h.b16 %v1482
        %v1633 = vunpack.c.l.b16 %v1483
        %v1634 = vunpack.c.h.b16 %v1483
        %v1635 = vunpack.c.l.b16 %v1484
        %v1636 = vunpack.c.h.b16 %v1484
        %v1637 = vunpack.c.l.b16 %v1485
        %v1638 = vunpack.c.h.b16 %v1485
        %v1639 = vunpack.c.l.b16 %v1486
        %v1640 = vunpack.c.h.b16 %v1486
        %v1641 = vunpack.c.l.b16 %v1487
        %v1642 = vunpack.c.h.b16 %v1487
        %v1643 = vunpack.c.l.b16 %v1488
        %v1644 = vunpack.c.h.b16 %v1488
        %v1645 = vunpack.c.l.b16 %v1489
        %v1646 = vunpack.c.h.b16 %v1489
        %v1647 = vunpack.c.l.b16 %v1490
        %v1648 = vunpack.c.h.b16 %v1490
        %v1649 = vunpack.c.l.b16 %v1491
        %v1650 = vunpack.c.h.b16 %v1491
        %v1651 = vunpack.c.l.b16 %v1492
        %v1652 = vunpack.c.h.b16 %v1492
        %v1653 = vunpack.c.l.b16 %v1493
        %v1654 = vunpack.c.h.b16 %v1493
        %v1655 = vunpack.c.l.b16 %v1494
        %v1656 = vunpack.c.h.b16 %v1494
        %v1657 = vunpack.c.l.b16 %v1495
        %v1658 = vunpack.c.h.b16 %v1495
        %v1659 = vunpack.c.l.b16 %v1496
        %v1660 = vunpack.c.h.b16 %v1496
        %v1661 = vunpack.c.l.b16 %v1497
        %v1662 = vunpack.c.h.b16 %v1497
        %v1663 = vunpack.c.l.b16 %v1498
        %v1664 = vunpack.c.h.b16 %v1498
        %v1665 = vunpack.c.l.b16 %v1499
        %v1666 = vunpack.c.h.b16 %v1499
        %v1667 = vunpack.c.l.b16 %v1500
        %v1668 = vunpack.c.h.b16 %v1500
        %v1669 = vunpack.c.l.b16 %v1501
        %v1670 = vunpack.c.h.b16 %v1501
        %v1671 = vunpack.c.l.b16 %v1502
        %v1672 = vunpack.c.h.b16 %v1502
        %v1673 = vunpack.c.l.b16 %v1503
        %v1674 = vunpack.c.h.b16 %v1503
        %v1675 = vunpack.c.l.b16 %v1504
        %v1676 = vunpack.c.h.b16 %v1504
        %v1677 = vunpack.c.l.b16 %v1505
        %v1678 = vunpack.c.h.b16 %v1505
        %v1679 = vunpack.c.l.b16 %v1506
        %v1680 = vunpack.c.h.b16 %v1506
        %v1681 = vunpack.c.l.b16 %v1507
        %v1682 = vunpack.c.h.b16 %v1507
        %v1683 = vunpack.c.l.b16 %v1508
        %v1684 = vunpack.c.h.b16 %v1508
        %v1685 = vunpack.c.l.b16 %v1509
        %v1686 = vunpack.c.h.b16 %v1509
        %v1687 = vunpack.c.l.b16 %v1510
        %v1688 = vunpack.c.h.b16 %v1510
        %v1689 = vunpack.c.l.b16 %v1511
        %v1690 = vunpack.c.h.b16 %v1511
        %v1691 = vunpack.c.l.b16 %v1512
        %v1692 = vunpack.c.h.b16 %v1512
        %v1693 = vunpack.c.l.b16 %v1513
        %v1694 = vunpack.c.h.b16 %v1513
        %v1695 = vunpack.c.l.b16 %v1514
        %v1696 = vunpack.c.h.b16 %v1514
        %v1697 = vunpack.c.l.b16 %v1515
        %v1698 = vunpack.c.h.b16 %v1515
        %v1699 = vunpack.c.l.b16 %v1516
        %v1700 = vunpack.c.h.b16 %v1516
        %v1701 = vunpack.c.l.b16 %v1517
        %v1702 = vunpack.c.h.b16 %v1517
        %v1703 = vunpack.c.l.b16 %v1518
        %v1704 = vunpack.c.h.b16 %v1518
        %v1705 = vunpack.c.l.b16 %v1519
        %v1706 = vunpack.c.h.b16 %v1519
        %v1707 = vunpack.c.l.b16 %v1520
        %v1708 = vunpack.c.h.b16 %v1520
        %v1709 = vunpack.c.l.b16 %v1521
        %v1710 = vunpack.c.h.b16 %v1521
        %v1711 = vunpack.c.l.b16 %v1522
        %v1712 = vunpack.c.h.b16 %v1522
        %v1713 = vunpack.c.l.b16 %v1523
        %v1714 = vunpack.c.h.b16 %v1523
        %v1715 = vunpack.c.l.b16 %v1524
        %v1716 = vunpack.c.h.b16 %v1524
        %v1717 = vpack.c.b16 %v1593, %v1589
        %v1718 = vpack.c.b16 %v1594, %v1590
        %v1719 = vpack.c.b16 %v1595, %v1591
        %v1720 = vpack.c.b16 %v1596, %v1592
        %v1721 = vpack.c.b16 %v1601, %v1597
        %v1722 = vpack.c.b16 %v1602, %v1598
        %v1723 = vpack.c.b16 %v1603, %v1599
        %v1724 = vpack.c.b16 %v1604, %v1600
        %v1725 = vpack.c.b16 %v1609, %v1605
        %v1726 = vpack.c.b16 %v1610, %v1606
        %v1727 = vpack.c.b16 %v1611, %v1607
        %v1728 = vpack.c.b16 %v1612, %v1608
        %v1729 = vpack.c.b16 %v1617, %v1613
        %v1730 = vpack.c.b16 %v1618, %v1614
        %v1731 = vpack.c.b16 %v1619, %v1615
        %v1732 = vpack.c.b16 %v1620, %v1616
        %v1733 = vpack.c.b16 %v1625, %v1621
        %v1734 = vpack.c.b16 %v1626, %v1622
        %v1735 = vpack.c.b16 %v1627, %v1623
        %v1736 = vpack.c.b16 %v1628, %v1624
        %v1737 = vpack.c.b16 %v1633, %v1629
        %v1738 = vpack.c.b16 %v1634, %v1630
        %v1739 = vpack.c.b16 %v1635, %v1631
        %v1740 = vpack.c.b16 %v1636, %v1632
        %v1741 = vpack.c.b16 %v1641, %v1637
        %v1742 = vpack.c.b16 %v1642, %v1638
        %v1743 = vpack.c.b16 %v1643, %v1639
        %v1744 = vpack.c.b16 %v1644, %v1640
        %v1745 = vpack.c.b16 %v1649, %v1645
        %v1746 = vpack.c.b16 %v1650, %v1646
        %v1747 = vpack.c.b16 %v1651, %v1647
        %v1748 = vpack.c.b16 %v1652, %v1648
        %v1749 = vpack.c.b16 %v1657, %v1653
        %v1750 = vpack.c.b16 %v1658, %v1654
        %v1751 = vpack.c.b16 %v1659, %v1655
        %v1752 = vpack.c.b16 %v1660, %v1656
        %v1753 = vpack.c.b16 %v1665, %v1661
        %v1754 = vpack.c.b16 %v1666, %v1662
        %v1755 = vpack.c.b16 %v1667, %v1663
        %v1756 = vpack.c.b16 %v1668, %v1664
        %v1757 = vpack.c.b16 %v1673, %v1669
        %v1758 = vpack.c.b16 %v1674, %v1670
        %v1759 = vpack.c.b16 %v1675, %v1671
        %v1760 = vpack.c.b16 %v1676, %v1672
        %v1761 = vpack.c.b16 %v1681, %v1677
        %v1762 = vpack.c.b16 %v1682, %v1678
        %v1763 = vpack.c.b16 %v1683, %v1679
        %v1764 = vpack.c.b16 %v1684, %v1680
        %v1765 = vpack.c.b16 %v1689, %v1685
        %v1766 = vpack.c.b16 %v1690, %v1686
        %v1767 = vpack.c.b16 %v1691, %v1687
        %v1768 = vpack.c.b16 %v1692, %v1688
        %v1769 = vpack.c.b16 %v1697, %v1693
        %v1770 = vpack.c.b16 %v1698, %v1694
        %v1771 = vpack.c.b16 %v1699, %v1695
        %v1772 = vpack.c.b16 %v1700, %v1696
        %v1773 = vpack.c.b16 %v1705, %v1701
        %v1774 = vpack.c.b16 %v1706, %v1702
        %v1775 = vpack.c.b16 %v1707, %v1703
        %v1776 = vpack.c.b16 %v1708, %v1704
        %v1777 = vpack.c.b16 %v1713, %v1709
        %v1778 = vpack.c.b16 %v1714, %v1710
        %v1779 = vpack.c.b16 %v1715, %v1711
        %v1780 = vpack.c.b16 %v1716, %v1712
        %1845 = vmatpush.bf16.msra.mxu0 %v1745
        %1846 = vmatpush.bf16.msra.mxu0 %v1741
        %1847 = vmatpush.bf16.msra.mxu0 %v1737
        %1848 = vmatpush.bf16.msra.mxu0 %v1733
        %1849 = vmatpush.bf16.msra.mxu0 %v1729
        %1850 = vmatpush.bf16.msra.mxu0 %v1725
        %1851 = vmatpush.bf16.msra.mxu0 %v1721
        %1852 = vmatpush.bf16.msra.mxu0 %v1717
        %1853 = vmatmul.bf16.gmra.mxu0 %v899
        %v1854 = vpop.f32.mrf.mxu0
        %v1855 = vadd.f32 0.0, %v1854
        %v1856 = vpop.f32.mrf.mxu0
        %1857 = vdwg.mxu0
        %1858 = vmatpush.bf16.msra.mxu0 %v1777
        %1859 = vmatpush.bf16.msra.mxu0 %v1773
        %1860 = vmatpush.bf16.msra.mxu0 %v1769
        %1861 = vmatpush.bf16.msra.mxu0 %v1765
        %1862 = vmatpush.bf16.msra.mxu0 %v1761
        %1863 = vmatpush.bf16.msra.mxu0 %v1757
        %1864 = vmatpush.bf16.msra.mxu0 %v1753
        %1865 = vmatpush.bf16.msra.mxu0 %v1749
        %1866 = vmatmul.bf16.gmra.mxu0 %v900
        %v1867 = vpop.f32.mrf.mxu0
        %v1868 = vadd.f32 %v1855, %v1867
        %v1869 = vpop.f32.mrf.mxu0
        %1870 = vdwg.mxu0
        %1871 = vmatpush.bf16.msra.mxu0 %v1746
        %1872 = vmatpush.bf16.msra.mxu0 %v1742
        %1873 = vmatpush.bf16.msra.mxu0 %v1738
        %1874 = vmatpush.bf16.msra.mxu0 %v1734
        %1875 = vmatpush.bf16.msra.mxu0 %v1730
        %1876 = vmatpush.bf16.msra.mxu0 %v1726
        %1877 = vmatpush.bf16.msra.mxu0 %v1722
        %1878 = vmatpush.bf16.msra.mxu0 %v1718
        %1879 = vmatmul.bf16.gmra.mxu0 %v899
        %v1880 = vpop.f32.mrf.mxu0
        %v1881 = vadd.f32 0.0, %v1880
        %v1882 = vpop.f32.mrf.mxu0
        %1883 = vdwg.mxu0
        %1884 = vmatpush.bf16.msra.mxu0 %v1778
        %1885 = vmatpush.bf16.msra.mxu0 %v1774
        %1886 = vmatpush.bf16.msra.mxu0 %v1770
        %1887 = vmatpush.bf16.msra.mxu0 %v1766
        %1888 = vmatpush.bf16.msra.mxu0 %v1762
        %1889 = vmatpush.bf16.msra.mxu0 %v1758
        %1890 = vmatpush.bf16.msra.mxu0 %v1754
        %1891 = vmatpush.bf16.msra.mxu0 %v1750
        %1892 = vmatmul.bf16.gmra.mxu0 %v900
        %v1893 = vpop.f32.mrf.mxu0
        %v1894 = vadd.f32 %v1881, %v1893
        %v1895 = vpop.f32.mrf.mxu0
        %1896 = vdwg.mxu0
        %1897 = vmatpush.bf16.msra.mxu0 %v1747
        %1898 = vmatpush.bf16.msra.mxu0 %v1743
        %1899 = vmatpush.bf16.msra.mxu0 %v1739
        %1900 = vmatpush.bf16.msra.mxu0 %v1735
        %1901 = vmatpush.bf16.msra.mxu0 %v1731
        %1902 = vmatpush.bf16.msra.mxu0 %v1727
        %1903 = vmatpush.bf16.msra.mxu0 %v1723
        %1904 = vmatpush.bf16.msra.mxu0 %v1719
        %1905 = vmatmul.bf16.gmra.mxu0 %v899
        %v1906 = vpop.f32.mrf.mxu0
        %v1907 = vadd.f32 0.0, %v1906
        %v1908 = vpop.f32.mrf.mxu0
        %1909 = vdwg.mxu0
        %1910 = vmatpush.bf16.msra.mxu0 %v1779
        %1911 = vmatpush.bf16.msra.mxu0 %v1775
        %1912 = vmatpush.bf16.msra.mxu0 %v1771
        %1913 = vmatpush.bf16.msra.mxu0 %v1767
        %1914 = vmatpush.bf16.msra.mxu0 %v1763
        %1915 = vmatpush.bf16.msra.mxu0 %v1759
        %1916 = vmatpush.bf16.msra.mxu0 %v1755
        %1917 = vmatpush.bf16.msra.mxu0 %v1751
        %1918 = vmatmul.bf16.gmra.mxu0 %v900
        %v1919 = vpop.f32.mrf.mxu0
        %v1920 = vadd.f32 %v1907, %v1919
        %v1921 = vpop.f32.mrf.mxu0
        %1922 = vdwg.mxu0
        %1923 = vmatpush.bf16.msra.mxu0 %v1748
        %1924 = vmatpush.bf16.msra.mxu0 %v1744
        %1925 = vmatpush.bf16.msra.mxu0 %v1740
        %1926 = vmatpush.bf16.msra.mxu0 %v1736
        %1927 = vmatpush.bf16.msra.mxu0 %v1732
        %1928 = vmatpush.bf16.msra.mxu0 %v1728
        %1929 = vmatpush.bf16.msra.mxu0 %v1724
        %1930 = vmatpush.bf16.msra.mxu0 %v1720
        %1931 = vmatmul.bf16.gmra.mxu0 %v899
        %v1932 = vpop.f32.mrf.mxu0
        %v1933 = vadd.f32 0.0, %v1932
        %v1934 = vpop.f32.mrf.mxu0
        %1935 = vdwg.mxu0
        %1936 = vmatpush.bf16.msra.mxu0 %v1780
        %1937 = vmatpush.bf16.msra.mxu0 %v1776
        %1938 = vmatpush.bf16.msra.mxu0 %v1772
        %1939 = vmatpush.bf16.msra.mxu0 %v1768
        %1940 = vmatpush.bf16.msra.mxu0 %v1764
        %1941 = vmatpush.bf16.msra.mxu0 %v1760
        %1942 = vmatpush.bf16.msra.mxu0 %v1756
        %1943 = vmatpush.bf16.msra.mxu0 %v1752
        %1944 = vmatmul.bf16.gmra.mxu0 %v900
        %v1945 = vpop.f32.mrf.mxu0
        %v1946 = vadd.f32 %v1933, %v1945
        %v1947 = vpop.f32.mrf.mxu0
        %1948 = vdwg.mxu0
        %v2013 = vunpack.c.l.b16 %v1397
        %v2014 = vunpack.c.h.b16 %v1397
        %v2015 = vunpack.c.l.b16 %v1398
        %v2016 = vunpack.c.h.b16 %v1398
        %v2017 = vunpack.c.l.b16 %v1399
        %v2018 = vunpack.c.h.b16 %v1399
        %v2019 = vunpack.c.l.b16 %v1400
        %v2020 = vunpack.c.h.b16 %v1400
        %v2021 = vunpack.c.l.b16 %v1401
        %v2022 = vunpack.c.h.b16 %v1401
        %v2023 = vunpack.c.l.b16 %v1402
        %v2024 = vunpack.c.h.b16 %v1402
        %v2025 = vunpack.c.l.b16 %v1403
        %v2026 = vunpack.c.h.b16 %v1403
        %v2027 = vunpack.c.l.b16 %v1404
        %v2028 = vunpack.c.h.b16 %v1404
        %v2029 = vunpack.c.l.b16 %v1405
        %v2030 = vunpack.c.h.b16 %v1405
        %v2031 = vunpack.c.l.b16 %v1406
        %v2032 = vunpack.c.h.b16 %v1406
        %v2033 = vunpack.c.l.b16 %v1407
        %v2034 = vunpack.c.h.b16 %v1407
        %v2035 = vunpack.c.l.b16 %v1408
        %v2036 = vunpack.c.h.b16 %v1408
        %v2037 = vunpack.c.l.b16 %v1409
        %v2038 = vunpack.c.h.b16 %v1409
        %v2039 = vunpack.c.l.b16 %v1410
        %v2040 = vunpack.c.h.b16 %v1410
        %v2041 = vunpack.c.l.b16 %v1411
        %v2042 = vunpack.c.h.b16 %v1411
        %v2043 = vunpack.c.l.b16 %v1412
        %v2044 = vunpack.c.h.b16 %v1412
        %v2045 = vunpack.c.l.b16 %v1413
        %v2046 = vunpack.c.h.b16 %v1413
        %v2047 = vunpack.c.l.b16 %v1414
        %v2048 = vunpack.c.h.b16 %v1414
        %v2049 = vunpack.c.l.b16 %v1415
        %v2050 = vunpack.c.h.b16 %v1415
        %v2051 = vunpack.c.l.b16 %v1416
        %v2052 = vunpack.c.h.b16 %v1416
        %v2053 = vunpack.c.l.b16 %v1417
        %v2054 = vunpack.c.h.b16 %v1417
        %v2055 = vunpack.c.l.b16 %v1418
        %v2056 = vunpack.c.h.b16 %v1418
        %v2057 = vunpack.c.l.b16 %v1419
        %v2058 = vunpack.c.h.b16 %v1419
        %v2059 = vunpack.c.l.b16 %v1420
        %v2060 = vunpack.c.h.b16 %v1420
        %v2061 = vunpack.c.l.b16 %v1421
        %v2062 = vunpack.c.h.b16 %v1421
        %v2063 = vunpack.c.l.b16 %v1422
        %v2064 = vunpack.c.h.b16 %v1422
        %v2065 = vunpack.c.l.b16 %v1423
        %v2066 = vunpack.c.h.b16 %v1423
        %v2067 = vunpack.c.l.b16 %v1424
        %v2068 = vunpack.c.h.b16 %v1424
        %v2069 = vunpack.c.l.b16 %v1425
        %v2070 = vunpack.c.h.b16 %v1425
        %v2071 = vunpack.c.l.b16 %v1426
        %v2072 = vunpack.c.h.b16 %v1426
        %v2073 = vunpack.c.l.b16 %v1427
        %v2074 = vunpack.c.h.b16 %v1427
        %v2075 = vunpack.c.l.b16 %v1428
        %v2076 = vunpack.c.h.b16 %v1428
        %v2077 = vunpack.c.l.b16 %v1429
        %v2078 = vunpack.c.h.b16 %v1429
        %v2079 = vunpack.c.l.b16 %v1430
        %v2080 = vunpack.c.h.b16 %v1430
        %v2081 = vunpack.c.l.b16 %v1431
        %v2082 = vunpack.c.h.b16 %v1431
        %v2083 = vunpack.c.l.b16 %v1432
        %v2084 = vunpack.c.h.b16 %v1432
        %v2085 = vunpack.c.l.b16 %v1433
        %v2086 = vunpack.c.h.b16 %v1433
        %v2087 = vunpack.c.l.b16 %v1434
        %v2088 = vunpack.c.h.b16 %v1434
        %v2089 = vunpack.c.l.b16 %v1435
        %v2090 = vunpack.c.h.b16 %v1435
        %v2091 = vunpack.c.l.b16 %v1436
        %v2092 = vunpack.c.h.b16 %v1436
        %v2093 = vunpack.c.l.b16 %v1437
        %v2094 = vunpack.c.h.b16 %v1437
        %v2095 = vunpack.c.l.b16 %v1438
        %v2096 = vunpack.c.h.b16 %v1438
        %v2097 = vunpack.c.l.b16 %v1439
        %v2098 = vunpack.c.h.b16 %v1439
        %v2099 = vunpack.c.l.b16 %v1440
        %v2100 = vunpack.c.h.b16 %v1440
        %v2101 = vunpack.c.l.b16 %v1441
        %v2102 = vunpack.c.h.b16 %v1441
        %v2103 = vunpack.c.l.b16 %v1442
        %v2104 = vunpack.c.h.b16 %v1442
        %v2105 = vunpack.c.l.b16 %v1443
        %v2106 = vunpack.c.h.b16 %v1443
        %v2107 = vunpack.c.l.b16 %v1444
        %v2108 = vunpack.c.h.b16 %v1444
        %v2109 = vunpack.c.l.b16 %v1445
        %v2110 = vunpack.c.h.b16 %v1445
        %v2111 = vunpack.c.l.b16 %v1446
        %v2112 = vunpack.c.h.b16 %v1446
        %v2113 = vunpack.c.l.b16 %v1447
        %v2114 = vunpack.c.h.b16 %v1447
        %v2115 = vunpack.c.l.b16 %v1448
        %v2116 = vunpack.c.h.b16 %v1448
        %v2117 = vunpack.c.l.b16 %v1449
        %v2118 = vunpack.c.h.b16 %v1449
        %v2119 = vunpack.c.l.b16 %v1450
        %v2120 = vunpack.c.h.b16 %v1450
        %v2121 = vunpack.c.l.b16 %v1451
        %v2122 = vunpack.c.h.b16 %v1451
        %v2123 = vunpack.c.l.b16 %v1452
        %v2124 = vunpack.c.h.b16 %v1452
        %v2125 = vunpack.c.l.b16 %v1453
        %v2126 = vunpack.c.h.b16 %v1453
        %v2127 = vunpack.c.l.b16 %v1454
        %v2128 = vunpack.c.h.b16 %v1454
        %v2129 = vunpack.c.l.b16 %v1455
        %v2130 = vunpack.c.h.b16 %v1455
        %v2131 = vunpack.c.l.b16 %v1456
        %v2132 = vunpack.c.h.b16 %v1456
        %v2133 = vunpack.c.l.b16 %v1457
        %v2134 = vunpack.c.h.b16 %v1457
        %v2135 = vunpack.c.l.b16 %v1458
        %v2136 = vunpack.c.h.b16 %v1458
        %v2137 = vunpack.c.l.b16 %v1459
        %v2138 = vunpack.c.h.b16 %v1459
        %v2139 = vunpack.c.l.b16 %v1460
        %v2140 = vunpack.c.h.b16 %v1460
        %v2141 = vpack.c.b16 %v2017, %v2013
        %v2142 = vpack.c.b16 %v2018, %v2014
        %v2143 = vpack.c.b16 %v2019, %v2015
        %v2144 = vpack.c.b16 %v2020, %v2016
        %v2145 = vpack.c.b16 %v2025, %v2021
        %v2146 = vpack.c.b16 %v2026, %v2022
        %v2147 = vpack.c.b16 %v2027, %v2023
        %v2148 = vpack.c.b16 %v2028, %v2024
        %v2149 = vpack.c.b16 %v2033, %v2029
        %v2150 = vpack.c.b16 %v2034, %v2030
        %v2151 = vpack.c.b16 %v2035, %v2031
        %v2152 = vpack.c.b16 %v2036, %v2032
        %v2153 = vpack.c.b16 %v2041, %v2037
        %v2154 = vpack.c.b16 %v2042, %v2038
        %v2155 = vpack.c.b16 %v2043, %v2039
        %v2156 = vpack.c.b16 %v2044, %v2040
        %v2157 = vpack.c.b16 %v2049, %v2045
        %v2158 = vpack.c.b16 %v2050, %v2046
        %v2159 = vpack.c.b16 %v2051, %v2047
        %v2160 = vpack.c.b16 %v2052, %v2048
        %v2161 = vpack.c.b16 %v2057, %v2053
        %v2162 = vpack.c.b16 %v2058, %v2054
        %v2163 = vpack.c.b16 %v2059, %v2055
        %v2164 = vpack.c.b16 %v2060, %v2056
        %v2165 = vpack.c.b16 %v2065, %v2061
        %v2166 = vpack.c.b16 %v2066, %v2062
        %v2167 = vpack.c.b16 %v2067, %v2063
        %v2168 = vpack.c.b16 %v2068, %v2064
        %v2169 = vpack.c.b16 %v2073, %v2069
        %v2170 = vpack.c.b16 %v2074, %v2070
        %v2171 = vpack.c.b16 %v2075, %v2071
        %v2172 = vpack.c.b16 %v2076, %v2072
        %v2173 = vpack.c.b16 %v2081, %v2077
        %v2174 = vpack.c.b16 %v2082, %v2078
        %v2175 = vpack.c.b16 %v2083, %v2079
        %v2176 = vpack.c.b16 %v2084, %v2080
        %v2177 = vpack.c.b16 %v2089, %v2085
        %v2178 = vpack.c.b16 %v2090, %v2086
        %v2179 = vpack.c.b16 %v2091, %v2087
        %v2180 = vpack.c.b16 %v2092, %v2088
        %v2181 = vpack.c.b16 %v2097, %v2093
        %v2182 = vpack.c.b16 %v2098, %v2094
        %v2183 = vpack.c.b16 %v2099, %v2095
        %v2184 = vpack.c.b16 %v2100, %v2096
        %v2185 = vpack.c.b16 %v2105, %v2101
        %v2186 = vpack.c.b16 %v2106, %v2102
        %v2187 = vpack.c.b16 %v2107, %v2103
        %v2188 = vpack.c.b16 %v2108, %v2104
        %v2189 = vpack.c.b16 %v2113, %v2109
        %v2190 = vpack.c.b16 %v2114, %v2110
        %v2191 = vpack.c.b16 %v2115, %v2111
        %v2192 = vpack.c.b16 %v2116, %v2112
        %v2193 = vpack.c.b16 %v2121, %v2117
        %v2194 = vpack.c.b16 %v2122, %v2118
        %v2195 = vpack.c.b16 %v2123, %v2119
        %v2196 = vpack.c.b16 %v2124, %v2120
        %v2197 = vpack.c.b16 %v2129, %v2125
        %v2198 = vpack.c.b16 %v2130, %v2126
        %v2199 = vpack.c.b16 %v2131, %v2127
        %v2200 = vpack.c.b16 %v2132, %v2128
        %v2201 = vpack.c.b16 %v2137, %v2133
        %v2202 = vpack.c.b16 %v2138, %v2134
        %v2203 = vpack.c.b16 %v2139, %v2135
        %v2204 = vpack.c.b16 %v2140, %v2136
        %2269 = vmatpush.bf16.msra.mxu0 %v2169
        %2270 = vmatpush.bf16.msra.mxu0 %v2165
        %2271 = vmatpush.bf16.msra.mxu0 %v2161
        %2272 = vmatpush.bf16.msra.mxu0 %v2157
        %2273 = vmatpush.bf16.msra.mxu0 %v2153
        %2274 = vmatpush.bf16.msra.mxu0 %v2149
        %2275 = vmatpush.bf16.msra.mxu0 %v2145
        %2276 = vmatpush.bf16.msra.mxu0 %v2141
        %2277 = vmatmul.bf16.gmra.mxu0 %v879
        %v2278 = vpop.f32.mrf.mxu0
        %v2279 = vadd.f32 %v1868, %v2278
        %v2280 = vpop.f32.mrf.mxu0
        %2281 = vdwg.mxu0
        %2282 = vmatpush.bf16.msra.mxu0 %v2201
        %2283 = vmatpush.bf16.msra.mxu0 %v2197
        %2284 = vmatpush.bf16.msra.mxu0 %v2193
        %2285 = vmatpush.bf16.msra.mxu0 %v2189
        %2286 = vmatpush.bf16.msra.mxu0 %v2185
        %2287 = vmatpush.bf16.msra.mxu0 %v2181
        %2288 = vmatpush.bf16.msra.mxu0 %v2177
        %2289 = vmatpush.bf16.msra.mxu0 %v2173
        %2290 = vmatmul.bf16.gmra.mxu0 %v880
        %v2291 = vpop.f32.mrf.mxu0
        %v2292 = vadd.f32 %v2279, %v2291
        %v2293 = vpop.f32.mrf.mxu0
        %2294 = vdwg.mxu0
        %2295 = vmatpush.bf16.msra.mxu0 %v2170
        %2296 = vmatpush.bf16.msra.mxu0 %v2166
        %2297 = vmatpush.bf16.msra.mxu0 %v2162
        %2298 = vmatpush.bf16.msra.mxu0 %v2158
        %2299 = vmatpush.bf16.msra.mxu0 %v2154
        %2300 = vmatpush.bf16.msra.mxu0 %v2150
        %2301 = vmatpush.bf16.msra.mxu0 %v2146
        %2302 = vmatpush.bf16.msra.mxu0 %v2142
        %2303 = vmatmul.bf16.gmra.mxu0 %v879
        %v2304 = vpop.f32.mrf.mxu0
        %v2305 = vadd.f32 %v1894, %v2304
        %v2306 = vpop.f32.mrf.mxu0
        %2307 = vdwg.mxu0
        %2308 = vmatpush.bf16.msra.mxu0 %v2202
        %2309 = vmatpush.bf16.msra.mxu0 %v2198
        %2310 = vmatpush.bf16.msra.mxu0 %v2194
        %2311 = vmatpush.bf16.msra.mxu0 %v2190
        %2312 = vmatpush.bf16.msra.mxu0 %v2186
        %2313 = vmatpush.bf16.msra.mxu0 %v2182
        %2314 = vmatpush.bf16.msra.mxu0 %v2178
        %2315 = vmatpush.bf16.msra.mxu0 %v2174
        %2316 = vmatmul.bf16.gmra.mxu0 %v880
        %v2317 = vpop.f32.mrf.mxu0
        %v2318 = vadd.f32 %v2305, %v2317
        %v2319 = vpop.f32.mrf.mxu0
        %2320 = vdwg.mxu0
        %2321 = vmatpush.bf16.msra.mxu0 %v2171
        %2322 = vmatpush.bf16.msra.mxu0 %v2167
        %2323 = vmatpush.bf16.msra.mxu0 %v2163
        %2324 = vmatpush.bf16.msra.mxu0 %v2159
        %2325 = vmatpush.bf16.msra.mxu0 %v2155
        %2326 = vmatpush.bf16.msra.mxu0 %v2151
        %2327 = vmatpush.bf16.msra.mxu0 %v2147
        %2328 = vmatpush.bf16.msra.mxu0 %v2143
        %2329 = vmatmul.bf16.gmra.mxu0 %v879
        %v2330 = vpop.f32.mrf.mxu0
        %v2331 = vadd.f32 %v1920, %v2330
        %v2332 = vpop.f32.mrf.mxu0
        %2333 = vdwg.mxu0
        %2334 = vmatpush.bf16.msra.mxu0 %v2203
        %2335 = vmatpush.bf16.msra.mxu0 %v2199
        %2336 = vmatpush.bf16.msra.mxu0 %v2195
        %2337 = vmatpush.bf16.msra.mxu0 %v2191
        %2338 = vmatpush.bf16.msra.mxu0 %v2187
        %2339 = vmatpush.bf16.msra.mxu0 %v2183
        %2340 = vmatpush.bf16.msra.mxu0 %v2179
        %2341 = vmatpush.bf16.msra.mxu0 %v2175
        %2342 = vmatmul.bf16.gmra.mxu0 %v880
        %v2343 = vpop.f32.mrf.mxu0
        %v2344 = vadd.f32 %v2331, %v2343
        %v2345 = vpop.f32.mrf.mxu0
        %2346 = vdwg.mxu0
        %2347 = vmatpush.bf16.msra.mxu0 %v2172
        %2348 = vmatpush.bf16.msra.mxu0 %v2168
        %2349 = vmatpush.bf16.msra.mxu0 %v2164
        %2350 = vmatpush.bf16.msra.mxu0 %v2160
        %2351 = vmatpush.bf16.msra.mxu0 %v2156
        %2352 = vmatpush.bf16.msra.mxu0 %v2152
        %2353 = vmatpush.bf16.msra.mxu0 %v2148
        %2354 = vmatpush.bf16.msra.mxu0 %v2144
        %2355 = vmatmul.bf16.gmra.mxu0 %v879
        %v2356 = vpop.f32.mrf.mxu0
        %v2357 = vadd.f32 %v1946, %v2356
        %v2358 = vpop.f32.mrf.mxu0
        %2359 = vdwg.mxu0
        %2360 = vmatpush.bf16.msra.mxu0 %v2204
        %2361 = vmatpush.bf16.msra.mxu0 %v2200
        %2362 = vmatpush.bf16.msra.mxu0 %v2196
        %2363 = vmatpush.bf16.msra.mxu0 %v2192
        %2364 = vmatpush.bf16.msra.mxu0 %v2188
        %2365 = vmatpush.bf16.msra.mxu0 %v2184
        %2366 = vmatpush.bf16.msra.mxu0 %v2180
        %2367 = vmatpush.bf16.msra.mxu0 %v2176
        %2368 = vmatmul.bf16.gmra.mxu0 %v880
        %v2369 = vpop.f32.mrf.mxu0
        %v2370 = vadd.f32 %v2357, %v2369
        %v2371 = vpop.f32.mrf.mxu0
        %2372 = vdwg.mxu0
        %v2373 = vld [vmem:[%s16] sm:$0xf]
        %v2375 = vperm.slane %v2373, 0
        %v2376 = vperm.slane %v2373, 1
        %v2377 = vperm.slane %v2373, 2
        %v2378 = vperm.slane %v2373, 3
        %v2383 = vadd.f32 %v2292, %v2375
        %v2384 = vadd.f32 %v2318, %v2376
        %v2385 = vadd.f32 %v2344, %v2377
        %v2386 = vadd.f32 %v2370, %v2378
        %v2387 = vmax.f32 %v2383, 0.0
        %v2388 = vmax.f32 %v2384, 0.0
        %v2389 = vmax.f32 %v2385, 0.0
        %v2390 = vmax.f32 %v2386, 0.0
        %v2391 = vpack.c.bf16 %v2387, %v2387
        %v2392 = vpack.c.bf16 %v2388, %v2388
        %v2393 = vpack.c.bf16 %v2389, %v2389
        %v2394 = vpack.c.bf16 %v2390, %v2390
        %v2395 = vld [vmem:[#allocation21] sm:$0xff]
        %v2396 = vld [vmem:[#allocation21 + $0x8] sm:$0xff]
        %v2397 = vld [vmem:[#allocation21 + $0x10] sm:$0xff]
        %v2398 = vld [vmem:[#allocation21 + $0x18] sm:$0xff]
        %v2399 = vld [vmem:[#allocation21 + $0x20] sm:$0xff]
        %v2400 = vld [vmem:[#allocation21 + $0x28] sm:$0xff]
        %v2401 = vld [vmem:[#allocation21 + $0x30] sm:$0xff]
        %v2402 = vld [vmem:[#allocation21 + $0x38] sm:$0xff]
        %v2403 = vld [vmem:[#allocation21 + $0x40] sm:$0xff]
        %v2404 = vld [vmem:[#allocation21 + $0x48] sm:$0xff]
        %v2405 = vld [vmem:[#allocation21 + $0x50] sm:$0xff]
        %v2406 = vld [vmem:[#allocation21 + $0x58] sm:$0xff]
        %v2407 = vld [vmem:[#allocation21 + $0x60] sm:$0xff]
        %v2408 = vld [vmem:[#allocation21 + $0x68] sm:$0xff]
        %v2409 = vld [vmem:[#allocation21 + $0x70] sm:$0xff]
        %v2410 = vld [vmem:[#allocation21 + $0x78] sm:$0xff]
        %v2411 = vld [vmem:[#allocation21 + $0x80] sm:$0xff]
        %v2412 = vld [vmem:[#allocation21 + $0x88] sm:$0xff]
        %v2413 = vld [vmem:[#allocation21 + $0x90] sm:$0xff]
        %v2414 = vld [vmem:[#allocation21 + $0x98] sm:$0xff]
        %v2415 = vld [vmem:[#allocation21 + $0xa0] sm:$0xff]
        %v2416 = vld [vmem:[#allocation21 + $0xa8] sm:$0xff]
        %v2417 = vld [vmem:[#allocation21 + $0xb0] sm:$0xff]
        %v2418 = vld [vmem:[#allocation21 + $0xb8] sm:$0xff]
        %v2419 = vld [vmem:[#allocation21 + $0xc0] sm:$0xff]
        %v2420 = vld [vmem:[#allocation21 + $0xc8] sm:$0xff]
        %v2421 = vld [vmem:[#allocation21 + $0xd0] sm:$0xff]
        %v2422 = vld [vmem:[#allocation21 + $0xd8] sm:$0xff]
        %v2423 = vld [vmem:[#allocation21 + $0xe0] sm:$0xff]
        %v2424 = vld [vmem:[#allocation21 + $0xe8] sm:$0xff]
        %v2425 = vld [vmem:[#allocation21 + $0xf0] sm:$0xff]
        %v2426 = vld [vmem:[#allocation21 + $0xf8] sm:$0xff]
        %v2427 = vld [vmem:[#allocation21 + $0x100] sm:$0xff]
        %v2428 = vld [vmem:[#allocation21 + $0x108] sm:$0xff]
        %v2429 = vld [vmem:[#allocation21 + $0x110] sm:$0xff]
        %v2430 = vld [vmem:[#allocation21 + $0x118] sm:$0xff]
        %v2431 = vld [vmem:[#allocation21 + $0x120] sm:$0xff]
        %v2432 = vld [vmem:[#allocation21 + $0x128] sm:$0xff]
        %v2433 = vld [vmem:[#allocation21 + $0x130] sm:$0xff]
        %v2434 = vld [vmem:[#allocation21 + $0x138] sm:$0xff]
        %v2435 = vld [vmem:[#allocation21 + $0x140] sm:$0xff]
        %v2436 = vld [vmem:[#allocation21 + $0x148] sm:$0xff]
        %v2437 = vld [vmem:[#allocation21 + $0x150] sm:$0xff]
        %v2438 = vld [vmem:[#allocation21 + $0x158] sm:$0xff]
        %v2439 = vld [vmem:[#allocation21 + $0x160] sm:$0xff]
        %v2440 = vld [vmem:[#allocation21 + $0x168] sm:$0xff]
        %v2441 = vld [vmem:[#allocation21 + $0x170] sm:$0xff]
        %v2442 = vld [vmem:[#allocation21 + $0x178] sm:$0xff]
        %v2443 = vld [vmem:[#allocation21 + $0x180] sm:$0xff]
        %v2444 = vld [vmem:[#allocation21 + $0x188] sm:$0xff]
        %v2445 = vld [vmem:[#allocation21 + $0x190] sm:$0xff]
        %v2446 = vld [vmem:[#allocation21 + $0x198] sm:$0xff]
        %v2447 = vld [vmem:[#allocation21 + $0x1a0] sm:$0xff]
        %v2448 = vld [vmem:[#allocation21 + $0x1a8] sm:$0xff]
        %v2449 = vld [vmem:[#allocation21 + $0x1b0] sm:$0xff]
        %v2450 = vld [vmem:[#allocation21 + $0x1b8] sm:$0xff]
        %v2451 = vld [vmem:[#allocation21 + $0x1c0] sm:$0xff]
        %v2452 = vld [vmem:[#allocation21 + $0x1c8] sm:$0xff]
        %v2453 = vld [vmem:[#allocation21 + $0x1d0] sm:$0xff]
        %v2454 = vld [vmem:[#allocation21 + $0x1d8] sm:$0xff]
        %v2455 = vld [vmem:[#allocation21 + $0x1e0] sm:$0xff]
        %v2456 = vld [vmem:[#allocation21 + $0x1e8] sm:$0xff]
        %v2457 = vld [vmem:[#allocation21 + $0x1f0] sm:$0xff]
        %v2458 = vld [vmem:[#allocation21 + $0x1f8] sm:$0xff]
        %v2459 = vld [vmem:[%s18] sm:$0x3]
        %v2461 = vperm.slane %v2459, 0
        %v2462 = vperm.slane %v2459, 1
        %v2529 = vunpack.c.l.b16 %v2395
        %v2530 = vunpack.c.h.b16 %v2395
        %v2531 = vunpack.c.l.b16 %v2396
        %v2532 = vunpack.c.h.b16 %v2396
        %v2533 = vunpack.c.l.b16 %v2397
        %v2534 = vunpack.c.h.b16 %v2397
        %v2535 = vunpack.c.l.b16 %v2398
        %v2536 = vunpack.c.h.b16 %v2398
        %v2537 = vunpack.c.l.b16 %v2399
        %v2538 = vunpack.c.h.b16 %v2399
        %v2539 = vunpack.c.l.b16 %v2400
        %v2540 = vunpack.c.h.b16 %v2400
        %v2541 = vunpack.c.l.b16 %v2401
        %v2542 = vunpack.c.h.b16 %v2401
        %v2543 = vunpack.c.l.b16 %v2402
        %v2544 = vunpack.c.h.b16 %v2402
        %v2545 = vunpack.c.l.b16 %v2403
        %v2546 = vunpack.c.h.b16 %v2403
        %v2547 = vunpack.c.l.b16 %v2404
        %v2548 = vunpack.c.h.b16 %v2404
        %v2549 = vunpack.c.l.b16 %v2405
        %v2550 = vunpack.c.h.b16 %v2405
        %v2551 = vunpack.c.l.b16 %v2406
        %v2552 = vunpack.c.h.b16 %v2406
        %v2553 = vunpack.c.l.b16 %v2407
        %v2554 = vunpack.c.h.b16 %v2407
        %v2555 = vunpack.c.l.b16 %v2408
        %v2556 = vunpack.c.h.b16 %v2408
        %v2557 = vunpack.c.l.b16 %v2409
        %v2558 = vunpack.c.h.b16 %v2409
        %v2559 = vunpack.c.l.b16 %v2410
        %v2560 = vunpack.c.h.b16 %v2410
        %v2561 = vunpack.c.l.b16 %v2411
        %v2562 = vunpack.c.h.b16 %v2411
        %v2563 = vunpack.c.l.b16 %v2412
        %v2564 = vunpack.c.h.b16 %v2412
        %v2565 = vunpack.c.l.b16 %v2413
        %v2566 = vunpack.c.h.b16 %v2413
        %v2567 = vunpack.c.l.b16 %v2414
        %v2568 = vunpack.c.h.b16 %v2414
        %v2569 = vunpack.c.l.b16 %v2415
        %v2570 = vunpack.c.h.b16 %v2415
        %v2571 = vunpack.c.l.b16 %v2416
        %v2572 = vunpack.c.h.b16 %v2416
        %v2573 = vunpack.c.l.b16 %v2417
        %v2574 = vunpack.c.h.b16 %v2417
        %v2575 = vunpack.c.l.b16 %v2418
        %v2576 = vunpack.c.h.b16 %v2418
        %v2577 = vunpack.c.l.b16 %v2419
        %v2578 = vunpack.c.h.b16 %v2419
        %v2579 = vunpack.c.l.b16 %v2420
        %v2580 = vunpack.c.h.b16 %v2420
        %v2581 = vunpack.c.l.b16 %v2421
        %v2582 = vunpack.c.h.b16 %v2421
        %v2583 = vunpack.c.l.b16 %v2422
        %v2584 = vunpack.c.h.b16 %v2422
        %v2585 = vunpack.c.l.b16 %v2423
        %v2586 = vunpack.c.h.b16 %v2423
        %v2587 = vunpack.c.l.b16 %v2424
        %v2588 = vunpack.c.h.b16 %v2424
        %v2589 = vunpack.c.l.b16 %v2425
        %v2590 = vunpack.c.h.b16 %v2425
        %v2591 = vunpack.c.l.b16 %v2426
        %v2592 = vunpack.c.h.b16 %v2426
        %v2593 = vunpack.c.l.b16 %v2427
        %v2594 = vunpack.c.h.b16 %v2427
        %v2595 = vunpack.c.l.b16 %v2428
        %v2596 = vunpack.c.h.b16 %v2428
        %v2597 = vunpack.c.l.b16 %v2429
        %v2598 = vunpack.c.h.b16 %v2429
        %v2599 = vunpack.c.l.b16 %v2430
        %v2600 = vunpack.c.h.b16 %v2430
        %v2601 = vunpack.c.l.b16 %v2431
        %v2602 = vunpack.c.h.b16 %v2431
        %v2603 = vunpack.c.l.b16 %v2432
        %v2604 = vunpack.c.h.b16 %v2432
        %v2605 = vunpack.c.l.b16 %v2433
        %v2606 = vunpack.c.h.b16 %v2433
        %v2607 = vunpack.c.l.b16 %v2434
        %v2608 = vunpack.c.h.b16 %v2434
        %v2609 = vunpack.c.l.b16 %v2435
        %v2610 = vunpack.c.h.b16 %v2435
        %v2611 = vunpack.c.l.b16 %v2436
        %v2612 = vunpack.c.h.b16 %v2436
        %v2613 = vunpack.c.l.b16 %v2437
        %v2614 = vunpack.c.h.b16 %v2437
        %v2615 = vunpack.c.l.b16 %v2438
        %v2616 = vunpack.c.h.b16 %v2438
        %v2617 = vunpack.c.l.b16 %v2439
        %v2618 = vunpack.c.h.b16 %v2439
        %v2619 = vunpack.c.l.b16 %v2440
        %v2620 = vunpack.c.h.b16 %v2440
        %v2621 = vunpack.c.l.b16 %v2441
        %v2622 = vunpack.c.h.b16 %v2441
        %v2623 = vunpack.c.l.b16 %v2442
        %v2624 = vunpack.c.h.b16 %v2442
        %v2625 = vunpack.c.l.b16 %v2443
        %v2626 = vunpack.c.h.b16 %v2443
        %v2627 = vunpack.c.l.b16 %v2444
        %v2628 = vunpack.c.h.b16 %v2444
        %v2629 = vunpack.c.l.b16 %v2445
        %v2630 = vunpack.c.h.b16 %v2445
        %v2631 = vunpack.c.l.b16 %v2446
        %v2632 = vunpack.c.h.b16 %v2446
        %v2633 = vunpack.c.l.b16 %v2447
        %v2634 = vunpack.c.h.b16 %v2447
        %v2635 = vunpack.c.l.b16 %v2448
        %v2636 = vunpack.c.h.b16 %v2448
        %v2637 = vunpack.c.l.b16 %v2449
        %v2638 = vunpack.c.h.b16 %v2449
        %v2639 = vunpack.c.l.b16 %v2450
        %v2640 = vunpack.c.h.b16 %v2450
        %v2641 = vunpack.c.l.b16 %v2451
        %v2642 = vunpack.c.h.b16 %v2451
        %v2643 = vunpack.c.l.b16 %v2452
        %v2644 = vunpack.c.h.b16 %v2452
        %v2645 = vunpack.c.l.b16 %v2453
        %v2646 = vunpack.c.h.b16 %v2453
        %v2647 = vunpack.c.l.b16 %v2454
        %v2648 = vunpack.c.h.b16 %v2454
        %v2649 = vunpack.c.l.b16 %v2455
        %v2650 = vunpack.c.h.b16 %v2455
        %v2651 = vunpack.c.l.b16 %v2456
        %v2652 = vunpack.c.h.b16 %v2456
        %v2653 = vunpack.c.l.b16 %v2457
        %v2654 = vunpack.c.h.b16 %v2457
        %v2655 = vunpack.c.l.b16 %v2458
        %v2656 = vunpack.c.h.b16 %v2458
        %v2657 = vpack.c.b16 %v2531, %v2529
        %v2658 = vpack.c.b16 %v2532, %v2530
        %v2659 = vpack.c.b16 %v2535, %v2533
        %v2660 = vpack.c.b16 %v2536, %v2534
        %v2661 = vpack.c.b16 %v2539, %v2537
        %v2662 = vpack.c.b16 %v2540, %v2538
        %v2663 = vpack.c.b16 %v2543, %v2541
        %v2664 = vpack.c.b16 %v2544, %v2542
        %v2665 = vpack.c.b16 %v2547, %v2545
        %v2666 = vpack.c.b16 %v2548, %v2546
        %v2667 = vpack.c.b16 %v2551, %v2549
        %v2668 = vpack.c.b16 %v2552, %v2550
        %v2669 = vpack.c.b16 %v2555, %v2553
        %v2670 = vpack.c.b16 %v2556, %v2554
        %v2671 = vpack.c.b16 %v2559, %v2557
        %v2672 = vpack.c.b16 %v2560, %v2558
        %v2673 = vpack.c.b16 %v2563, %v2561
        %v2674 = vpack.c.b16 %v2564, %v2562
        %v2675 = vpack.c.b16 %v2567, %v2565
        %v2676 = vpack.c.b16 %v2568, %v2566
        %v2677 = vpack.c.b16 %v2571, %v2569
        %v2678 = vpack.c.b16 %v2572, %v2570
        %v2679 = vpack.c.b16 %v2575, %v2573
        %v2680 = vpack.c.b16 %v2576, %v2574
        %v2681 = vpack.c.b16 %v2579, %v2577
        %v2682 = vpack.c.b16 %v2580, %v2578
        %v2683 = vpack.c.b16 %v2583, %v2581
        %v2684 = vpack.c.b16 %v2584, %v2582
        %v2685 = vpack.c.b16 %v2587, %v2585
        %v2686 = vpack.c.b16 %v2588, %v2586
        %v2687 = vpack.c.b16 %v2591, %v2589
        %v2688 = vpack.c.b16 %v2592, %v2590
        %v2689 = vpack.c.b16 %v2595, %v2593
        %v2690 = vpack.c.b16 %v2596, %v2594
        %v2691 = vpack.c.b16 %v2599, %v2597
        %v2692 = vpack.c.b16 %v2600, %v2598
        %v2693 = vpack.c.b16 %v2603, %v2601
        %v2694 = vpack.c.b16 %v2604, %v2602
        %v2695 = vpack.c.b16 %v2607, %v2605
        %v2696 = vpack.c.b16 %v2608, %v2606
        %v2697 = vpack.c.b16 %v2611, %v2609
        %v2698 = vpack.c.b16 %v2612, %v2610
        %v2699 = vpack.c.b16 %v2615, %v2613
        %v2700 = vpack.c.b16 %v2616, %v2614
        %v2701 = vpack.c.b16 %v2619, %v2617
        %v2702 = vpack.c.b16 %v2620, %v2618
        %v2703 = vpack.c.b16 %v2623, %v2621
        %v2704 = vpack.c.b16 %v2624, %v2622
        %v2705 = vpack.c.b16 %v2627, %v2625
        %v2706 = vpack.c.b16 %v2628, %v2626
        %v2707 = vpack.c.b16 %v2631, %v2629
        %v2708 = vpack.c.b16 %v2632, %v2630
        %v2709 = vpack.c.b16 %v2635, %v2633
        %v2710 = vpack.c.b16 %v2636, %v2634
        %v2711 = vpack.c.b16 %v2639, %v2637
        %v2712 = vpack.c.b16 %v2640, %v2638
        %v2713 = vpack.c.b16 %v2643, %v2641
        %v2714 = vpack.c.b16 %v2644, %v2642
        %v2715 = vpack.c.b16 %v2647, %v2645
        %v2716 = vpack.c.b16 %v2648, %v2646
        %v2717 = vpack.c.b16 %v2651, %v2649
        %v2718 = vpack.c.b16 %v2652, %v2650
        %v2719 = vpack.c.b16 %v2655, %v2653
        %v2720 = vpack.c.b16 %v2656, %v2654
        %2785 = vmatpush.bf16.msra.mxu0 %v2671
        %2786 = vmatpush.bf16.msra.mxu0 %v2669
        %2787 = vmatpush.bf16.msra.mxu0 %v2667
        %2788 = vmatpush.bf16.msra.mxu0 %v2665
        %2789 = vmatpush.bf16.msra.mxu0 %v2663
        %2790 = vmatpush.bf16.msra.mxu0 %v2661
        %2791 = vmatpush.bf16.msra.mxu0 %v2659
        %2792 = vmatpush.bf16.msra.mxu0 %v2657
        %2793 = vmatmul.bf16.gmra.mxu0 %v2391
        %v2794 = vpop.f32.mrf.mxu0
        %v2795 = vadd.f32 %v2461, %v2794
        %v2796 = vpop.f32.mrf.mxu0
        %2797 = vdwg.mxu0
        %2798 = vmatpush.bf16.msra.mxu0 %v2687
        %2799 = vmatpush.bf16.msra.mxu0 %v2685
        %2800 = vmatpush.bf16.msra.mxu0 %v2683
        %2801 = vmatpush.bf16.msra.mxu0 %v2681
        %2802 = vmatpush.bf16.msra.mxu0 %v2679
        %2803 = vmatpush.bf16.msra.mxu0 %v2677
        %2804 = vmatpush.bf16.msra.mxu0 %v2675
        %2805 = vmatpush.bf16.msra.mxu0 %v2673
        %2806 = vmatmul.bf16.gmra.mxu0 %v2392
        %v2807 = vpop.f32.mrf.mxu0
        %v2808 = vadd.f32 %v2795, %v2807
        %v2809 = vpop.f32.mrf.mxu0
        %2810 = vdwg.mxu0
        %2811 = vmatpush.bf16.msra.mxu0 %v2703
        %2812 = vmatpush.bf16.msra.mxu0 %v2701
        %2813 = vmatpush.bf16.msra.mxu0 %v2699
        %2814 = vmatpush.bf16.msra.mxu0 %v2697
        %2815 = vmatpush.bf16.msra.mxu0 %v2695
        %2816 = vmatpush.bf16.msra.mxu0 %v2693
        %2817 = vmatpush.bf16.msra.mxu0 %v2691
        %2818 = vmatpush.bf16.msra.mxu0 %v2689
        %2819 = vmatmul.bf16.gmra.mxu0 %v2393
        %v2820 = vpop.f32.mrf.mxu0
        %v2821 = vadd.f32 %v2808, %v2820
        %v2822 = vpop.f32.mrf.mxu0
        %2823 = vdwg.mxu0
        %2824 = vmatpush.bf16.msra.mxu0 %v2719
        %2825 = vmatpush.bf16.msra.mxu0 %v2717
        %2826 = vmatpush.bf16.msra.mxu0 %v2715
        %2827 = vmatpush.bf16.msra.mxu0 %v2713
        %2828 = vmatpush.bf16.msra.mxu0 %v2711
        %2829 = vmatpush.bf16.msra.mxu0 %v2709
        %2830 = vmatpush.bf16.msra.mxu0 %v2707
        %2831 = vmatpush.bf16.msra.mxu0 %v2705
        %2832 = vmatmul.bf16.gmra.mxu0 %v2394
        %v2833 = vpop.f32.mrf.mxu0
        %v2834 = vadd.f32 %v2821, %v2833
        %v2835 = vpop.f32.mrf.mxu0
        %2836 = vdwg.mxu0
        %2837 = vmatpush.bf16.msra.mxu0 %v2672
        %2838 = vmatpush.bf16.msra.mxu0 %v2670
        %2839 = vmatpush.bf16.msra.mxu0 %v2668
        %2840 = vmatpush.bf16.msra.mxu0 %v2666
        %2841 = vmatpush.bf16.msra.mxu0 %v2664
        %2842 = vmatpush.bf16.msra.mxu0 %v2662
        %2843 = vmatpush.bf16.msra.mxu0 %v2660
        %2844 = vmatpush.bf16.msra.mxu0 %v2658
        %2845 = vmatmul.bf16.gmra.mxu0 %v2391
        %v2846 = vpop.f32.mrf.mxu0
        %v2847 = vadd.f32 %v2462, %v2846
        %v2848 = vpop.f32.mrf.mxu0
        %2849 = vdwg.mxu0
        %2850 = vmatpush.bf16.msra.mxu0 %v2688
        %2851 = vmatpush.bf16.msra.mxu0 %v2686
        %2852 = vmatpush.bf16.msra.mxu0 %v2684
        %2853 = vmatpush.bf16.msra.mxu0 %v2682
        %2854 = vmatpush.bf16.msra.mxu0 %v2680
        %2855 = vmatpush.bf16.msra.mxu0 %v2678
        %2856 = vmatpush.bf16.msra.mxu0 %v2676
        %2857 = vmatpush.bf16.msra.mxu0 %v2674
        %2858 = vmatmul.bf16.gmra.mxu0 %v2392
        %v2859 = vpop.f32.mrf.mxu0
        %v2860 = vadd.f32 %v2847, %v2859
        %v2861 = vpop.f32.mrf.mxu0
        %2862 = vdwg.mxu0
        %2863 = vmatpush.bf16.msra.mxu0 %v2704
        %2864 = vmatpush.bf16.msra.mxu0 %v2702
        %2865 = vmatpush.bf16.msra.mxu0 %v2700
        %2866 = vmatpush.bf16.msra.mxu0 %v2698
        %2867 = vmatpush.bf16.msra.mxu0 %v2696
        %2868 = vmatpush.bf16.msra.mxu0 %v2694
        %2869 = vmatpush.bf16.msra.mxu0 %v2692
        %2870 = vmatpush.bf16.msra.mxu0 %v2690
        %2871 = vmatmul.bf16.gmra.mxu0 %v2393
        %v2872 = vpop.f32.mrf.mxu0
        %v2873 = vadd.f32 %v2860, %v2872
        %v2874 = vpop.f32.mrf.mxu0
        %2875 = vdwg.mxu0
        %2876 = vmatpush.bf16.msra.mxu0 %v2720
        %2877 = vmatpush.bf16.msra.mxu0 %v2718
        %2878 = vmatpush.bf16.msra.mxu0 %v2716
        %2879 = vmatpush.bf16.msra.mxu0 %v2714
        %2880 = vmatpush.bf16.msra.mxu0 %v2712
        %2881 = vmatpush.bf16.msra.mxu0 %v2710
        %2882 = vmatpush.bf16.msra.mxu0 %v2708
        %2883 = vmatpush.bf16.msra.mxu0 %v2706
        %2884 = vmatmul.bf16.gmra.mxu0 %v2394
        %v2885 = vpop.f32.mrf.mxu0
        %v2886 = vadd.f32 %v2873, %v2885
        %v2887 = vpop.f32.mrf.mxu0
        %2888 = vdwg.mxu0
        %v2889 = vsub.f32 0.0, %v1395
        %v2890 = vsub.f32 0.0, %v1396
        %v2891 = vmul.f32 %v2889, 1.442695
        %v2892 = vpow.pop %v2891
        %v2893 = vmul.f32 %v2890, 1.442695
        %v2894 = vpow.pop %v2893
        %v2895 = vadd.f32 %v2892, 1.0
        %v2896 = vadd.f32 %v2894, 1.0
        %v2897 = vrcp.pop %v2895
        %v2898 = vrcp.pop %v2896
        %v2899 = vmul.f32 %v2897, %v817
        %v2900 = vmul.f32 %v2898, %v818
        %s2901 = sld [smem:[#allocation2]]
        %v2902 = vstv %s2901
        %v2903 = vmul.f32 %v2899, %v2902
        %v2904 = vmul.f32 %v2900, %v2902
        %v2905 = vadd.f32 %v2903, %v2834
        %v2906 = vadd.f32 %v2904, %v2886
        %2907 = vst [vmem:[%s816] sm:$0xff] %v2905
        %2908 = vst [vmem:[%s816 + $0x8] sm:$0xff] %v2906
        %s2909 = sand.u32 %s462, 1
        %s2910 = scalar_lea.sflag [#allocation5], %s2909
        %s2911 = sand.u32 %s462, 1
        %s2912 = smul.addr %s2911, 16
        %s2913 = scalar_lea.vmem [#allocation23], %s2912
        // Predicated region
        $region145: #{tpu_custom_call.1} parent=95 // pred_check
          %p2914 = pneg %p472
        $region146: #{tpu_custom_call.1} parent=95 // pred_check_branch
          %2916 = sbr.rel (%p2914) target = $region148
        $region147: #{tpu_custom_call.1} parent=95 // pred_region
          %2918 = vsyncadd %s2910, 0
          %s2919 = smul.addr %s45, 2
          %s2920 = smul.addr %s2919, 8
          %s2921 = scalar_lea.hbm %s19, %s2920
          %s2923 = sshll.u32 %s2913, 4
          %s2924 = int_to_ptr.vmem [resolvable:$true] %s2923
          %s2925 = sshll.u32 %s2921, 4
          %s2926 = int_to_ptr.hbm [resolvable:$true] %s2925
          %2928 = dma.vmem_to_hbm [thread:$0]  %s2924, 256, %s2926, %s2910
        $region148: #{tpu_custom_call.1} parent=95 // pred_fallthru
          _
      $region96: #{tpu_custom_call.1} parent=5 // pred_fallthru
        _
      %p2929 = scmp.le.s32.totalorder 2, %s40
      // Predicated region
      $region149: #{tpu_custom_call.1} parent=5 // pred_check
        %p2930 = pneg %p2929
      $region150: #{tpu_custom_call.1} parent=5 // pred_check_branch
        %2932 = sbr.rel (%p2930) target = $region152
      $region151: #{tpu_custom_call.1} parent=5 // pred_region
        %s2933 = ssub.s32 %s40, 2
        // Predicated region
        $region153: #{tpu_custom_call.1} parent=151 // pred_check
          %p2934 = pneg %p478
        $region154: #{tpu_custom_call.1} parent=151 // pred_check_branch
          %2936 = sbr.rel (%p2934) target = $region156
        $region155: #{tpu_custom_call.1} parent=151 // pred_region
          %s2937 = sand.u32 %s463, 1
          %s2938 = scalar_lea.sflag [#allocation5], %s2937
          %s2939 = sand.u32 %s463, 1
          %s2940 = smul.addr %s2939, 16
          %s2941 = scalar_lea.vmem [#allocation23], %s2940
          %2943 = dma.done %s2938, 256
        $region156: #{tpu_custom_call.1} parent=151 // pred_fallthru
          _
      $region152: #{tpu_custom_call.1} parent=5 // pred_fallthru
        _
    $region6: #{tpu_custom_call.1} parent=1 // loop_footer
      %s44 = sadd.s32 1, %s40
    $region7: #{tpu_custom_call.1} parent=1 // loop_footer_branch
      %39 = sbr.rel target = $region3
    $region8: #{tpu_custom_call.1} parent=1 // loop_exit
      _
    %2944 = vsyncpa [#allocation4], 1
    %s2945 = scalar_lea.sflag [#allocation4], 1
    %2946 = vsyncpa %s2945, 1
    %2947 = vsyncpa [#allocation7], 1
    %s2948 = scalar_lea.sflag [#allocation7], 1
    %2949 = vsyncpa %s2948, 1
    %2950 = vsyncpa [#allocation10], 1
    %2951 = vsyncpa [#allocation13], 1
    %2952 = vsyncpa [#allocation16], 1
    %2953 = vsyncpa [#allocation19], 1
    %2954 = vsyncpa [#allocation22], 1
    %2955 = vsyncpa [#allocation5], 1
    %s2956 = scalar_lea.sflag [#allocation5], 1
    %2957 = vsyncpa %s2956, 1

</llo_original>
